<compile_context>
chip_gen: v6e
topology: v6e:2x2x1
jax: 0.10.0
libtpu: 0.0.40
codegen_flags: <defaults>
</compile_context>

<pallas_src>
import functools
import math

import jax
import jax.numpy as jnp
from jax.experimental import pallas as pl
from jax.experimental.pallas import tpu as pltpu


# ----------------------------------------------------------------------------
# In-kernel helpers (f32 elementwise math)
# ----------------------------------------------------------------------------
def _layernorm(x, g, b, eps):
    mu = jnp.mean(x, axis=-1, keepdims=True)
    var = jnp.mean((x - mu) ** 2, axis=-1, keepdims=True)
    return (x - mu) * jax.lax.rsqrt(var + eps) * g + b


def _gelu(x):
    # TODO(synk): reference BERT uses exact erf-GELU; tanh approximation used since erf
    # lowering in Mosaic is not guaranteed.
    return 0.5 * x * (1.0 + jnp.tanh(0.7978845608028654 * (x + 0.044715 * x * x * x)))


# ----------------------------------------------------------------------------
# Pallas kernels
# ----------------------------------------------------------------------------
def _embed_kernel(wtok_ref, vis_ref, pt_ref,
                  wg1_ref, wb1_ref, ww_ref, wbias_ref, wg2_ref, wb2_ref,
                  vg1_ref, vb1_ref, vw_ref, vbias_ref, vg2_ref, vb2_ref,
                  eg_ref, eb_ref, o_ref, *, max_v_len, eps):
    Lv = max_v_len
    eg = eg_ref[...]
    eb = eb_ref[...]

    # text branch: LN -> Linear(+ReLU) -> LN
    w = wtok_ref[0]                                              # (Lt, E) f32
    w = _layernorm(w, wg1_ref[...], wb1_ref[...], eps)
    w = jnp.dot(w.astype(jnp.bfloat16), ww_ref[...],
                preferred_element_type=jnp.float32) + wbias_ref[...]
    w = jnp.maximum(w, 0.0)
    w = _layernorm(w, wg2_ref[...], wb2_ref[...], eps)           # (Lt, H)

    # visual branch: LN -> Linear(+ReLU) -> LN
    v = vis_ref[0]                                               # (Lv, Dv) f32
    v = _layernorm(v, vg1_ref[...], vb1_ref[...], eps)
    v = jnp.dot(v.astype(jnp.bfloat16), vw_ref[...],
                preferred_element_type=jnp.float32) + vbias_ref[...]
    v = jnp.maximum(v, 0.0)
    v = _layernorm(v, vg2_ref[...], vb2_ref[...], eps)           # (Lv, H)

    pt = pt_ref[0]                                               # (L, H) position + token-type emb
    L = pt.shape[0]
    # Final embedding LayerNorm is row-wise, so applying it per segment equals
    # LN(concat([v, w]) + pt) -- this avoids an in-kernel concatenate.
    o_ref[0, 0:Lv, :] = _layernorm(v + pt[0:Lv, :], eg, eb, eps)
    o_ref[0, Lv:L, :] = _layernorm(w + pt[Lv:L, :], eg, eb, eps)


def _bert_layer_kernel(h_ref, bias_ref, wqkv_ref, bqkv_ref, wo_ref, bo_ref,
                       ln1g_ref, ln1b_ref, wi_ref, bi_ref, w2_ref, b2_ref,
                       ln2g_ref, ln2b_ref, o_ref, *, num_heads, eps):
    x = h_ref[0]                                                 # (L, H) f32
    L, H = x.shape
    dh = H // num_heads
    scale = 1.0 / math.sqrt(dh)
    bias = bias_ref[0]                                           # (L, L) additive mask, f32

    # Fused QKV projection: single (L,H) x (H,3H) bf16 MXU matmul, f32 accumulate.
    qkv = jnp.dot(x.astype(jnp.bfloat16), wqkv_ref[...],
                  preferred_element_type=jnp.float32) + bqkv_ref[...]
    q = qkv[:, 0 * H:1 * H]
    k = qkv[:, 1 * H:2 * H]
    v = qkv[:, 2 * H:3 * H]

    # Multi-head attention with heads unrolled in-kernel.  The output projection is
    # accumulated per head (sum_h ctx_h @ Wo_h == concat_h(ctx_h) @ Wo).
    attn = jnp.zeros((L, H), jnp.float32) + bo_ref[...]
    for hd in range(num_heads):
        sl = slice(hd * dh, (hd + 1) * dh)
        qh = q[:, sl].astype(jnp.bfloat16)
        kh = k[:, sl].astype(jnp.bfloat16)
        vh = v[:, sl].astype(jnp.bfloat16)
        s = jax.lax.dot_general(qh, kh, (((1,), (1,)), ((), ())),
                                preferred_element_type=jnp.float32) * scale + bias
        s = s - jnp.max(s, axis=-1, keepdims=True)
        p = jnp.exp(s)
        p = p * pl.reciprocal(jnp.sum(p, axis=-1, keepdims=True), approx=True)
        ctx = jnp.dot(p.astype(jnp.bfloat16), vh, preferred_element_type=jnp.float32)
        attn = attn + jnp.dot(ctx.astype(jnp.bfloat16), wo_ref[hd],
                              preferred_element_type=jnp.float32)

    # residual + LN
    h1 = _layernorm(attn + x, ln1g_ref[...], ln1b_ref[...], eps)

    # FFN (GELU) + residual + LN, fused
    inter = jnp.dot(h1.astype(jnp.bfloat16), wi_ref[...],
                    preferred_element_type=jnp.float32) + bi_ref[...]
    inter = _gelu(inter)
    ffn = jnp.dot(inter.astype(jnp.bfloat16), w2_ref[...],
                  preferred_element_type=jnp.float32) + b2_ref[...]
    o_ref[0] = _layernorm(ffn + h1, ln2g_ref[...], ln2b_ref[...], eps)


def _lm_head_kernel(t_ref, wt_ref, bt_ref, lng_ref, lnb_ref, wd_ref, bd_ref, o_ref, *, eps):
    t = t_ref[...]                                               # (M, H) f32
    y = jnp.dot(t.astype(jnp.bfloat16), wt_ref[...],
                preferred_element_type=jnp.float32) + bt_ref[...]
    y = _gelu(y)
    y = _layernorm(y, lng_ref[...], lnb_ref[...], eps)
    # tied decoder matmul over a lane-dense, 128-padded vocab tile
    o_ref[...] = jnp.dot(y.astype(jnp.bfloat16), wd_ref[...],
                         preferred_element_type=jnp.float32) + bd_ref[...]


# ----------------------------------------------------------------------------
# pallas_call wrappers
# ----------------------------------------------------------------------------
def _rep_spec(a):
    """Grid-invariant (same block every step) full-array BlockSpec."""
    nd = a.ndim
    return pl.BlockSpec(a.shape, lambda i, nd=nd: (0,) * nd)


def pallas_embed(wtok, visual, pos_type, p, eps):
    B, Lt, E = wtok.shape
    _, Lv, Dv = visual.shape
    _, L, H = pos_type.shape
    arrays = [p["word_fc_ln1_g"], p["word_fc_ln1_b"], p["word_fc_w"], p["word_fc_b"],
              p["word_fc_ln2_g"], p["word_fc_ln2_b"],
              p["vid_ln1_g"], p["vid_ln1_b"], p["vid_w"], p["vid_b"],
              p["vid_ln2_g"], p["vid_ln2_b"], p["emb_ln_g"], p["emb_ln_b"]]
    return pl.pallas_call(
        functools.partial(_embed_kernel, max_v_len=Lv, eps=eps),
        out_shape=jax.ShapeDtypeStruct((B, L, H), jnp.float32),
        grid=(B,),
        in_specs=[
            pl.BlockSpec((1, Lt, E), lambda b: (b, 0, 0)),
            pl.BlockSpec((1, Lv, Dv), lambda b: (b, 0, 0)),
            pl.BlockSpec((1, L, H), lambda b: (b, 0, 0)),
        ] + [_rep_spec(a) for a in arrays],
        out_specs=pl.BlockSpec((1, L, H), lambda b: (b, 0, 0)),
        compiler_params=pltpu.CompilerParams(dimension_semantics=("parallel",)),
    )(wtok, visual, pos_type, *arrays)


def pallas_bert_layer(h, attn_bias, lp, num_heads, eps):
    B, L, H = h.shape
    arrays = [lp["wqkv"], lp["bqkv"], lp["wo"], lp["bo"],
              lp["attn_ln_g"], lp["attn_ln_b"],
              lp["wi"], lp["bi"], lp["w2"], lp["b2"],
              lp["out_ln_g"], lp["out_ln_b"]]
    return pl.pallas_call(
        functools.partial(_bert_layer_kernel, num_heads=num_heads, eps=eps),
        out_shape=jax.ShapeDtypeStruct((B, L, H), jnp.float32),
        grid=(B,),
        in_specs=[
            pl.BlockSpec((1, L, H), lambda b: (b, 0, 0)),
            pl.BlockSpec((1, L, L), lambda b: (b, 0, 0)),   # mask per batch; no per-head repeat
        ] + [_rep_spec(a) for a in arrays],
        out_specs=pl.BlockSpec((1, L, H), lambda b: (b, 0, 0)),
        compiler_params=pltpu.CompilerParams(dimension_semantics=("parallel",)),
    )(h, attn_bias, *arrays)


def pallas_lm_head(t2, p, eps, vocab_size):
    M, H = t2.shape
    Vpad = p["decoder_w"].shape[1]
    # Largest power-of-two multiple of 128 (<=1024) that divides the padded vocab.
    TN = 128
    while Vpad % (TN * 2) == 0 and TN < 1024:
        TN *= 2
    out = pl.pallas_call(
        functools.partial(_lm_head_kernel, eps=eps),
        out_shape=jax.ShapeDtypeStruct((M, Vpad), jnp.float32),
        grid=(Vpad // TN,),
        in_specs=[
            pl.BlockSpec((M, H), lambda j: (0, 0)),
            _rep_spec(p["head_w"]), _rep_spec(p["head_b"]),
            _rep_spec(p["head_ln_g"]), _rep_spec(p["head_ln_b"]),
            pl.BlockSpec((H, TN), lambda j: (0, j)),
            pl.BlockSpec((1, TN), lambda j: (0, j)),
        ],
        out_specs=pl.BlockSpec((M, TN), lambda j: (0, j)),
        compiler_params=pltpu.CompilerParams(dimension_semantics=("parallel",)),
    )(t2, p["head_w"], p["head_b"], p["head_ln_g"], p["head_ln_b"],
      p["decoder_w"], p["decoder_b"])
    return out[:, :vocab_size]


# ----------------------------------------------------------------------------
# Model glue (parameter setup, embedding gathers, mask construction, reshapes)
# ----------------------------------------------------------------------------
def sinusoid_position_encoding(max_len, d):
    pos = jnp.arange(max_len, dtype=jnp.float32)[:, None]
    div = jnp.exp(jnp.arange(0, d, 2, dtype=jnp.float32) * (-math.log(10000.0) / d))
    pe = jnp.zeros((max_len, d), jnp.float32)
    pe = pe.at[:, 0::2].set(jnp.sin(pos * div))
    pe = pe.at[:, 1::2].set(jnp.cos(pos * div))
    return pe


def make_pad_shifted_mask(input_mask, max_v_len, max_t_len):
    """MART-style mask: every query sees visual keys; text queries see text keys causally;
    everything multiplied by the key padding mask.  Returns (B, L, L) in {0,1}."""
    B, L = input_mask.shape
    shifted = jnp.zeros((B, L, L), jnp.float32)
    shifted = shifted.at[:, :, :max_v_len].set(1.0)
    tril = jnp.tril(jnp.ones((max_t_len, max_t_len), jnp.float32))
    shifted = shifted.at[:, max_v_len:, max_v_len:].set(
        jnp.broadcast_to(tril[None], (B, max_t_len, max_t_len)))
    return shifted * input_mask.astype(jnp.float32)[:, None, :]


def init_params(key, cfg):
    H = cfg["hidden_size"]
    E = cfg["word_vec_size"]
    Dv = cfg["video_feature_size"]
    V = cfg["vocab_size"]
    I = cfg["intermediate_size"]
    nL = cfg["num_hidden_layers"]
    nH = cfg["num_attention_heads"]
    L = cfg["max_v_len"] + cfg["max_t_len"]
    assert E == H, "tied LM decoder requires word_vec_size == hidden_size"
    assert H % nH == 0
    dh = H // nH
    keys = iter(jax.random.split(key, 64))

    # matmul weights stored in bf16 (MXU operands); biases / LN params stay f32
    def w(din, dout):
        return (jax.random.normal(next(keys), (din, dout), jnp.float32) * 0.02).astype(jnp.bfloat16)

    def b(dout):
        return jnp.zeros((1, dout), jnp.float32)

    def g(d):
        return jnp.ones((1, d), jnp.float32)

    word_emb = jax.random.normal(next(keys), (V, E), jnp.float32) * 0.02
    word_emb = word_emb.at[0].set(0.0)                       # padding_idx=0

    # tied decoder weight: pre-transposed and padded to a 128-multiple vocab (lane-dense output)
    Vpad = ((V + 127) // 128) * 128
    decoder_w = jnp.zeros((E, Vpad), jnp.float32).at[:, :V].set(word_emb.T).astype(jnp.bfloat16)
    decoder_b = jnp.zeros((1, Vpad), jnp.float32)

    params = {
        "word_emb": word_emb,                                # (V, E) f32, used for gather
        "pe": sinusoid_position_encoding(L, H),              # (L, H)
        "type_emb": jax.random.normal(next(keys), (3, H), jnp.float32) * 0.02,
        "word_fc_ln1_g": g(E), "word_fc_ln1_b": b(E),
        "word_fc_w": w(E, H), "word_fc_b": b(H),
        "word_fc_ln2_g": g(H), "word_fc_ln2_b": b(H),
        "vid_ln1_g": g(Dv), "vid_ln1_b": b(Dv),
        "vid_w": w(Dv, H), "vid_b": b(H),
        "vid_ln2_g": g(H), "vid_ln2_b": b(H),
        "emb_ln_g": g(H), "emb_ln_b": b(H),
        "head_w": w(H, H), "head_b": b(H),
        "head_ln_g": g(H), "head_ln_b": b(H),
        "decoder_w": decoder_w, "decoder_b": decoder_b,
        "layers": [],
    }
    for _ in range(nL):
        params["layers"].append({
            "wqkv": w(H, 3 * H), "bqkv": b(3 * H),           # fused Q/K/V projection
            "wo": w(H, H).reshape(nH, dh, H),                # head-major output projection
            "bo": b(H),
            "attn_ln_g": g(H), "attn_ln_b": b(H),
            "wi": w(H, I), "bi": b(I),
            "w2": w(I, H), "b2": b(H),
            "out_ln_g": g(H), "out_ln_b": b(H),
        })
    return params


def caption_decoder_forward(params, cfg, feature2ds, context_feats, input_ids, input_mask):
    eps = cfg["layer_norm_eps"]
    nH = cfg["num_attention_heads"]
    V = cfg["vocab_size"]
    B, n2d, _ = feature2ds.shape
    Lt = input_ids.shape[1]
    assert Lt == cfg["max_t_len"]

    # --- CaptionDecoder.forward glue ---
    visual = jnp.concatenate([feature2ds, context_feats[:, None, :]], axis=1)   # (B, Lv, Dv)
    Lv = visual.shape[1]
    L = Lv + Lt
    input_types = jnp.concatenate([
        jnp.full((B, n2d), 1, jnp.int32),
        jnp.full((B, 1), 0, jnp.int32),
        jnp.full((B, Lt), 2, jnp.int32)], axis=1)                               # (B, L)
    full_mask = jnp.concatenate(
        [jnp.ones((B, Lv), jnp.int32), input_mask.astype(jnp.int32)], axis=1)   # (B, L)

    # --- BertSelfEncoder embeddings (gathers are XLA glue; FC/LN paths fused in one kernel) ---
    wtok = params["word_emb"][input_ids]                                        # (B, Lt, E)
    pos_type = params["pe"][None, :L, :] + params["type_emb"][input_types]      # (B, L, H)
    h = pallas_embed(wtok, visual, pos_type, params, eps)                       # (B, L, H)

    # --- BERT layers: one fused kernel per layer, mask passed per-batch (never per-head) ---
    pad_shifted = make_pad_shifted_mask(full_mask, Lv, Lt)                      # (B, L, L)
    attn_bias = (1.0 - pad_shifted) * -10000.0
    for lp in params["layers"]:
        h = pallas_bert_layer(h, attn_bias, lp, nH, eps)

    # --- BertLMPredictionHead on the text positions (tied, pre-transposed, vocab-padded) ---
    t2 = h[:, -Lt:].reshape(B * Lt, -1)
    scores = pallas_lm_head(t2, params, eps, V)                                 # (B*Lt, V)
    return scores.reshape(B, Lt, V)


# ----------------------------------------------------------------------------
# Main
# ----------------------------------------------------------------------------
if __name__ == "__main__":
    B = 2
    n2d = 5                        # number of 2D visual feature tokens
    visual_feature_size = 64
    word_embedding_size = 32       # == hidden_size (required for tied LM decoder)
    hidden_size = 32
    vocab_size = 50
    max_v_len = n2d + 1            # visual tokens + 1 context token
    max_t_len = 8

    # TODO(synk): reference cap_config defines no intermediate_size; standard BERT would use
    # 4*hidden_size -- kept equal to hidden_size to match the original translation.
    cfg = dict(word_vec_size=word_embedding_size, max_v_len=max_v_len, max_t_len=max_t_len,
               hidden_size=hidden_size, video_feature_size=visual_feature_size,
               layer_norm_eps=1e-12, hidden_dropout_prob=0.1, num_hidden_layers=2,
               num_attention_heads=8, share_wd_cls_weight=False, vocab_size=vocab_size,
               BOS_id=vocab_size - 2, EOS_id=vocab_size - 1, PAD_id=0,
               intermediate_size=hidden_size)

    key = jax.random.PRNGKey(0)
    k1, k2, k3, k4, kp = jax.random.split(key, 5)
    feature2ds = jax.random.normal(k1, (B, n2d, visual_feature_size), jnp.float32)
    context_feats = jax.random.normal(k2, (B, visual_feature_size), jnp.float32)
    input_ids = jax.random.randint(k3, (B, max_t_len), 0, vocab_size, dtype=jnp.int32)
    input_mask = (jax.random.uniform(k4, (B, max_t_len)) > 0.2).astype(jnp.int32)

    params = init_params(kp, cfg)

    fwd = jax.jit(lambda p, f, c, ids, m: caption_decoder_forward(p, cfg, f, c, ids, m))
    scores = fwd(params, feature2ds, context_feats, input_ids, input_mask)
    jax.block_until_ready(scores)

    assert scores.shape == (B, max_t_len, vocab_size), scores.shape
    assert scores.dtype == jnp.float32
    assert bool(jnp.all(jnp.isfinite(scores)))
    print("KERNEL_OK")
</pallas_src>

<mosaic_0001>
module attributes {stable_mosaic.version = 11 : i64} {
  func.func @_embed_kernel(%arg0: i32, %arg1: memref<1x8x32xf32, #tpu.memory_space<vmem>>, %arg2: memref<1x6x64xf32, #tpu.memory_space<vmem>>, %arg3: memref<1x14x32xf32, #tpu.memory_space<vmem>>, %arg4: memref<1x32xf32, #tpu.memory_space<vmem>>, %arg5: memref<1x32xf32, #tpu.memory_space<vmem>>, %arg6: memref<32x32xbf16, #tpu.memory_space<vmem>>, %arg7: memref<1x32xf32, #tpu.memory_space<vmem>>, %arg8: memref<1x32xf32, #tpu.memory_space<vmem>>, %arg9: memref<1x32xf32, #tpu.memory_space<vmem>>, %arg10: memref<1x64xf32, #tpu.memory_space<vmem>>, %arg11: memref<1x64xf32, #tpu.memory_space<vmem>>, %arg12: memref<64x32xbf16, #tpu.memory_space<vmem>>, %arg13: memref<1x32xf32, #tpu.memory_space<vmem>>, %arg14: memref<1x32xf32, #tpu.memory_space<vmem>>, %arg15: memref<1x32xf32, #tpu.memory_space<vmem>>, %arg16: memref<1x32xf32, #tpu.memory_space<vmem>>, %arg17: memref<1x32xf32, #tpu.memory_space<vmem>>, %arg18: memref<1x14x32xf32, #tpu.memory_space<vmem>>) attributes {dimension_semantics = [#tpu.dimension_semantics<parallel>], iteration_bounds = array<i64: 2>, scalar_prefetch = 0 : i64, scratch_operands = 0 : i64, tpu.core_type = #tpu.core_type<tc>, window_params = [{transform_indices = @transform_0, window_bounds = array<i64: 1, 8, 32>}, {transform_indices = @transform_1, window_bounds = array<i64: 1, 6, 64>}, {transform_indices = @transform_2, window_bounds = array<i64: 1, 14, 32>}, {pipeline_mode = #tpu.pipeline_mode<synchronous>, transform_indices = @transform_3, window_bounds = array<i64: 1, 32>}, {pipeline_mode = #tpu.pipeline_mode<synchronous>, transform_indices = @transform_4, window_bounds = array<i64: 1, 32>}, {pipeline_mode = #tpu.pipeline_mode<synchronous>, transform_indices = @transform_5, window_bounds = array<i64: 32, 32>}, {pipeline_mode = #tpu.pipeline_mode<synchronous>, transform_indices = @transform_6, window_bounds = array<i64: 1, 32>}, {pipeline_mode = #tpu.pipeline_mode<synchronous>, transform_indices = @transform_7, window_bounds = array<i64: 1, 32>}, {pipeline_mode = #tpu.pipeline_mode<synchronous>, transform_indices = @transform_8, window_bounds = array<i64: 1, 32>}, {pipeline_mode = #tpu.pipeline_mode<synchronous>, transform_indices = @transform_9, window_bounds = array<i64: 1, 64>}, {pipeline_mode = #tpu.pipeline_mode<synchronous>, transform_indices = @transform_10, window_bounds = array<i64: 1, 64>}, {pipeline_mode = #tpu.pipeline_mode<synchronous>, transform_indices = @transform_11, window_bounds = array<i64: 64, 32>}, {pipeline_mode = #tpu.pipeline_mode<synchronous>, transform_indices = @transform_12, window_bounds = array<i64: 1, 32>}, {pipeline_mode = #tpu.pipeline_mode<synchronous>, transform_indices = @transform_13, window_bounds = array<i64: 1, 32>}, {pipeline_mode = #tpu.pipeline_mode<synchronous>, transform_indices = @transform_14, window_bounds = array<i64: 1, 32>}, {pipeline_mode = #tpu.pipeline_mode<synchronous>, transform_indices = @transform_15, window_bounds = array<i64: 1, 32>}, {pipeline_mode = #tpu.pipeline_mode<synchronous>, transform_indices = @transform_16, window_bounds = array<i64: 1, 32>}, {transform_indices = @transform_17, window_bounds = array<i64: 1, 14, 32>}]} {
    %c0 = arith.constant 0 : index
    %c0_0 = arith.constant 0 : index
    %0 = vector.load %arg16[%c0, %c0_0] : memref<1x32xf32, #tpu.memory_space<vmem>>, vector<1x32xf32>
    %c0_1 = arith.constant 0 : index
    %c0_2 = arith.constant 0 : index
    %1 = vector.load %arg17[%c0_1, %c0_2] : memref<1x32xf32, #tpu.memory_space<vmem>>, vector<1x32xf32>
    %c0_3 = arith.constant 0 : index
    %c0_4 = arith.constant 0 : index
    %c0_5 = arith.constant 0 : index
    %2 = vector.load %arg1[%c0_3, %c0_4, %c0_5] : memref<1x8x32xf32, #tpu.memory_space<vmem>>, vector<1x8x32xf32>
    %3 = vector.shape_cast %2 : vector<1x8x32xf32> to vector<8x32xf32>
    %c0_6 = arith.constant 0 : index
    %c0_7 = arith.constant 0 : index
    %4 = vector.load %arg4[%c0_6, %c0_7] : memref<1x32xf32, #tpu.memory_space<vmem>>, vector<1x32xf32>
    %c0_8 = arith.constant 0 : index
    %c0_9 = arith.constant 0 : index
    %5 = vector.load %arg5[%c0_8, %c0_9] : memref<1x32xf32, #tpu.memory_space<vmem>>, vector<1x32xf32>
    %cst = arith.constant dense<0.000000e+00> : vector<8xf32>
    %6 = vector.multi_reduction <add>, %3, %cst [1] : vector<8x32xf32> to vector<8xf32>
    %7 = vector.shape_cast %6 : vector<8xf32> to vector<8x1xf32>
    %cst_10 = arith.constant 3.200000e+01 : f32
    %8 = vector.broadcast %cst_10 : f32 to vector<8x1xf32>
    %9 = arith.divf %7, %8 : vector<8x1xf32>
    %10 = vector.broadcast %9 : vector<8x1xf32> to vector<8x32xf32>
    %11 = arith.subf %3, %10 : vector<8x32xf32>
    %12 = arith.mulf %11, %11 : vector<8x32xf32>
    %cst_11 = arith.constant dense<0.000000e+00> : vector<8xf32>
    %13 = vector.multi_reduction <add>, %12, %cst_11 [1] : vector<8x32xf32> to vector<8xf32>
    %14 = vector.shape_cast %13 : vector<8xf32> to vector<8x1xf32>
    %cst_12 = arith.constant 3.200000e+01 : f32
    %15 = vector.broadcast %cst_12 : f32 to vector<8x1xf32>
    %16 = arith.divf %14, %15 : vector<8x1xf32>
    %17 = vector.broadcast %9 : vector<8x1xf32> to vector<8x32xf32>
    %18 = arith.subf %3, %17 : vector<8x32xf32>
    %cst_13 = arith.constant 9.99999996E-13 : f32
    %19 = vector.broadcast %cst_13 : f32 to vector<8x1xf32>
    %20 = arith.addf %16, %19 : vector<8x1xf32>
    %21 = math.rsqrt %20 : vector<8x1xf32>
    %22 = vector.broadcast %21 : vector<8x1xf32> to vector<8x32xf32>
    %23 = arith.mulf %18, %22 : vector<8x32xf32>
    %24 = vector.broadcast %4 : vector<1x32xf32> to vector<8x32xf32>
    %25 = arith.mulf %23, %24 : vector<8x32xf32>
    %26 = vector.broadcast %5 : vector<1x32xf32> to vector<8x32xf32>
    %27 = arith.addf %25, %26 : vector<8x32xf32>
    %28 = arith.truncf %27 : vector<8x32xf32> to vector<8x32xbf16>
    %c0_14 = arith.constant 0 : index
    %c0_15 = arith.constant 0 : index
    %29 = vector.load %arg6[%c0_14, %c0_15] : memref<32x32xbf16, #tpu.memory_space<vmem>>, vector<32x32xbf16>
    %cst_16 = arith.constant dense<0.000000e+00> : vector<8x32xf32>
    %30 = tpu.matmul %28, %29, %cst_16 {dimension_numbers = #tpu.dot_dimension_numbers<[1], [0], [0], [1], [0, 0, 1, 1], [], []>} : vector<8x32xbf16>, vector<32x32xbf16>, vector<8x32xf32> -> vector<8x32xf32>
    %c0_17 = arith.constant 0 : index
    %c0_18 = arith.constant 0 : index
    %31 = vector.load %arg7[%c0_17, %c0_18] : memref<1x32xf32, #tpu.memory_space<vmem>>, vector<1x32xf32>
    %32 = vector.broadcast %31 : vector<1x32xf32> to vector<8x32xf32>
    %33 = arith.addf %30, %32 : vector<8x32xf32>
    %cst_19 = arith.constant 0.000000e+00 : f32
    %34 = vector.broadcast %cst_19 : f32 to vector<8x32xf32>
    %35 = arith.maximumf %33, %34 : vector<8x32xf32>
    %c0_20 = arith.constant 0 : index
    %c0_21 = arith.constant 0 : index
    %36 = vector.load %arg8[%c0_20, %c0_21] : memref<1x32xf32, #tpu.memory_space<vmem>>, vector<1x32xf32>
    %c0_22 = arith.constant 0 : index
    %c0_23 = arith.constant 0 : index
    %37 = vector.load %arg9[%c0_22, %c0_23] : memref<1x32xf32, #tpu.memory_space<vmem>>, vector<1x32xf32>
    %cst_24 = arith.constant dense<0.000000e+00> : vector<8xf32>
    %38 = vector.multi_reduction <add>, %35, %cst_24 [1] : vector<8x32xf32> to vector<8xf32>
    %39 = vector.shape_cast %38 : vector<8xf32> to vector<8x1xf32>
    %cst_25 = arith.constant 3.200000e+01 : f32
    %40 = vector.broadcast %cst_25 : f32 to vector<8x1xf32>
    %41 = arith.divf %39, %40 : vector<8x1xf32>
    %42 = vector.broadcast %41 : vector<8x1xf32> to vector<8x32xf32>
    %43 = arith.subf %35, %42 : vector<8x32xf32>
    %44 = arith.mulf %43, %43 : vector<8x32xf32>
    %cst_26 = arith.constant dense<0.000000e+00> : vector<8xf32>
    %45 = vector.multi_reduction <add>, %44, %cst_26 [1] : vector<8x32xf32> to vector<8xf32>
    %46 = vector.shape_cast %45 : vector<8xf32> to vector<8x1xf32>
    %cst_27 = arith.constant 3.200000e+01 : f32
    %47 = vector.broadcast %cst_27 : f32 to vector<8x1xf32>
    %48 = arith.divf %46, %47 : vector<8x1xf32>
    %49 = vector.broadcast %41 : vector<8x1xf32> to vector<8x32xf32>
    %50 = arith.subf %35, %49 : vector<8x32xf32>
    %cst_28 = arith.constant 9.99999996E-13 : f32
    %51 = vector.broadcast %cst_28 : f32 to vector<8x1xf32>
    %52 = arith.addf %48, %51 : vector<8x1xf32>
    %53 = math.rsqrt %52 : vector<8x1xf32>
    %54 = vector.broadcast %53 : vector<8x1xf32> to vector<8x32xf32>
    %55 = arith.mulf %50, %54 : vector<8x32xf32>
    %56 = vector.broadcast %36 : vector<1x32xf32> to vector<8x32xf32>
    %57 = arith.mulf %55, %56 : vector<8x32xf32>
    %58 = vector.broadcast %37 : vector<1x32xf32> to vector<8x32xf32>
    %59 = arith.addf %57, %58 : vector<8x32xf32>
    %c0_29 = arith.constant 0 : index
    %c0_30 = arith.constant 0 : index
    %c0_31 = arith.constant 0 : index
    %60 = vector.load %arg2[%c0_29, %c0_30, %c0_31] : memref<1x6x64xf32, #tpu.memory_space<vmem>>, vector<1x6x64xf32>
    %61 = vector.shape_cast %60 : vector<1x6x64xf32> to vector<6x64xf32>
    %c0_32 = arith.constant 0 : index
    %c0_33 = arith.constant 0 : index
    %62 = vector.load %arg10[%c0_32, %c0_33] : memref<1x64xf32, #tpu.memory_space<vmem>>, vector<1x64xf32>
    %c0_34 = arith.constant 0 : index
    %c0_35 = arith.constant 0 : index
    %63 = vector.load %arg11[%c0_34, %c0_35] : memref<1x64xf32, #tpu.memory_space<vmem>>, vector<1x64xf32>
    %cst_36 = arith.constant dense<0.000000e+00> : vector<6xf32>
    %64 = vector.multi_reduction <add>, %61, %cst_36 [1] : vector<6x64xf32> to vector<6xf32>
    %65 = vector.shape_cast %64 : vector<6xf32> to vector<6x1xf32>
    %cst_37 = arith.constant 6.400000e+01 : f32
    %66 = vector.broadcast %cst_37 : f32 to vector<6x1xf32>
    %67 = arith.divf %65, %66 : vector<6x1xf32>
    %68 = vector.broadcast %67 : vector<6x1xf32> to vector<6x64xf32>
    %69 = arith.subf %61, %68 : vector<6x64xf32>
    %70 = arith.mulf %69, %69 : vector<6x64xf32>
    %cst_38 = arith.constant dense<0.000000e+00> : vector<6xf32>
    %71 = vector.multi_reduction <add>, %70, %cst_38 [1] : vector<6x64xf32> to vector<6xf32>
    %72 = vector.shape_cast %71 : vector<6xf32> to vector<6x1xf32>
    %cst_39 = arith.constant 6.400000e+01 : f32
    %73 = vector.broadcast %cst_39 : f32 to vector<6x1xf32>
    %74 = arith.divf %72, %73 : vector<6x1xf32>
    %75 = vector.broadcast %67 : vector<6x1xf32> to vector<6x64xf32>
    %76 = arith.subf %61, %75 : vector<6x64xf32>
    %cst_40 = arith.constant 9.99999996E-13 : f32
    %77 = vector.broadcast %cst_40 : f32 to vector<6x1xf32>
    %78 = arith.addf %74, %77 : vector<6x1xf32>
    %79 = math.rsqrt %78 : vector<6x1xf32>
    %80 = vector.broadcast %79 : vector<6x1xf32> to vector<6x64xf32>
    %81 = arith.mulf %76, %80 : vector<6x64xf32>
    %82 = vector.broadcast %62 : vector<1x64xf32> to vector<6x64xf32>
    %83 = arith.mulf %81, %82 : vector<6x64xf32>
    %84 = vector.broadcast %63 : vector<1x64xf32> to vector<6x64xf32>
    %85 = arith.addf %83, %84 : vector<6x64xf32>
    %86 = arith.truncf %85 : vector<6x64xf32> to vector<6x64xbf16>
    %c0_41 = arith.constant 0 : index
    %c0_42 = arith.constant 0 : index
    %87 = vector.load %arg12[%c0_41, %c0_42] : memref<64x32xbf16, #tpu.memory_space<vmem>>, vector<64x32xbf16>
    %cst_43 = arith.constant dense<0.000000e+00> : vector<6x32xf32>
    %88 = tpu.matmul %86, %87, %cst_43 {dimension_numbers = #tpu.dot_dimension_numbers<[1], [0], [0], [1], [0, 0, 1, 1], [], []>} : vector<6x64xbf16>, vector<64x32xbf16>, vector<6x32xf32> -> vector<6x32xf32>
    %c0_44 = arith.constant 0 : index
    %c0_45 = arith.constant 0 : index
    %89 = vector.load %arg13[%c0_44, %c0_45] : memref<1x32xf32, #tpu.memory_space<vmem>>, vector<1x32xf32>
    %90 = vector.broadcast %89 : vector<1x32xf32> to vector<6x32xf32>
    %91 = arith.addf %88, %90 : vector<6x32xf32>
    %cst_46 = arith.constant 0.000000e+00 : f32
    %92 = vector.broadcast %cst_46 : f32 to vector<6x32xf32>
    %93 = arith.maximumf %91, %92 : vector<6x32xf32>
    %c0_47 = arith.constant 0 : index
    %c0_48 = arith.constant 0 : index
    %94 = vector.load %arg14[%c0_47, %c0_48] : memref<1x32xf32, #tpu.memory_space<vmem>>, vector<1x32xf32>
    %c0_49 = arith.constant 0 : index
    %c0_50 = arith.constant 0 : index
    %95 = vector.load %arg15[%c0_49, %c0_50] : memref<1x32xf32, #tpu.memory_space<vmem>>, vector<1x32xf32>
    %cst_51 = arith.constant dense<0.000000e+00> : vector<6xf32>
    %96 = vector.multi_reduction <add>, %93, %cst_51 [1] : vector<6x32xf32> to vector<6xf32>
    %97 = vector.shape_cast %96 : vector<6xf32> to vector<6x1xf32>
    %cst_52 = arith.constant 3.200000e+01 : f32
    %98 = vector.broadcast %cst_52 : f32 to vector<6x1xf32>
    %99 = arith.divf %97, %98 : vector<6x1xf32>
    %100 = vector.broadcast %99 : vector<6x1xf32> to vector<6x32xf32>
    %101 = arith.subf %93, %100 : vector<6x32xf32>
    %102 = arith.mulf %101, %101 : vector<6x32xf32>
    %cst_53 = arith.constant dense<0.000000e+00> : vector<6xf32>
    %103 = vector.multi_reduction <add>, %102, %cst_53 [1] : vector<6x32xf32> to vector<6xf32>
    %104 = vector.shape_cast %103 : vector<6xf32> to vector<6x1xf32>
    %cst_54 = arith.constant 3.200000e+01 : f32
    %105 = vector.broadcast %cst_54 : f32 to vector<6x1xf32>
    %106 = arith.divf %104, %105 : vector<6x1xf32>
    %107 = vector.broadcast %99 : vector<6x1xf32> to vector<6x32xf32>
    %108 = arith.subf %93, %107 : vector<6x32xf32>
    %cst_55 = arith.constant 9.99999996E-13 : f32
    %109 = vector.broadcast %cst_55 : f32 to vector<6x1xf32>
    %110 = arith.addf %106, %109 : vector<6x1xf32>
    %111 = math.rsqrt %110 : vector<6x1xf32>
    %112 = vector.broadcast %111 : vector<6x1xf32> to vector<6x32xf32>
    %113 = arith.mulf %108, %112 : vector<6x32xf32>
    %114 = vector.broadcast %94 : vector<1x32xf32> to vector<6x32xf32>
    %115 = arith.mulf %113, %114 : vector<6x32xf32>
    %116 = vector.broadcast %95 : vector<1x32xf32> to vector<6x32xf32>
    %117 = arith.addf %115, %116 : vector<6x32xf32>
    %c0_56 = arith.constant 0 : index
    %c0_57 = arith.constant 0 : index
    %c0_58 = arith.constant 0 : index
    %118 = vector.load %arg3[%c0_56, %c0_57, %c0_58] : memref<1x14x32xf32, #tpu.memory_space<vmem>>, vector<1x14x32xf32>
    %119 = vector.shape_cast %118 : vector<1x14x32xf32> to vector<14x32xf32>
    %120 = vector.extract_strided_slice %119 {offsets = [0, 0], sizes = [6, 32], strides = [1, 1]} : vector<14x32xf32> to vector<6x32xf32>
    %121 = arith.addf %117, %120 : vector<6x32xf32>
    %cst_59 = arith.constant dense<0.000000e+00> : vector<6xf32>
    %122 = vector.multi_reduction <add>, %121, %cst_59 [1] : vector<6x32xf32> to vector<6xf32>
    %123 = vector.shape_cast %122 : vector<6xf32> to vector<6x1xf32>
    %cst_60 = arith.constant 3.200000e+01 : f32
    %124 = vector.broadcast %cst_60 : f32 to vector<6x1xf32>
    %125 = arith.divf %123, %124 : vector<6x1xf32>
    %126 = vector.broadcast %125 : vector<6x1xf32> to vector<6x32xf32>
    %127 = arith.subf %121, %126 : vector<6x32xf32>
    %128 = arith.mulf %127, %127 : vector<6x32xf32>
    %cst_61 = arith.constant dense<0.000000e+00> : vector<6xf32>
    %129 = vector.multi_reduction <add>, %128, %cst_61 [1] : vector<6x32xf32> to vector<6xf32>
    %130 = vector.shape_cast %129 : vector<6xf32> to vector<6x1xf32>
    %cst_62 = arith.constant 3.200000e+01 : f32
    %131 = vector.broadcast %cst_62 : f32 to vector<6x1xf32>
    %132 = arith.divf %130, %131 : vector<6x1xf32>
    %133 = vector.broadcast %125 : vector<6x1xf32> to vector<6x32xf32>
    %134 = arith.subf %121, %133 : vector<6x32xf32>
    %cst_63 = arith.constant 9.99999996E-13 : f32
    %135 = vector.broadcast %cst_63 : f32 to vector<6x1xf32>
    %136 = arith.addf %132, %135 : vector<6x1xf32>
    %137 = math.rsqrt %136 : vector<6x1xf32>
    %138 = vector.broadcast %137 : vector<6x1xf32> to vector<6x32xf32>
    %139 = arith.mulf %134, %138 : vector<6x32xf32>
    %140 = vector.broadcast %0 : vector<1x32xf32> to vector<6x32xf32>
    %141 = arith.mulf %139, %140 : vector<6x32xf32>
    %142 = vector.broadcast %1 : vector<1x32xf32> to vector<6x32xf32>
    %143 = arith.addf %141, %142 : vector<6x32xf32>
    %c0_64 = arith.constant 0 : index
    %c0_65 = arith.constant 0 : index
    %c0_66 = arith.constant 0 : index
    %144 = vector.load %arg18[%c0_64, %c0_65, %c0_66] : memref<1x14x32xf32, #tpu.memory_space<vmem>>, vector<1x6x32xf32>
    %145 = vector.shape_cast %144 : vector<1x6x32xf32> to vector<6x32xf32>
    %146 = vector.shape_cast %143 : vector<6x32xf32> to vector<1x6x32xf32>
    tpu.vector_store %arg18[%c0_64, %c0_65, %c0_66], %146 {strides = array<i32>} : memref<1x14x32xf32, #tpu.memory_space<vmem>>, vector<1x6x32xf32>,
    %147 = vector.extract_strided_slice %119 {offsets = [6, 0], sizes = [8, 32], strides = [1, 1]} : vector<14x32xf32> to vector<8x32xf32>
    %148 = arith.addf %59, %147 : vector<8x32xf32>
    %cst_67 = arith.constant dense<0.000000e+00> : vector<8xf32>
    %149 = vector.multi_reduction <add>, %148, %cst_67 [1] : vector<8x32xf32> to vector<8xf32>
    %150 = vector.shape_cast %149 : vector<8xf32> to vector<8x1xf32>
    %cst_68 = arith.constant 3.200000e+01 : f32
    %151 = vector.broadcast %cst_68 : f32 to vector<8x1xf32>
    %152 = arith.divf %150, %151 : vector<8x1xf32>
    %153 = vector.broadcast %152 : vector<8x1xf32> to vector<8x32xf32>
    %154 = arith.subf %148, %153 : vector<8x32xf32>
    %155 = arith.mulf %154, %154 : vector<8x32xf32>
    %cst_69 = arith.constant dense<0.000000e+00> : vector<8xf32>
    %156 = vector.multi_reduction <add>, %155, %cst_69 [1] : vector<8x32xf32> to vector<8xf32>
    %157 = vector.shape_cast %156 : vector<8xf32> to vector<8x1xf32>
    %cst_70 = arith.constant 3.200000e+01 : f32
    %158 = vector.broadcast %cst_70 : f32 to vector<8x1xf32>
    %159 = arith.divf %157, %158 : vector<8x1xf32>
    %160 = vector.broadcast %152 : vector<8x1xf32> to vector<8x32xf32>
    %161 = arith.subf %148, %160 : vector<8x32xf32>
    %cst_71 = arith.constant 9.99999996E-13 : f32
    %162 = vector.broadcast %cst_71 : f32 to vector<8x1xf32>
    %163 = arith.addf %159, %162 : vector<8x1xf32>
    %164 = math.rsqrt %163 : vector<8x1xf32>
    %165 = vector.broadcast %164 : vector<8x1xf32> to vector<8x32xf32>
    %166 = arith.mulf %161, %165 : vector<8x32xf32>
    %167 = vector.broadcast %0 : vector<1x32xf32> to vector<8x32xf32>
    %168 = arith.mulf %166, %167 : vector<8x32xf32>
    %169 = vector.broadcast %1 : vector<1x32xf32> to vector<8x32xf32>
    %170 = arith.addf %168, %169 : vector<8x32xf32>
    %c0_72 = arith.constant 0 : index
    %c6 = arith.constant 6 : index
    %c0_73 = arith.constant 0 : index
    %171 = vector.load %arg18[%c0_72, %c6, %c0_73] : memref<1x14x32xf32, #tpu.memory_space<vmem>>, vector<1x8x32xf32>
    %172 = vector.shape_cast %171 : vector<1x8x32xf32> to vector<8x32xf32>
    %173 = vector.shape_cast %170 : vector<8x32xf32> to vector<1x8x32xf32>
    tpu.vector_store %arg18[%c0_72, %c6, %c0_73], %173 {strides = array<i32>} : memref<1x14x32xf32, #tpu.memory_space<vmem>>, vector<1x8x32xf32>,
    return
  }
  func.func @transform_0(%arg0: i32) -> (i32, i32, i32) {
    %c0_i32 = arith.constant 0 : i32
    %c0_i32_0 = arith.constant 0 : i32
    %c0_i32_1 = arith.constant 0 : i32
    return %arg0, %c0_i32, %c0_i32_0 : i32, i32, i32
  }
  func.func @transform_1(%arg0: i32) -> (i32, i32, i32) {
    %c0_i32 = arith.constant 0 : i32
    %c0_i32_0 = arith.constant 0 : i32
    %c0_i32_1 = arith.constant 0 : i32
    return %arg0, %c0_i32, %c0_i32_0 : i32, i32, i32
  }
  func.func @transform_2(%arg0: i32) -> (i32, i32, i32) {
    %c0_i32 = arith.constant 0 : i32
    %c0_i32_0 = arith.constant 0 : i32
    %c0_i32_1 = arith.constant 0 : i32
    return %arg0, %c0_i32, %c0_i32_0 : i32, i32, i32
  }
  func.func @transform_3(%arg0: i32) -> (i32, i32) {
    %c0_i32 = arith.constant 0 : i32
    %c0_i32_0 = arith.constant 0 : i32
    %c0_i32_1 = arith.constant 0 : i32
    return %c0_i32, %c0_i32_0 : i32, i32
  }
  func.func @transform_4(%arg0: i32) -> (i32, i32) {
    %c0_i32 = arith.constant 0 : i32
    %c0_i32_0 = arith.constant 0 : i32
    %c0_i32_1 = arith.constant 0 : i32
    return %c0_i32, %c0_i32_0 : i32, i32
  }
  func.func @transform_5(%arg0: i32) -> (i32, i32) {
    %c0_i32 = arith.constant 0 : i32
    %c0_i32_0 = arith.constant 0 : i32
    %c0_i32_1 = arith.constant 0 : i32
    return %c0_i32, %c0_i32_0 : i32, i32
  }
  func.func @transform_6(%arg0: i32) -> (i32, i32) {
    %c0_i32 = arith.constant 0 : i32
    %c0_i32_0 = arith.constant 0 : i32
    %c0_i32_1 = arith.constant 0 : i32
    return %c0_i32, %c0_i32_0 : i32, i32
  }
  func.func @transform_7(%arg0: i32) -> (i32, i32) {
    %c0_i32 = arith.constant 0 : i32
    %c0_i32_0 = arith.constant 0 : i32
    %c0_i32_1 = arith.constant 0 : i32
    return %c0_i32, %c0_i32_0 : i32, i32
  }
  func.func @transform_8(%arg0: i32) -> (i32, i32) {
    %c0_i32 = arith.constant 0 : i32
    %c0_i32_0 = arith.constant 0 : i32
    %c0_i32_1 = arith.constant 0 : i32
    return %c0_i32, %c0_i32_0 : i32, i32
  }
  func.func @transform_9(%arg0: i32) -> (i32, i32) {
    %c0_i32 = arith.constant 0 : i32
    %c0_i32_0 = arith.constant 0 : i32
    %c0_i32_1 = arith.constant 0 : i32
    return %c0_i32, %c0_i32_0 : i32, i32
  }
  func.func @transform_10(%arg0: i32) -> (i32, i32) {
    %c0_i32 = arith.constant 0 : i32
    %c0_i32_0 = arith.constant 0 : i32
    %c0_i32_1 = arith.constant 0 : i32
    return %c0_i32, %c0_i32_0 : i32, i32
  }
  func.func @transform_11(%arg0: i32) -> (i32, i32) {
    %c0_i32 = arith.constant 0 : i32
    %c0_i32_0 = arith.constant 0 : i32
    %c0_i32_1 = arith.constant 0 : i32
    return %c0_i32, %c0_i32_0 : i32, i32
  }
  func.func @transform_12(%arg0: i32) -> (i32, i32) {
    %c0_i32 = arith.constant 0 : i32
    %c0_i32_0 = arith.constant 0 : i32
    %c0_i32_1 = arith.constant 0 : i32
    return %c0_i32, %c0_i32_0 : i32, i32
  }
  func.func @transform_13(%arg0: i32) -> (i32, i32) {
    %c0_i32 = arith.constant 0 : i32
    %c0_i32_0 = arith.constant 0 : i32
    %c0_i32_1 = arith.constant 0 : i32
    return %c0_i32, %c0_i32_0 : i32, i32
  }
  func.func @transform_14(%arg0: i32) -> (i32, i32) {
    %c0_i32 = arith.constant 0 : i32
    %c0_i32_0 = arith.constant 0 : i32
    %c0_i32_1 = arith.constant 0 : i32
    return %c0_i32, %c0_i32_0 : i32, i32
  }
  func.func @transform_15(%arg0: i32) -> (i32, i32) {
    %c0_i32 = arith.constant 0 : i32
    %c0_i32_0 = arith.constant 0 : i32
    %c0_i32_1 = arith.constant 0 : i32
    return %c0_i32, %c0_i32_0 : i32, i32
  }
  func.func @transform_16(%arg0: i32) -> (i32, i32) {
    %c0_i32 = arith.constant 0 : i32
    %c0_i32_0 = arith.constant 0 : i32
    %c0_i32_1 = arith.constant 0 : i32
    return %c0_i32, %c0_i32_0 : i32, i32
  }
  func.func @transform_17(%arg0: i32) -> (i32, i32, i32) {
    %c0_i32 = arith.constant 0 : i32
    %c0_i32_0 = arith.constant 0 : i32
    %c0_i32_1 = arith.constant 0 : i32
    return %arg0, %c0_i32, %c0_i32_0 : i32, i32, i32
  }
}

module attributes {stable_mosaic.version = 11 : i64} {
  func.func @_lm_head_kernel(%arg0: i32, %arg1: memref<16x32xf32, #tpu.memory_space<vmem>>, %arg2: memref<32x32xbf16, #tpu.memory_space<vmem>>, %arg3: memref<1x32xf32, #tpu.memory_space<vmem>>, %arg4: memref<1x32xf32, #tpu.memory_space<vmem>>, %arg5: memref<1x32xf32, #tpu.memory_space<vmem>>, %arg6: memref<32x128xbf16, #tpu.memory_space<vmem>>, %arg7: memref<1x128xf32, #tpu.memory_space<vmem>>, %arg8: memref<16x128xf32, #tpu.memory_space<vmem>>) attributes {dimension_semantics = [#tpu.dimension_semantics<parallel>], iteration_bounds = array<i64: 1>, scalar_prefetch = 0 : i64, scratch_operands = 0 : i64, tpu.core_type = #tpu.core_type<tc>, window_params = [{pipeline_mode = #tpu.pipeline_mode<synchronous>, transform_indices = @transform_0, window_bounds = array<i64: 16, 32>}, {pipeline_mode = #tpu.pipeline_mode<synchronous>, transform_indices = @transform_1, window_bounds = array<i64: 32, 32>}, {pipeline_mode = #tpu.pipeline_mode<synchronous>, transform_indices = @transform_2, window_bounds = array<i64: 1, 32>}, {pipeline_mode = #tpu.pipeline_mode<synchronous>, transform_indices = @transform_3, window_bounds = array<i64: 1, 32>}, {pipeline_mode = #tpu.pipeline_mode<synchronous>, transform_indices = @transform_4, window_bounds = array<i64: 1, 32>}, {transform_indices = @transform_5, window_bounds = array<i64: 32, 128>}, {transform_indices = @transform_6, window_bounds = array<i64: 1, 128>}, {transform_indices = @transform_7, window_bounds = array<i64: 16, 128>}]} {
    %c0 = arith.constant 0 : index
    %c0_0 = arith.constant 0 : index
    %0 = vector.load %arg1[%c0, %c0_0] : memref<16x32xf32, #tpu.memory_space<vmem>>, vector<16x32xf32>
    %1 = arith.truncf %0 : vector<16x32xf32> to vector<16x32xbf16>
    %c0_1 = arith.constant 0 : index
    %c0_2 = arith.constant 0 : index
    %2 = vector.load %arg2[%c0_1, %c0_2] : memref<32x32xbf16, #tpu.memory_space<vmem>>, vector<32x32xbf16>
    %cst = arith.constant dense<0.000000e+00> : vector<16x32xf32>
    %3 = tpu.matmul %1, %2, %cst {dimension_numbers = #tpu.dot_dimension_numbers<[1], [0], [0], [1], [0, 0, 1, 1], [], []>} : vector<16x32xbf16>, vector<32x32xbf16>, vector<16x32xf32> -> vector<16x32xf32>
    %c0_3 = arith.constant 0 : index
    %c0_4 = arith.constant 0 : index
    %4 = vector.load %arg3[%c0_3, %c0_4] : memref<1x32xf32, #tpu.memory_space<vmem>>, vector<1x32xf32>
    %5 = vector.broadcast %4 : vector<1x32xf32> to vector<16x32xf32>
    %6 = arith.addf %3, %5 : vector<16x32xf32>
    %cst_5 = arith.constant 5.000000e-01 : f32
    %7 = vector.broadcast %cst_5 : f32 to vector<16x32xf32>
    %8 = arith.mulf %7, %6 : vector<16x32xf32>
    %cst_6 = arith.constant 4.471500e-02 : f32
    %9 = vector.broadcast %cst_6 : f32 to vector<16x32xf32>
    %10 = arith.mulf %9, %6 : vector<16x32xf32>
    %11 = arith.mulf %10, %6 : vector<16x32xf32>
    %12 = arith.mulf %11, %6 : vector<16x32xf32>
    %13 = arith.addf %6, %12 : vector<16x32xf32>
    %cst_7 = arith.constant 0.797884583 : f32
    %14 = vector.broadcast %cst_7 : f32 to vector<16x32xf32>
    %15 = arith.mulf %14, %13 : vector<16x32xf32>
    %16 = math.tanh %15 : vector<16x32xf32>
    %cst_8 = arith.constant 1.000000e+00 : f32
    %17 = vector.broadcast %cst_8 : f32 to vector<16x32xf32>
    %18 = arith.addf %17, %16 : vector<16x32xf32>
    %19 = arith.mulf %8, %18 : vector<16x32xf32>
    %c0_9 = arith.constant 0 : index
    %c0_10 = arith.constant 0 : index
    %20 = vector.load %arg4[%c0_9, %c0_10] : memref<1x32xf32, #tpu.memory_space<vmem>>, vector<1x32xf32>
    %c0_11 = arith.constant 0 : index
    %c0_12 = arith.constant 0 : index
    %21 = vector.load %arg5[%c0_11, %c0_12] : memref<1x32xf32, #tpu.memory_space<vmem>>, vector<1x32xf32>
    %cst_13 = arith.constant dense<0.000000e+00> : vector<16xf32>
    %22 = vector.multi_reduction <add>, %19, %cst_13 [1] : vector<16x32xf32> to vector<16xf32>
    %23 = vector.shape_cast %22 : vector<16xf32> to vector<16x1xf32>
    %cst_14 = arith.constant 3.200000e+01 : f32
    %24 = vector.broadcast %cst_14 : f32 to vector<16x1xf32>
    %25 = arith.divf %23, %24 : vector<16x1xf32>
    %26 = vector.broadcast %25 : vector<16x1xf32> to vector<16x32xf32>
    %27 = arith.subf %19, %26 : vector<16x32xf32>
    %28 = arith.mulf %27, %27 : vector<16x32xf32>
    %cst_15 = arith.constant dense<0.000000e+00> : vector<16xf32>
    %29 = vector.multi_reduction <add>, %28, %cst_15 [1] : vector<16x32xf32> to vector<16xf32>
    %30 = vector.shape_cast %29 : vector<16xf32> to vector<16x1xf32>
    %cst_16 = arith.constant 3.200000e+01 : f32
    %31 = vector.broadcast %cst_16 : f32 to vector<16x1xf32>
    %32 = arith.divf %30, %31 : vector<16x1xf32>
    %33 = vector.broadcast %25 : vector<16x1xf32> to vector<16x32xf32>
    %34 = arith.subf %19, %33 : vector<16x32xf32>
    %cst_17 = arith.constant 9.99999996E-13 : f32
    %35 = vector.broadcast %cst_17 : f32 to vector<16x1xf32>
    %36 = arith.addf %32, %35 : vector<16x1xf32>
    %37 = math.rsqrt %36 : vector<16x1xf32>
    %38 = vector.broadcast %37 : vector<16x1xf32> to vector<16x32xf32>
    %39 = arith.mulf %34, %38 : vector<16x32xf32>
    %40 = vector.broadcast %20 : vector<1x32xf32> to vector<16x32xf32>
    %41 = arith.mulf %39, %40 : vector<16x32xf32>
    %42 = vector.broadcast %21 : vector<1x32xf32> to vector<16x32xf32>
    %43 = arith.addf %41, %42 : vector<16x32xf32>
    %44 = arith.truncf %43 : vector<16x32xf32> to vector<16x32xbf16>
    %c0_18 = arith.constant 0 : index
    %c0_19 = arith.constant 0 : index
    %45 = vector.load %arg6[%c0_18, %c0_19] : memref<32x128xbf16, #tpu.memory_space<vmem>>, vector<32x128xbf16>
    %cst_20 = arith.constant dense<0.000000e+00> : vector<16x128xf32>
    %46 = tpu.matmul %44, %45, %cst_20 {dimension_numbers = #tpu.dot_dimension_numbers<[1], [0], [0], [1], [0, 0, 1, 1], [], []>} : vector<16x32xbf16>, vector<32x128xbf16>, vector<16x128xf32> -> vector<16x128xf32>
    %c0_21 = arith.constant 0 : index
    %c0_22 = arith.constant 0 : index
    %47 = vector.load %arg7[%c0_21, %c0_22] : memref<1x128xf32, #tpu.memory_space<vmem>>, vector<1x128xf32>
    %48 = vector.broadcast %47 : vector<1x128xf32> to vector<16x128xf32>
    %49 = arith.addf %46, %48 : vector<16x128xf32>
    %c0_23 = arith.constant 0 : index
    %c0_24 = arith.constant 0 : index
    %50 = vector.load %arg8[%c0_23, %c0_24] : memref<16x128xf32, #tpu.memory_space<vmem>>, vector<16x128xf32>
    tpu.vector_store %arg8[%c0_23, %c0_24], %49 {strides = array<i32>} : memref<16x128xf32, #tpu.memory_space<vmem>>, vector<16x128xf32>,
    return
  }
  func.func @transform_0(%arg0: i32) -> (i32, i32) {
    %c0_i32 = arith.constant 0 : i32
    %c0_i32_0 = arith.constant 0 : i32
    %c0_i32_1 = arith.constant 0 : i32
    return %c0_i32, %c0_i32_0 : i32, i32
  }
  func.func @transform_1(%arg0: i32) -> (i32, i32) {
    %c0_i32 = arith.constant 0 : i32
    %c0_i32_0 = arith.constant 0 : i32
    %c0_i32_1 = arith.constant 0 : i32
    return %c0_i32, %c0_i32_0 : i32, i32
  }
  func.func @transform_2(%arg0: i32) -> (i32, i32) {
    %c0_i32 = arith.constant 0 : i32
    %c0_i32_0 = arith.constant 0 : i32
    %c0_i32_1 = arith.constant 0 : i32
    return %c0_i32, %c0_i32_0 : i32, i32
  }
  func.func @transform_3(%arg0: i32) -> (i32, i32) {
    %c0_i32 = arith.constant 0 : i32
    %c0_i32_0 = arith.constant 0 : i32
    %c0_i32_1 = arith.constant 0 : i32
    return %c0_i32, %c0_i32_0 : i32, i32
  }
  func.func @transform_4(%arg0: i32) -> (i32, i32) {
    %c0_i32 = arith.constant 0 : i32
    %c0_i32_0 = arith.constant 0 : i32
    %c0_i32_1 = arith.constant 0 : i32
    return %c0_i32, %c0_i32_0 : i32, i32
  }
  func.func @transform_5(%arg0: i32) -> (i32, i32) {
    %c0_i32 = arith.constant 0 : i32
    %c0_i32_0 = arith.constant 0 : i32
    return %c0_i32, %arg0 : i32, i32
  }
  func.func @transform_6(%arg0: i32) -> (i32, i32) {
    %c0_i32 = arith.constant 0 : i32
    %c0_i32_0 = arith.constant 0 : i32
    return %c0_i32, %arg0 : i32, i32
  }
  func.func @transform_7(%arg0: i32) -> (i32, i32) {
    %c0_i32 = arith.constant 0 : i32
    %c0_i32_0 = arith.constant 0 : i32
    return %c0_i32, %arg0 : i32, i32
  }
}

module attributes {stable_mosaic.version = 11 : i64} {
  func.func @_bert_layer_kernel(%arg0: i32, %arg1: memref<1x14x32xf32, #tpu.memory_space<vmem>>, %arg2: memref<1x14x14xf32, #tpu.memory_space<vmem>>, %arg3: memref<32x96xbf16, #tpu.memory_space<vmem>>, %arg4: memref<1x96xf32, #tpu.memory_space<vmem>>, %arg5: memref<8x4x32xbf16, #tpu.memory_space<vmem>>, %arg6: memref<1x32xf32, #tpu.memory_space<vmem>>, %arg7: memref<1x32xf32, #tpu.memory_space<vmem>>, %arg8: memref<1x32xf32, #tpu.memory_space<vmem>>, %arg9: memref<32x32xbf16, #tpu.memory_space<vmem>>, %arg10: memref<1x32xf32, #tpu.memory_space<vmem>>, %arg11: memref<32x32xbf16, #tpu.memory_space<vmem>>, %arg12: memref<1x32xf32, #tpu.memory_space<vmem>>, %arg13: memref<1x32xf32, #tpu.memory_space<vmem>>, %arg14: memref<1x32xf32, #tpu.memory_space<vmem>>, %arg15: memref<1x14x32xf32, #tpu.memory_space<vmem>>) attributes {dimension_semantics = [#tpu.dimension_semantics<parallel>], iteration_bounds = array<i64: 2>, scalar_prefetch = 0 : i64, scratch_operands = 0 : i64, tpu.core_type = #tpu.core_type<tc>, window_params = [{transform_indices = @transform_0, window_bounds = array<i64: 1, 14, 32>}, {transform_indices = @transform_1, window_bounds = array<i64: 1, 14, 14>}, {pipeline_mode = #tpu.pipeline_mode<synchronous>, transform_indices = @transform_2, window_bounds = array<i64: 32, 96>}, {pipeline_mode = #tpu.pipeline_mode<synchronous>, transform_indices = @transform_3, window_bounds = array<i64: 1, 96>}, {pipeline_mode = #tpu.pipeline_mode<synchronous>, transform_indices = @transform_4, window_bounds = array<i64: 8, 4, 32>}, {pipeline_mode = #tpu.pipeline_mode<synchronous>, transform_indices = @transform_5, window_bounds = array<i64: 1, 32>}, {pipeline_mode = #tpu.pipeline_mode<synchronous>, transform_indices = @transform_6, window_bounds = array<i64: 1, 32>}, {pipeline_mode = #tpu.pipeline_mode<synchronous>, transform_indices = @transform_7, window_bounds = array<i64: 1, 32>}, {pipeline_mode = #tpu.pipeline_mode<synchronous>, transform_indices = @transform_8, window_bounds = array<i64: 32, 32>}, {pipeline_mode = #tpu.pipeline_mode<synchronous>, transform_indices = @transform_9, window_bounds = array<i64: 1, 32>}, {pipeline_mode = #tpu.pipeline_mode<synchronous>, transform_indices = @transform_10, window_bounds = array<i64: 32, 32>}, {pipeline_mode = #tpu.pipeline_mode<synchronous>, transform_indices = @transform_11, window_bounds = array<i64: 1, 32>}, {pipeline_mode = #tpu.pipeline_mode<synchronous>, transform_indices = @transform_12, window_bounds = array<i64: 1, 32>}, {pipeline_mode = #tpu.pipeline_mode<synchronous>, transform_indices = @transform_13, window_bounds = array<i64: 1, 32>}, {transform_indices = @transform_14, window_bounds = array<i64: 1, 14, 32>}]} {
    %c0 = arith.constant 0 : index
    %c0_0 = arith.constant 0 : index
    %c0_1 = arith.constant 0 : index
    %0 = vector.load %arg1[%c0, %c0_0, %c0_1] : memref<1x14x32xf32, #tpu.memory_space<vmem>>, vector<1x14x32xf32>
    %1 = vector.shape_cast %0 : vector<1x14x32xf32> to vector<14x32xf32>
    %c0_2 = arith.constant 0 : index
    %c0_3 = arith.constant 0 : index
    %c0_4 = arith.constant 0 : index
    %2 = vector.load %arg2[%c0_2, %c0_3, %c0_4] : memref<1x14x14xf32, #tpu.memory_space<vmem>>, vector<1x14x14xf32>
    %3 = vector.shape_cast %2 : vector<1x14x14xf32> to vector<14x14xf32>
    %4 = arith.truncf %1 : vector<14x32xf32> to vector<14x32xbf16>
    %c0_5 = arith.constant 0 : index
    %c0_6 = arith.constant 0 : index
    %5 = vector.load %arg3[%c0_5, %c0_6] : memref<32x96xbf16, #tpu.memory_space<vmem>>, vector<32x96xbf16>
    %cst = arith.constant dense<0.000000e+00> : vector<14x96xf32>
    %6 = tpu.matmul %4, %5, %cst {dimension_numbers = #tpu.dot_dimension_numbers<[1], [0], [0], [1], [0, 0, 1, 1], [], []>} : vector<14x32xbf16>, vector<32x96xbf16>, vector<14x96xf32> -> vector<14x96xf32>
    %c0_7 = arith.constant 0 : index
    %c0_8 = arith.constant 0 : index
    %7 = vector.load %arg4[%c0_7, %c0_8] : memref<1x96xf32, #tpu.memory_space<vmem>>, vector<1x96xf32>
    %8 = vector.broadcast %7 : vector<1x96xf32> to vector<14x96xf32>
    %9 = arith.addf %6, %8 : vector<14x96xf32>
    %10 = vector.extract_strided_slice %9 {offsets = [0, 0], sizes = [14, 32], strides = [1, 1]} : vector<14x96xf32> to vector<14x32xf32>
    %11 = vector.extract_strided_slice %9 {offsets = [0, 32], sizes = [14, 32], strides = [1, 1]} : vector<14x96xf32> to vector<14x32xf32>
    %12 = vector.extract_strided_slice %9 {offsets = [0, 64], sizes = [14, 32], strides = [1, 1]} : vector<14x96xf32> to vector<14x32xf32>
    %cst_9 = arith.constant 0.000000e+00 : f32
    %13 = vector.broadcast %cst_9 : f32 to vector<14x32xf32>
    %c0_10 = arith.constant 0 : index
    %c0_11 = arith.constant 0 : index
    %14 = vector.load %arg6[%c0_10, %c0_11] : memref<1x32xf32, #tpu.memory_space<vmem>>, vector<1x32xf32>
    %15 = vector.broadcast %14 : vector<1x32xf32> to vector<14x32xf32>
    %16 = arith.addf %13, %15 : vector<14x32xf32>
    %17 = vector.extract_strided_slice %10 {offsets = [0, 0], sizes = [14, 4], strides = [1, 1]} : vector<14x32xf32> to vector<14x4xf32>
    %18 = arith.truncf %17 : vector<14x4xf32> to vector<14x4xbf16>
    %19 = vector.extract_strided_slice %11 {offsets = [0, 0], sizes = [14, 4], strides = [1, 1]} : vector<14x32xf32> to vector<14x4xf32>
    %20 = arith.truncf %19 : vector<14x4xf32> to vector<14x4xbf16>
    %21 = vector.extract_strided_slice %12 {offsets = [0, 0], sizes = [14, 4], strides = [1, 1]} : vector<14x32xf32> to vector<14x4xf32>
    %22 = arith.truncf %21 : vector<14x4xf32> to vector<14x4xbf16>
    %cst_12 = arith.constant dense<0.000000e+00> : vector<14x14xf32>
    %23 = tpu.matmul %18, %20, %cst_12 {dimension_numbers = #tpu.dot_dimension_numbers<[1], [1], [0], [0], [0, 0, 1, 0], [], []>} : vector<14x4xbf16>, vector<14x4xbf16>, vector<14x14xf32> -> vector<14x14xf32>
    %cst_13 = arith.constant 5.000000e-01 : f32
    %24 = vector.broadcast %cst_13 : f32 to vector<14x14xf32>
    %25 = arith.mulf %23, %24 : vector<14x14xf32>
    %26 = arith.addf %25, %3 : vector<14x14xf32>
    %cst_14 = arith.constant dense<0xFF800000> : vector<14xf32>
    %27 = vector.multi_reduction <maximumf>, %26, %cst_14 [1] : vector<14x14xf32> to vector<14xf32>
    %28 = vector.shape_cast %27 : vector<14xf32> to vector<14x1xf32>
    %29 = vector.broadcast %28 : vector<14x1xf32> to vector<14x14xf32>
    %30 = arith.subf %26, %29 : vector<14x14xf32>
    %31 = math.exp %30 : vector<14x14xf32>
    %cst_15 = arith.constant dense<0.000000e+00> : vector<14xf32>
    %32 = vector.multi_reduction <add>, %31, %cst_15 [1] : vector<14x14xf32> to vector<14xf32>
    %33 = vector.shape_cast %32 : vector<14xf32> to vector<14x1xf32>
    %34 = tpu.reciprocal %33 {approx = true} : vector<14x1xf32> -> vector<14x1xf32>
    %35 = vector.broadcast %34 : vector<14x1xf32> to vector<14x14xf32>
    %36 = arith.mulf %31, %35 : vector<14x14xf32>
    %37 = arith.truncf %36 : vector<14x14xf32> to vector<14x14xbf16>
    %cst_16 = arith.constant dense<0.000000e+00> : vector<14x4xf32>
    %38 = tpu.matmul %37, %22, %cst_16 {dimension_numbers = #tpu.dot_dimension_numbers<[1], [0], [0], [1], [0, 0, 1, 1], [], []>} : vector<14x14xbf16>, vector<14x4xbf16>, vector<14x4xf32> -> vector<14x4xf32>
    %39 = arith.truncf %38 : vector<14x4xf32> to vector<14x4xbf16>
    %c0_17 = arith.constant 0 : index
    %c0_18 = arith.constant 0 : index
    %c0_19 = arith.constant 0 : index
    %40 = vector.load %arg5[%c0_17, %c0_18, %c0_19] : memref<8x4x32xbf16, #tpu.memory_space<vmem>>, vector<1x4x32xbf16>
    %41 = vector.shape_cast %40 : vector<1x4x32xbf16> to vector<4x32xbf16>
    %cst_20 = arith.constant dense<0.000000e+00> : vector<14x32xf32>
    %42 = tpu.matmul %39, %41, %cst_20 {dimension_numbers = #tpu.dot_dimension_numbers<[1], [0], [0], [1], [0, 0, 1, 1], [], []>} : vector<14x4xbf16>, vector<4x32xbf16>, vector<14x32xf32> -> vector<14x32xf32>
    %43 = arith.addf %16, %42 : vector<14x32xf32>
    %44 = vector.extract_strided_slice %10 {offsets = [0, 4], sizes = [14, 4], strides = [1, 1]} : vector<14x32xf32> to vector<14x4xf32>
    %45 = arith.truncf %44 : vector<14x4xf32> to vector<14x4xbf16>
    %46 = vector.extract_strided_slice %11 {offsets = [0, 4], sizes = [14, 4], strides = [1, 1]} : vector<14x32xf32> to vector<14x4xf32>
    %47 = arith.truncf %46 : vector<14x4xf32> to vector<14x4xbf16>
    %48 = vector.extract_strided_slice %12 {offsets = [0, 4], sizes = [14, 4], strides = [1, 1]} : vector<14x32xf32> to vector<14x4xf32>
    %49 = arith.truncf %48 : vector<14x4xf32> to vector<14x4xbf16>
    %cst_21 = arith.constant dense<0.000000e+00> : vector<14x14xf32>
    %50 = tpu.matmul %45, %47, %cst_21 {dimension_numbers = #tpu.dot_dimension_numbers<[1], [1], [0], [0], [0, 0, 1, 0], [], []>} : vector<14x4xbf16>, vector<14x4xbf16>, vector<14x14xf32> -> vector<14x14xf32>
    %cst_22 = arith.constant 5.000000e-01 : f32
    %51 = vector.broadcast %cst_22 : f32 to vector<14x14xf32>
    %52 = arith.mulf %50, %51 : vector<14x14xf32>
    %53 = arith.addf %52, %3 : vector<14x14xf32>
    %cst_23 = arith.constant dense<0xFF800000> : vector<14xf32>
    %54 = vector.multi_reduction <maximumf>, %53, %cst_23 [1] : vector<14x14xf32> to vector<14xf32>
    %55 = vector.shape_cast %54 : vector<14xf32> to vector<14x1xf32>
    %56 = vector.broadcast %55 : vector<14x1xf32> to vector<14x14xf32>
    %57 = arith.subf %53, %56 : vector<14x14xf32>
    %58 = math.exp %57 : vector<14x14xf32>
    %cst_24 = arith.constant dense<0.000000e+00> : vector<14xf32>
    %59 = vector.multi_reduction <add>, %58, %cst_24 [1] : vector<14x14xf32> to vector<14xf32>
    %60 = vector.shape_cast %59 : vector<14xf32> to vector<14x1xf32>
    %61 = tpu.reciprocal %60 {approx = true} : vector<14x1xf32> -> vector<14x1xf32>
    %62 = vector.broadcast %61 : vector<14x1xf32> to vector<14x14xf32>
    %63 = arith.mulf %58, %62 : vector<14x14xf32>
    %64 = arith.truncf %63 : vector<14x14xf32> to vector<14x14xbf16>
    %cst_25 = arith.constant dense<0.000000e+00> : vector<14x4xf32>
    %65 = tpu.matmul %64, %49, %cst_25 {dimension_numbers = #tpu.dot_dimension_numbers<[1], [0], [0], [1], [0, 0, 1, 1], [], []>} : vector<14x14xbf16>, vector<14x4xbf16>, vector<14x4xf32> -> vector<14x4xf32>
    %66 = arith.truncf %65 : vector<14x4xf32> to vector<14x4xbf16>
    %c1 = arith.constant 1 : index
    %c0_26 = arith.constant 0 : index
    %c0_27 = arith.constant 0 : index
    %67 = vector.load %arg5[%c1, %c0_26, %c0_27] : memref<8x4x32xbf16, #tpu.memory_space<vmem>>, vector<1x4x32xbf16>
    %68 = vector.shape_cast %67 : vector<1x4x32xbf16> to vector<4x32xbf16>
    %cst_28 = arith.constant dense<0.000000e+00> : vector<14x32xf32>
    %69 = tpu.matmul %66, %68, %cst_28 {dimension_numbers = #tpu.dot_dimension_numbers<[1], [0], [0], [1], [0, 0, 1, 1], [], []>} : vector<14x4xbf16>, vector<4x32xbf16>, vector<14x32xf32> -> vector<14x32xf32>
    %70 = arith.addf %43, %69 : vector<14x32xf32>
    %71 = vector.extract_strided_slice %10 {offsets = [0, 8], sizes = [14, 4], strides = [1, 1]} : vector<14x32xf32> to vector<14x4xf32>
    %72 = arith.truncf %71 : vector<14x4xf32> to vector<14x4xbf16>
    %73 = vector.extract_strided_slice %11 {offsets = [0, 8], sizes = [14, 4], strides = [1, 1]} : vector<14x32xf32> to vector<14x4xf32>
    %74 = arith.truncf %73 : vector<14x4xf32> to vector<14x4xbf16>
    %75 = vector.extract_strided_slice %12 {offsets = [0, 8], sizes = [14, 4], strides = [1, 1]} : vector<14x32xf32> to vector<14x4xf32>
    %76 = arith.truncf %75 : vector<14x4xf32> to vector<14x4xbf16>
    %cst_29 = arith.constant dense<0.000000e+00> : vector<14x14xf32>
    %77 = tpu.matmul %72, %74, %cst_29 {dimension_numbers = #tpu.dot_dimension_numbers<[1], [1], [0], [0], [0, 0, 1, 0], [], []>} : vector<14x4xbf16>, vector<14x4xbf16>, vector<14x14xf32> -> vector<14x14xf32>
    %cst_30 = arith.constant 5.000000e-01 : f32
    %78 = vector.broadcast %cst_30 : f32 to vector<14x14xf32>
    %79 = arith.mulf %77, %78 : vector<14x14xf32>
    %80 = arith.addf %79, %3 : vector<14x14xf32>
    %cst_31 = arith.constant dense<0xFF800000> : vector<14xf32>
    %81 = vector.multi_reduction <maximumf>, %80, %cst_31 [1] : vector<14x14xf32> to vector<14xf32>
    %82 = vector.shape_cast %81 : vector<14xf32> to vector<14x1xf32>
    %83 = vector.broadcast %82 : vector<14x1xf32> to vector<14x14xf32>
    %84 = arith.subf %80, %83 : vector<14x14xf32>
    %85 = math.exp %84 : vector<14x14xf32>
    %cst_32 = arith.constant dense<0.000000e+00> : vector<14xf32>
    %86 = vector.multi_reduction <add>, %85, %cst_32 [1] : vector<14x14xf32> to vector<14xf32>
    %87 = vector.shape_cast %86 : vector<14xf32> to vector<14x1xf32>
    %88 = tpu.reciprocal %87 {approx = true} : vector<14x1xf32> -> vector<14x1xf32>
    %89 = vector.broadcast %88 : vector<14x1xf32> to vector<14x14xf32>
    %90 = arith.mulf %85, %89 : vector<14x14xf32>
    %91 = arith.truncf %90 : vector<14x14xf32> to vector<14x14xbf16>
    %cst_33 = arith.constant dense<0.000000e+00> : vector<14x4xf32>
    %92 = tpu.matmul %91, %76, %cst_33 {dimension_numbers = #tpu.dot_dimension_numbers<[1], [0], [0], [1], [0, 0, 1, 1], [], []>} : vector<14x14xbf16>, vector<14x4xbf16>, vector<14x4xf32> -> vector<14x4xf32>
    %93 = arith.truncf %92 : vector<14x4xf32> to vector<14x4xbf16>
    %c2 = arith.constant 2 : index
    %c0_34 = arith.constant 0 : index
    %c0_35 = arith.constant 0 : index
    %94 = vector.load %arg5[%c2, %c0_34, %c0_35] : memref<8x4x32xbf16, #tpu.memory_space<vmem>>, vector<1x4x32xbf16>
    %95 = vector.shape_cast %94 : vector<1x4x32xbf16> to vector<4x32xbf16>
    %cst_36 = arith.constant dense<0.000000e+00> : vector<14x32xf32>
    %96 = tpu.matmul %93, %95, %cst_36 {dimension_numbers = #tpu.dot_dimension_numbers<[1], [0], [0], [1], [0, 0, 1, 1], [], []>} : vector<14x4xbf16>, vector<4x32xbf16>, vector<14x32xf32> -> vector<14x32xf32>
    %97 = arith.addf %70, %96 : vector<14x32xf32>
    %98 = vector.extract_strided_slice %10 {offsets = [0, 12], sizes = [14, 4], strides = [1, 1]} : vector<14x32xf32> to vector<14x4xf32>
    %99 = arith.truncf %98 : vector<14x4xf32> to vector<14x4xbf16>
    %100 = vector.extract_strided_slice %11 {offsets = [0, 12], sizes = [14, 4], strides = [1, 1]} : vector<14x32xf32> to vector<14x4xf32>
    %101 = arith.truncf %100 : vector<14x4xf32> to vector<14x4xbf16>
    %102 = vector.extract_strided_slice %12 {offsets = [0, 12], sizes = [14, 4], strides = [1, 1]} : vector<14x32xf32> to vector<14x4xf32>
    %103 = arith.truncf %102 : vector<14x4xf32> to vector<14x4xbf16>
    %cst_37 = arith.constant dense<0.000000e+00> : vector<14x14xf32>
    %104 = tpu.matmul %99, %101, %cst_37 {dimension_numbers = #tpu.dot_dimension_numbers<[1], [1], [0], [0], [0, 0, 1, 0], [], []>} : vector<14x4xbf16>, vector<14x4xbf16>, vector<14x14xf32> -> vector<14x14xf32>
    %cst_38 = arith.constant 5.000000e-01 : f32
    %105 = vector.broadcast %cst_38 : f32 to vector<14x14xf32>
    %106 = arith.mulf %104, %105 : vector<14x14xf32>
    %107 = arith.addf %106, %3 : vector<14x14xf32>
    %cst_39 = arith.constant dense<0xFF800000> : vector<14xf32>
    %108 = vector.multi_reduction <maximumf>, %107, %cst_39 [1] : vector<14x14xf32> to vector<14xf32>
    %109 = vector.shape_cast %108 : vector<14xf32> to vector<14x1xf32>
    %110 = vector.broadcast %109 : vector<14x1xf32> to vector<14x14xf32>
    %111 = arith.subf %107, %110 : vector<14x14xf32>
    %112 = math.exp %111 : vector<14x14xf32>
    %cst_40 = arith.constant dense<0.000000e+00> : vector<14xf32>
    %113 = vector.multi_reduction <add>, %112, %cst_40 [1] : vector<14x14xf32> to vector<14xf32>
    %114 = vector.shape_cast %113 : vector<14xf32> to vector<14x1xf32>
    %115 = tpu.reciprocal %114 {approx = true} : vector<14x1xf32> -> vector<14x1xf32>
    %116 = vector.broadcast %115 : vector<14x1xf32> to vector<14x14xf32>
    %117 = arith.mulf %112, %116 : vector<14x14xf32>
    %118 = arith.truncf %117 : vector<14x14xf32> to vector<14x14xbf16>
    %cst_41 = arith.constant dense<0.000000e+00> : vector<14x4xf32>
    %119 = tpu.matmul %118, %103, %cst_41 {dimension_numbers = #tpu.dot_dimension_numbers<[1], [0], [0], [1], [0, 0, 1, 1], [], []>} : vector<14x14xbf16>, vector<14x4xbf16>, vector<14x4xf32> -> vector<14x4xf32>
    %120 = arith.truncf %119 : vector<14x4xf32> to vector<14x4xbf16>
    %c3 = arith.constant 3 : index
    %c0_42 = arith.constant 0 : index
    %c0_43 = arith.constant 0 : index
    %121 = vector.load %arg5[%c3, %c0_42, %c0_43] : memref<8x4x32xbf16, #tpu.memory_space<vmem>>, vector<1x4x32xbf16>
    %122 = vector.shape_cast %121 : vector<1x4x32xbf16> to vector<4x32xbf16>
    %cst_44 = arith.constant dense<0.000000e+00> : vector<14x32xf32>
    %123 = tpu.matmul %120, %122, %cst_44 {dimension_numbers = #tpu.dot_dimension_numbers<[1], [0], [0], [1], [0, 0, 1, 1], [], []>} : vector<14x4xbf16>, vector<4x32xbf16>, vector<14x32xf32> -> vector<14x32xf32>
    %124 = arith.addf %97, %123 : vector<14x32xf32>
    %125 = vector.extract_strided_slice %10 {offsets = [0, 16], sizes = [14, 4], strides = [1, 1]} : vector<14x32xf32> to vector<14x4xf32>
    %126 = arith.truncf %125 : vector<14x4xf32> to vector<14x4xbf16>
    %127 = vector.extract_strided_slice %11 {offsets = [0, 16], sizes = [14, 4], strides = [1, 1]} : vector<14x32xf32> to vector<14x4xf32>
    %128 = arith.truncf %127 : vector<14x4xf32> to vector<14x4xbf16>
    %129 = vector.extract_strided_slice %12 {offsets = [0, 16], sizes = [14, 4], strides = [1, 1]} : vector<14x32xf32> to vector<14x4xf32>
    %130 = arith.truncf %129 : vector<14x4xf32> to vector<14x4xbf16>
    %cst_45 = arith.constant dense<0.000000e+00> : vector<14x14xf32>
    %131 = tpu.matmul %126, %128, %cst_45 {dimension_numbers = #tpu.dot_dimension_numbers<[1], [1], [0], [0], [0, 0, 1, 0], [], []>} : vector<14x4xbf16>, vector<14x4xbf16>, vector<14x14xf32> -> vector<14x14xf32>
    %cst_46 = arith.constant 5.000000e-01 : f32
    %132 = vector.broadcast %cst_46 : f32 to vector<14x14xf32>
    %133 = arith.mulf %131, %132 : vector<14x14xf32>
    %134 = arith.addf %133, %3 : vector<14x14xf32>
    %cst_47 = arith.constant dense<0xFF800000> : vector<14xf32>
    %135 = vector.multi_reduction <maximumf>, %134, %cst_47 [1] : vector<14x14xf32> to vector<14xf32>
    %136 = vector.shape_cast %135 : vector<14xf32> to vector<14x1xf32>
    %137 = vector.broadcast %136 : vector<14x1xf32> to vector<14x14xf32>
    %138 = arith.subf %134, %137 : vector<14x14xf32>
    %139 = math.exp %138 : vector<14x14xf32>
    %cst_48 = arith.constant dense<0.000000e+00> : vector<14xf32>
    %140 = vector.multi_reduction <add>, %139, %cst_48 [1] : vector<14x14xf32> to vector<14xf32>
    %141 = vector.shape_cast %140 : vector<14xf32> to vector<14x1xf32>
    %142 = tpu.reciprocal %141 {approx = true} : vector<14x1xf32> -> vector<14x1xf32>
    %143 = vector.broadcast %142 : vector<14x1xf32> to vector<14x14xf32>
    %144 = arith.mulf %139, %143 : vector<14x14xf32>
    %145 = arith.truncf %144 : vector<14x14xf32> to vector<14x14xbf16>
    %cst_49 = arith.constant dense<0.000000e+00> : vector<14x4xf32>
    %146 = tpu.matmul %145, %130, %cst_49 {dimension_numbers = #tpu.dot_dimension_numbers<[1], [0], [0], [1], [0, 0, 1, 1], [], []>} : vector<14x14xbf16>, vector<14x4xbf16>, vector<14x4xf32> -> vector<14x4xf32>
    %147 = arith.truncf %146 : vector<14x4xf32> to vector<14x4xbf16>
    %c4 = arith.constant 4 : index
    %c0_50 = arith.constant 0 : index
    %c0_51 = arith.constant 0 : index
    %148 = vector.load %arg5[%c4, %c0_50, %c0_51] : memref<8x4x32xbf16, #tpu.memory_space<vmem>>, vector<1x4x32xbf16>
    %149 = vector.shape_cast %148 : vector<1x4x32xbf16> to vector<4x32xbf16>
    %cst_52 = arith.constant dense<0.000000e+00> : vector<14x32xf32>
    %150 = tpu.matmul %147, %149, %cst_52 {dimension_numbers = #tpu.dot_dimension_numbers<[1], [0], [0], [1], [0, 0, 1, 1], [], []>} : vector<14x4xbf16>, vector<4x32xbf16>, vector<14x32xf32> -> vector<14x32xf32>
    %151 = arith.addf %124, %150 : vector<14x32xf32>
    %152 = vector.extract_strided_slice %10 {offsets = [0, 20], sizes = [14, 4], strides = [1, 1]} : vector<14x32xf32> to vector<14x4xf32>
    %153 = arith.truncf %152 : vector<14x4xf32> to vector<14x4xbf16>
    %154 = vector.extract_strided_slice %11 {offsets = [0, 20], sizes = [14, 4], strides = [1, 1]} : vector<14x32xf32> to vector<14x4xf32>
    %155 = arith.truncf %154 : vector<14x4xf32> to vector<14x4xbf16>
    %156 = vector.extract_strided_slice %12 {offsets = [0, 20], sizes = [14, 4], strides = [1, 1]} : vector<14x32xf32> to vector<14x4xf32>
    %157 = arith.truncf %156 : vector<14x4xf32> to vector<14x4xbf16>
    %cst_53 = arith.constant dense<0.000000e+00> : vector<14x14xf32>
    %158 = tpu.matmul %153, %155, %cst_53 {dimension_numbers = #tpu.dot_dimension_numbers<[1], [1], [0], [0], [0, 0, 1, 0], [], []>} : vector<14x4xbf16>, vector<14x4xbf16>, vector<14x14xf32> -> vector<14x14xf32>
    %cst_54 = arith.constant 5.000000e-01 : f32
    %159 = vector.broadcast %cst_54 : f32 to vector<14x14xf32>
    %160 = arith.mulf %158, %159 : vector<14x14xf32>
    %161 = arith.addf %160, %3 : vector<14x14xf32>
    %cst_55 = arith.constant dense<0xFF800000> : vector<14xf32>
    %162 = vector.multi_reduction <maximumf>, %161, %cst_55 [1] : vector<14x14xf32> to vector<14xf32>
    %163 = vector.shape_cast %162 : vector<14xf32> to vector<14x1xf32>
    %164 = vector.broadcast %163 : vector<14x1xf32> to vector<14x14xf32>
    %165 = arith.subf %161, %164 : vector<14x14xf32>
    %166 = math.exp %165 : vector<14x14xf32>
    %cst_56 = arith.constant dense<0.000000e+00> : vector<14xf32>
    %167 = vector.multi_reduction <add>, %166, %cst_56 [1] : vector<14x14xf32> to vector<14xf32>
    %168 = vector.shape_cast %167 : vector<14xf32> to vector<14x1xf32>
    %169 = tpu.reciprocal %168 {approx = true} : vector<14x1xf32> -> vector<14x1xf32>
    %170 = vector.broadcast %169 : vector<14x1xf32> to vector<14x14xf32>
    %171 = arith.mulf %166, %170 : vector<14x14xf32>
    %172 = arith.truncf %171 : vector<14x14xf32> to vector<14x14xbf16>
    %cst_57 = arith.constant dense<0.000000e+00> : vector<14x4xf32>
    %173 = tpu.matmul %172, %157, %cst_57 {dimension_numbers = #tpu.dot_dimension_numbers<[1], [0], [0], [1], [0, 0, 1, 1], [], []>} : vector<14x14xbf16>, vector<14x4xbf16>, vector<14x4xf32> -> vector<14x4xf32>
    %174 = arith.truncf %173 : vector<14x4xf32> to vector<14x4xbf16>
    %c5 = arith.constant 5 : index
    %c0_58 = arith.constant 0 : index
    %c0_59 = arith.constant 0 : index
    %175 = vector.load %arg5[%c5, %c0_58, %c0_59] : memref<8x4x32xbf16, #tpu.memory_space<vmem>>, vector<1x4x32xbf16>
    %176 = vector.shape_cast %175 : vector<1x4x32xbf16> to vector<4x32xbf16>
    %cst_60 = arith.constant dense<0.000000e+00> : vector<14x32xf32>
    %177 = tpu.matmul %174, %176, %cst_60 {dimension_numbers = #tpu.dot_dimension_numbers<[1], [0], [0], [1], [0, 0, 1, 1], [], []>} : vector<14x4xbf16>, vector<4x32xbf16>, vector<14x32xf32> -> vector<14x32xf32>
    %178 = arith.addf %151, %177 : vector<14x32xf32>
    %179 = vector.extract_strided_slice %10 {offsets = [0, 24], sizes = [14, 4], strides = [1, 1]} : vector<14x32xf32> to vector<14x4xf32>
    %180 = arith.truncf %179 : vector<14x4xf32> to vector<14x4xbf16>
    %181 = vector.extract_strided_slice %11 {offsets = [0, 24], sizes = [14, 4], strides = [1, 1]} : vector<14x32xf32> to vector<14x4xf32>
    %182 = arith.truncf %181 : vector<14x4xf32> to vector<14x4xbf16>
    %183 = vector.extract_strided_slice %12 {offsets = [0, 24], sizes = [14, 4], strides = [1, 1]} : vector<14x32xf32> to vector<14x4xf32>
    %184 = arith.truncf %183 : vector<14x4xf32> to vector<14x4xbf16>
    %cst_61 = arith.constant dense<0.000000e+00> : vector<14x14xf32>
    %185 = tpu.matmul %180, %182, %cst_61 {dimension_numbers = #tpu.dot_dimension_numbers<[1], [1], [0], [0], [0, 0, 1, 0], [], []>} : vector<14x4xbf16>, vector<14x4xbf16>, vector<14x14xf32> -> vector<14x14xf32>
    %cst_62 = arith.constant 5.000000e-01 : f32
    %186 = vector.broadcast %cst_62 : f32 to vector<14x14xf32>
    %187 = arith.mulf %185, %186 : vector<14x14xf32>
    %188 = arith.addf %187, %3 : vector<14x14xf32>
    %cst_63 = arith.constant dense<0xFF800000> : vector<14xf32>
    %189 = vector.multi_reduction <maximumf>, %188, %cst_63 [1] : vector<14x14xf32> to vector<14xf32>
    %190 = vector.shape_cast %189 : vector<14xf32> to vector<14x1xf32>
    %191 = vector.broadcast %190 : vector<14x1xf32> to vector<14x14xf32>
    %192 = arith.subf %188, %191 : vector<14x14xf32>
    %193 = math.exp %192 : vector<14x14xf32>
    %cst_64 = arith.constant dense<0.000000e+00> : vector<14xf32>
    %194 = vector.multi_reduction <add>, %193, %cst_64 [1] : vector<14x14xf32> to vector<14xf32>
    %195 = vector.shape_cast %194 : vector<14xf32> to vector<14x1xf32>
    %196 = tpu.reciprocal %195 {approx = true} : vector<14x1xf32> -> vector<14x1xf32>
    %197 = vector.broadcast %196 : vector<14x1xf32> to vector<14x14xf32>
    %198 = arith.mulf %193, %197 : vector<14x14xf32>
    %199 = arith.truncf %198 : vector<14x14xf32> to vector<14x14xbf16>
    %cst_65 = arith.constant dense<0.000000e+00> : vector<14x4xf32>
    %200 = tpu.matmul %199, %184, %cst_65 {dimension_numbers = #tpu.dot_dimension_numbers<[1], [0], [0], [1], [0, 0, 1, 1], [], []>} : vector<14x14xbf16>, vector<14x4xbf16>, vector<14x4xf32> -> vector<14x4xf32>
    %201 = arith.truncf %200 : vector<14x4xf32> to vector<14x4xbf16>
    %c6 = arith.constant 6 : index
    %c0_66 = arith.constant 0 : index
    %c0_67 = arith.constant 0 : index
    %202 = vector.load %arg5[%c6, %c0_66, %c0_67] : memref<8x4x32xbf16, #tpu.memory_space<vmem>>, vector<1x4x32xbf16>
    %203 = vector.shape_cast %202 : vector<1x4x32xbf16> to vector<4x32xbf16>
    %cst_68 = arith.constant dense<0.000000e+00> : vector<14x32xf32>
    %204 = tpu.matmul %201, %203, %cst_68 {dimension_numbers = #tpu.dot_dimension_numbers<[1], [0], [0], [1], [0, 0, 1, 1], [], []>} : vector<14x4xbf16>, vector<4x32xbf16>, vector<14x32xf32> -> vector<14x32xf32>
    %205 = arith.addf %178, %204 : vector<14x32xf32>
    %206 = vector.extract_strided_slice %10 {offsets = [0, 28], sizes = [14, 4], strides = [1, 1]} : vector<14x32xf32> to vector<14x4xf32>
    %207 = arith.truncf %206 : vector<14x4xf32> to vector<14x4xbf16>
    %208 = vector.extract_strided_slice %11 {offsets = [0, 28], sizes = [14, 4], strides = [1, 1]} : vector<14x32xf32> to vector<14x4xf32>
    %209 = arith.truncf %208 : vector<14x4xf32> to vector<14x4xbf16>
    %210 = vector.extract_strided_slice %12 {offsets = [0, 28], sizes = [14, 4], strides = [1, 1]} : vector<14x32xf32> to vector<14x4xf32>
    %211 = arith.truncf %210 : vector<14x4xf32> to vector<14x4xbf16>
    %cst_69 = arith.constant dense<0.000000e+00> : vector<14x14xf32>
    %212 = tpu.matmul %207, %209, %cst_69 {dimension_numbers = #tpu.dot_dimension_numbers<[1], [1], [0], [0], [0, 0, 1, 0], [], []>} : vector<14x4xbf16>, vector<14x4xbf16>, vector<14x14xf32> -> vector<14x14xf32>
    %cst_70 = arith.constant 5.000000e-01 : f32
    %213 = vector.broadcast %cst_70 : f32 to vector<14x14xf32>
    %214 = arith.mulf %212, %213 : vector<14x14xf32>
    %215 = arith.addf %214, %3 : vector<14x14xf32>
    %cst_71 = arith.constant dense<0xFF800000> : vector<14xf32>
    %216 = vector.multi_reduction <maximumf>, %215, %cst_71 [1] : vector<14x14xf32> to vector<14xf32>
    %217 = vector.shape_cast %216 : vector<14xf32> to vector<14x1xf32>
    %218 = vector.broadcast %217 : vector<14x1xf32> to vector<14x14xf32>
    %219 = arith.subf %215, %218 : vector<14x14xf32>
    %220 = math.exp %219 : vector<14x14xf32>
    %cst_72 = arith.constant dense<0.000000e+00> : vector<14xf32>
    %221 = vector.multi_reduction <add>, %220, %cst_72 [1] : vector<14x14xf32> to vector<14xf32>
    %222 = vector.shape_cast %221 : vector<14xf32> to vector<14x1xf32>
    %223 = tpu.reciprocal %222 {approx = true} : vector<14x1xf32> -> vector<14x1xf32>
    %224 = vector.broadcast %223 : vector<14x1xf32> to vector<14x14xf32>
    %225 = arith.mulf %220, %224 : vector<14x14xf32>
    %226 = arith.truncf %225 : vector<14x14xf32> to vector<14x14xbf16>
    %cst_73 = arith.constant dense<0.000000e+00> : vector<14x4xf32>
    %227 = tpu.matmul %226, %211, %cst_73 {dimension_numbers = #tpu.dot_dimension_numbers<[1], [0], [0], [1], [0, 0, 1, 1], [], []>} : vector<14x14xbf16>, vector<14x4xbf16>, vector<14x4xf32> -> vector<14x4xf32>
    %228 = arith.truncf %227 : vector<14x4xf32> to vector<14x4xbf16>
    %c7 = arith.constant 7 : index
    %c0_74 = arith.constant 0 : index
    %c0_75 = arith.constant 0 : index
    %229 = vector.load %arg5[%c7, %c0_74, %c0_75] : memref<8x4x32xbf16, #tpu.memory_space<vmem>>, vector<1x4x32xbf16>
    %230 = vector.shape_cast %229 : vector<1x4x32xbf16> to vector<4x32xbf16>
    %cst_76 = arith.constant dense<0.000000e+00> : vector<14x32xf32>
    %231 = tpu.matmul %228, %230, %cst_76 {dimension_numbers = #tpu.dot_dimension_numbers<[1], [0], [0], [1], [0, 0, 1, 1], [], []>} : vector<14x4xbf16>, vector<4x32xbf16>, vector<14x32xf32> -> vector<14x32xf32>
    %232 = arith.addf %205, %231 : vector<14x32xf32>
    %233 = arith.addf %232, %1 : vector<14x32xf32>
    %c0_77 = arith.constant 0 : index
    %c0_78 = arith.constant 0 : index
    %234 = vector.load %arg7[%c0_77, %c0_78] : memref<1x32xf32, #tpu.memory_space<vmem>>, vector<1x32xf32>
    %c0_79 = arith.constant 0 : index
    %c0_80 = arith.constant 0 : index
    %235 = vector.load %arg8[%c0_79, %c0_80] : memref<1x32xf32, #tpu.memory_space<vmem>>, vector<1x32xf32>
    %cst_81 = arith.constant dense<0.000000e+00> : vector<14xf32>
    %236 = vector.multi_reduction <add>, %233, %cst_81 [1] : vector<14x32xf32> to vector<14xf32>
    %237 = vector.shape_cast %236 : vector<14xf32> to vector<14x1xf32>
    %cst_82 = arith.constant 3.200000e+01 : f32
    %238 = vector.broadcast %cst_82 : f32 to vector<14x1xf32>
    %239 = arith.divf %237, %238 : vector<14x1xf32>
    %240 = vector.broadcast %239 : vector<14x1xf32> to vector<14x32xf32>
    %241 = arith.subf %233, %240 : vector<14x32xf32>
    %242 = arith.mulf %241, %241 : vector<14x32xf32>
    %cst_83 = arith.constant dense<0.000000e+00> : vector<14xf32>
    %243 = vector.multi_reduction <add>, %242, %cst_83 [1] : vector<14x32xf32> to vector<14xf32>
    %244 = vector.shape_cast %243 : vector<14xf32> to vector<14x1xf32>
    %cst_84 = arith.constant 3.200000e+01 : f32
    %245 = vector.broadcast %cst_84 : f32 to vector<14x1xf32>
    %246 = arith.divf %244, %245 : vector<14x1xf32>
    %247 = vector.broadcast %239 : vector<14x1xf32> to vector<14x32xf32>
    %248 = arith.subf %233, %247 : vector<14x32xf32>
    %cst_85 = arith.constant 9.99999996E-13 : f32
    %249 = vector.broadcast %cst_85 : f32 to vector<14x1xf32>
    %250 = arith.addf %246, %249 : vector<14x1xf32>
    %251 = math.rsqrt %250 : vector<14x1xf32>
    %252 = vector.broadcast %251 : vector<14x1xf32> to vector<14x32xf32>
    %253 = arith.mulf %248, %252 : vector<14x32xf32>
    %254 = vector.broadcast %234 : vector<1x32xf32> to vector<14x32xf32>
    %255 = arith.mulf %253, %254 : vector<14x32xf32>
    %256 = vector.broadcast %235 : vector<1x32xf32> to vector<14x32xf32>
    %257 = arith.addf %255, %256 : vector<14x32xf32>
    %258 = arith.truncf %257 : vector<14x32xf32> to vector<14x32xbf16>
    %c0_86 = arith.constant 0 : index
    %c0_87 = arith.constant 0 : index
    %259 = vector.load %arg9[%c0_86, %c0_87] : memref<32x32xbf16, #tpu.memory_space<vmem>>, vector<32x32xbf16>
    %cst_88 = arith.constant dense<0.000000e+00> : vector<14x32xf32>
    %260 = tpu.matmul %258, %259, %cst_88 {dimension_numbers = #tpu.dot_dimension_numbers<[1], [0], [0], [1], [0, 0, 1, 1], [], []>} : vector<14x32xbf16>, vector<32x32xbf16>, vector<14x32xf32> -> vector<14x32xf32>
    %c0_89 = arith.constant 0 : index
    %c0_90 = arith.constant 0 : index
    %261 = vector.load %arg10[%c0_89, %c0_90] : memref<1x32xf32, #tpu.memory_space<vmem>>, vector<1x32xf32>
    %262 = vector.broadcast %261 : vector<1x32xf32> to vector<14x32xf32>
    %263 = arith.addf %260, %262 : vector<14x32xf32>
    %cst_91 = arith.constant 5.000000e-01 : f32
    %264 = vector.broadcast %cst_91 : f32 to vector<14x32xf32>
    %265 = arith.mulf %264, %263 : vector<14x32xf32>
    %cst_92 = arith.constant 4.471500e-02 : f32
    %266 = vector.broadcast %cst_92 : f32 to vector<14x32xf32>
    %267 = arith.mulf %266, %263 : vector<14x32xf32>
    %268 = arith.mulf %267, %263 : vector<14x32xf32>
    %269 = arith.mulf %268, %263 : vector<14x32xf32>
    %270 = arith.addf %263, %269 : vector<14x32xf32>
    %cst_93 = arith.constant 0.797884583 : f32
    %271 = vector.broadcast %cst_93 : f32 to vector<14x32xf32>
    %272 = arith.mulf %271, %270 : vector<14x32xf32>
    %273 = math.tanh %272 : vector<14x32xf32>
    %cst_94 = arith.constant 1.000000e+00 : f32
    %274 = vector.broadcast %cst_94 : f32 to vector<14x32xf32>
    %275 = arith.addf %274, %273 : vector<14x32xf32>
    %276 = arith.mulf %265, %275 : vector<14x32xf32>
    %277 = arith.truncf %276 : vector<14x32xf32> to vector<14x32xbf16>
    %c0_95 = arith.constant 0 : index
    %c0_96 = arith.constant 0 : index
    %278 = vector.load %arg11[%c0_95, %c0_96] : memref<32x32xbf16, #tpu.memory_space<vmem>>, vector<32x32xbf16>
    %cst_97 = arith.constant dense<0.000000e+00> : vector<14x32xf32>
    %279 = tpu.matmul %277, %278, %cst_97 {dimension_numbers = #tpu.dot_dimension_numbers<[1], [0], [0], [1], [0, 0, 1, 1], [], []>} : vector<14x32xbf16>, vector<32x32xbf16>, vector<14x32xf32> -> vector<14x32xf32>
    %c0_98 = arith.constant 0 : index
    %c0_99 = arith.constant 0 : index
    %280 = vector.load %arg12[%c0_98, %c0_99] : memref<1x32xf32, #tpu.memory_space<vmem>>, vector<1x32xf32>
    %281 = vector.broadcast %280 : vector<1x32xf32> to vector<14x32xf32>
    %282 = arith.addf %279, %281 : vector<14x32xf32>
    %283 = arith.addf %282, %257 : vector<14x32xf32>
    %c0_100 = arith.constant 0 : index
    %c0_101 = arith.constant 0 : index
    %284 = vector.load %arg13[%c0_100, %c0_101] : memref<1x32xf32, #tpu.memory_space<vmem>>, vector<1x32xf32>
    %c0_102 = arith.constant 0 : index
    %c0_103 = arith.constant 0 : index
    %285 = vector.load %arg14[%c0_102, %c0_103] : memref<1x32xf32, #tpu.memory_space<vmem>>, vector<1x32xf32>
    %cst_104 = arith.constant dense<0.000000e+00> : vector<14xf32>
    %286 = vector.multi_reduction <add>, %283, %cst_104 [1] : vector<14x32xf32> to vector<14xf32>
    %287 = vector.shape_cast %286 : vector<14xf32> to vector<14x1xf32>
    %cst_105 = arith.constant 3.200000e+01 : f32
    %288 = vector.broadcast %cst_105 : f32 to vector<14x1xf32>
    %289 = arith.divf %287, %288 : vector<14x1xf32>
    %290 = vector.broadcast %289 : vector<14x1xf32> to vector<14x32xf32>
    %291 = arith.subf %283, %290 : vector<14x32xf32>
    %292 = arith.mulf %291, %291 : vector<14x32xf32>
    %cst_106 = arith.constant dense<0.000000e+00> : vector<14xf32>
    %293 = vector.multi_reduction <add>, %292, %cst_106 [1] : vector<14x32xf32> to vector<14xf32>
    %294 = vector.shape_cast %293 : vector<14xf32> to vector<14x1xf32>
    %cst_107 = arith.constant 3.200000e+01 : f32
    %295 = vector.broadcast %cst_107 : f32 to vector<14x1xf32>
    %296 = arith.divf %294, %295 : vector<14x1xf32>
    %297 = vector.broadcast %289 : vector<14x1xf32> to vector<14x32xf32>
    %298 = arith.subf %283, %297 : vector<14x32xf32>
    %cst_108 = arith.constant 9.99999996E-13 : f32
    %299 = vector.broadcast %cst_108 : f32 to vector<14x1xf32>
    %300 = arith.addf %296, %299 : vector<14x1xf32>
    %301 = math.rsqrt %300 : vector<14x1xf32>
    %302 = vector.broadcast %301 : vector<14x1xf32> to vector<14x32xf32>
    %303 = arith.mulf %298, %302 : vector<14x32xf32>
    %304 = vector.broadcast %284 : vector<1x32xf32> to vector<14x32xf32>
    %305 = arith.mulf %303, %304 : vector<14x32xf32>
    %306 = vector.broadcast %285 : vector<1x32xf32> to vector<14x32xf32>
    %307 = arith.addf %305, %306 : vector<14x32xf32>
    %c0_109 = arith.constant 0 : index
    %c0_110 = arith.constant 0 : index
    %c0_111 = arith.constant 0 : index
    %308 = vector.load %arg15[%c0_109, %c0_110, %c0_111] : memref<1x14x32xf32, #tpu.memory_space<vmem>>, vector<1x14x32xf32>
    %309 = vector.shape_cast %308 : vector<1x14x32xf32> to vector<14x32xf32>
    %310 = vector.shape_cast %307 : vector<14x32xf32> to vector<1x14x32xf32>
    tpu.vector_store %arg15[%c0_109, %c0_110, %c0_111], %310 {strides = array<i32>} : memref<1x14x32xf32, #tpu.memory_space<vmem>>, vector<1x14x32xf32>,
    return
  }
  func.func @transform_0(%arg0: i32) -> (i32, i32, i32) {
    %c0_i32 = arith.constant 0 : i32
    %c0_i32_0 = arith.constant 0 : i32
    %c0_i32_1 = arith.constant 0 : i32
    return %arg0, %c0_i32, %c0_i32_0 : i32, i32, i32
  }
  func.func @transform_1(%arg0: i32) -> (i32, i32, i32) {
    %c0_i32 = arith.constant 0 : i32
    %c0_i32_0 = arith.constant 0 : i32
    %c0_i32_1 = arith.constant 0 : i32
    return %arg0, %c0_i32, %c0_i32_0 : i32, i32, i32
  }
  func.func @transform_2(%arg0: i32) -> (i32, i32) {
    %c0_i32 = arith.constant 0 : i32
    %c0_i32_0 = arith.constant 0 : i32
    %c0_i32_1 = arith.constant 0 : i32
    return %c0_i32, %c0_i32_0 : i32, i32
  }
  func.func @transform_3(%arg0: i32) -> (i32, i32) {
    %c0_i32 = arith.constant 0 : i32
    %c0_i32_0 = arith.constant 0 : i32
    %c0_i32_1 = arith.constant 0 : i32
    return %c0_i32, %c0_i32_0 : i32, i32
  }
  func.func @transform_4(%arg0: i32) -> (i32, i32, i32) {
    %c0_i32 = arith.constant 0 : i32
    %c0_i32_0 = arith.constant 0 : i32
    %c0_i32_1 = arith.constant 0 : i32
    %c0_i32_2 = arith.constant 0 : i32
    return %c0_i32, %c0_i32_0, %c0_i32_1 : i32, i32, i32
  }
  func.func @transform_5(%arg0: i32) -> (i32, i32) {
    %c0_i32 = arith.constant 0 : i32
    %c0_i32_0 = arith.constant 0 : i32
    %c0_i32_1 = arith.constant 0 : i32
    return %c0_i32, %c0_i32_0 : i32, i32
  }
  func.func @transform_6(%arg0: i32) -> (i32, i32) {
    %c0_i32 = arith.constant 0 : i32
    %c0_i32_0 = arith.constant 0 : i32
    %c0_i32_1 = arith.constant 0 : i32
    return %c0_i32, %c0_i32_0 : i32, i32
  }
  func.func @transform_7(%arg0: i32) -> (i32, i32) {
    %c0_i32 = arith.constant 0 : i32
    %c0_i32_0 = arith.constant 0 : i32
    %c0_i32_1 = arith.constant 0 : i32
    return %c0_i32, %c0_i32_0 : i32, i32
  }
  func.func @transform_8(%arg0: i32) -> (i32, i32) {
    %c0_i32 = arith.constant 0 : i32
    %c0_i32_0 = arith.constant 0 : i32
    %c0_i32_1 = arith.constant 0 : i32
    return %c0_i32, %c0_i32_0 : i32, i32
  }
  func.func @transform_9(%arg0: i32) -> (i32, i32) {
    %c0_i32 = arith.constant 0 : i32
    %c0_i32_0 = arith.constant 0 : i32
    %c0_i32_1 = arith.constant 0 : i32
    return %c0_i32, %c0_i32_0 : i32, i32
  }
  func.func @transform_10(%arg0: i32) -> (i32, i32) {
    %c0_i32 = arith.constant 0 : i32
    %c0_i32_0 = arith.constant 0 : i32
    %c0_i32_1 = arith.constant 0 : i32
    return %c0_i32, %c0_i32_0 : i32, i32
  }
  func.func @transform_11(%arg0: i32) -> (i32, i32) {
    %c0_i32 = arith.constant 0 : i32
    %c0_i32_0 = arith.constant 0 : i32
    %c0_i32_1 = arith.constant 0 : i32
    return %c0_i32, %c0_i32_0 : i32, i32
  }
  func.func @transform_12(%arg0: i32) -> (i32, i32) {
    %c0_i32 = arith.constant 0 : i32
    %c0_i32_0 = arith.constant 0 : i32
    %c0_i32_1 = arith.constant 0 : i32
    return %c0_i32, %c0_i32_0 : i32, i32
  }
  func.func @transform_13(%arg0: i32) -> (i32, i32) {
    %c0_i32 = arith.constant 0 : i32
    %c0_i32_0 = arith.constant 0 : i32
    %c0_i32_1 = arith.constant 0 : i32
    return %c0_i32, %c0_i32_0 : i32, i32
  }
  func.func @transform_14(%arg0: i32) -> (i32, i32, i32) {
    %c0_i32 = arith.constant 0 : i32
    %c0_i32_0 = arith.constant 0 : i32
    %c0_i32_1 = arith.constant 0 : i32
    return %arg0, %c0_i32, %c0_i32_0 : i32, i32, i32
  }
}

</mosaic_0001>

<llo_original>
// kernel: _lambda_.7
$region0: #{_lambda_.7}
  #allocation0 [shape = 'u32[]', space=smem, size = 0x4, offset = 0x4, fixed_abs, tag = 'smem constant byte address 0x4 - core index']
  #allocation1 [shape = 'u32[144,128]{1,0:T(1,128)}', space=vmem, size = 0x12000, scoped, tag = 'internal scratch']
  %s0 = inlined_call_operand.vmem [shape: f32[16,32], index: 0, kind: input, shape index: {}]
  %s1 = inlined_call_operand.vmem [shape: bf16[32,32], index: 1, kind: input, shape index: {}]
  %s2 = inlined_call_operand.vmem [shape: f32[1,32], index: 2, kind: input, shape index: {}]
  %s3 = inlined_call_operand.vmem [shape: f32[1,32], index: 3, kind: input, shape index: {}]
  %s4 = inlined_call_operand.vmem [shape: f32[1,32], index: 4, kind: input, shape index: {}]
  %s5 = inlined_call_operand.vmem [shape: bf16[32,128], index: 5, kind: input, shape index: {}]
  %s6 = inlined_call_operand.vmem [shape: f32[1,128], index: 6, kind: input, shape index: {}]
  %s7 = inlined_call_operand.vmem [shape: f32[16,128], index: 7, kind: output, shape index: {}]
  %s8 = sld [smem:[#allocation0]]
  $region38: #{_lambda_.7} parent=0
    _
  %s10 = ssub.s32 1, %s8
  %s11 = scalar_select 0, %s10, %s8
  // Predicated region
  $region2: #{_lambda_.7} parent=0 // pred_check
    _
  $region3: #{_lambda_.7} parent=0 // pred_check_branch
    %13 = sbr.rel (0) target = $region5
  $region4: #{_lambda_.7} parent=0 // pred_region
    _
  $region5: #{_lambda_.7} parent=0 // pred_fallthru
    _
  // Predicated region
  $region6: #{_lambda_.7} parent=0 // pred_check
    _
  $region7: #{_lambda_.7} parent=0 // pred_check_branch
    %15 = sbr.rel (0) target = $region9
  $region8: #{_lambda_.7} parent=0 // pred_region
    _
  $region9: #{_lambda_.7} parent=0 // pred_fallthru
    _
  // Predicated region
  $region10: #{_lambda_.7} parent=0 // pred_check
    _
  $region11: #{_lambda_.7} parent=0 // pred_check_branch
    %17 = sbr.rel (0) target = $region13
  $region12: #{_lambda_.7} parent=0 // pred_region
    _
  $region13: #{_lambda_.7} parent=0 // pred_fallthru
    _
  // Predicated region
  $region14: #{_lambda_.7} parent=0 // pred_check
    _
  $region15: #{_lambda_.7} parent=0 // pred_check_branch
    %19 = sbr.rel (0) target = $region17
  $region16: #{_lambda_.7} parent=0 // pred_region
    _
  $region17: #{_lambda_.7} parent=0 // pred_fallthru
    _
  // Predicated region
  $region18: #{_lambda_.7} parent=0 // pred_check
    _
  $region19: #{_lambda_.7} parent=0 // pred_check_branch
    %21 = sbr.rel (0) target = $region21
  $region20: #{_lambda_.7} parent=0 // pred_region
    _
  $region21: #{_lambda_.7} parent=0 // pred_fallthru
    _
  // Predicated region
  $region22: #{_lambda_.7} parent=0 // pred_check
    _
  $region23: #{_lambda_.7} parent=0 // pred_check_branch
    %23 = sbr.rel (0) target = $region25
  $region24: #{_lambda_.7} parent=0 // pred_region
    _
  $region25: #{_lambda_.7} parent=0 // pred_fallthru
    _
  // Predicated region
  $region26: #{_lambda_.7} parent=0 // pred_check
    _
  $region27: #{_lambda_.7} parent=0 // pred_check_branch
    %25 = sbr.rel (0) target = $region29
  $region28: #{_lambda_.7} parent=0 // pred_region
    _
  $region29: #{_lambda_.7} parent=0 // pred_fallthru
    _
  %v27 = vld [vmem:[%s0] sm:$0xff]
  %v28 = vld [vmem:[%s0 + $0x8] sm:$0xff]
  %v29 = vpack.c.bf16 %v28, %v27
  %v30 = vld [vmem:[%s1] sm:$0xf]
  %v31 = vld [vmem:[%s1 + $0x4] sm:$0xf]
  %v32 = vld [vmem:[%s1 + $0x8] sm:$0xf]
  %v33 = vld [vmem:[%s1 + $0xc] sm:$0xf]
  %v34 = vld [vmem:[%s2] sm:$0x1]
  %v36 = vlaneseq
  %v37 = vshrl.u32 %v36, 7
  %v38 = vsub.s32 0, %v37
  %v39 = vrot.slane %v34, %v38
  %v45 = vunpack.c.l.b16 %v30
  %v46 = vunpack.c.l.b16 %v31
  %v47 = vunpack.c.l.b16 %v32
  %v48 = vunpack.c.l.b16 %v33
  %v49 = vpack.c.b16 %v46, %v45
  %v50 = vpack.c.b16 %v48, %v47
  %vm53 = vcmask 261120
  %v55 = vsel %vm53, %v29, 0
  %57 = vmatprep.subr.bf16.mxu0 0
  %58 = vmatpush1.bf16.msra.mxu0 0
  %59 = vmatprep.subr.bf16.mxu0 0
  %60 = vmatpush1.bf16.msra.mxu0 0
  %61 = vmatprep.subr.bf16.mxu0 0
  %62 = vmatpush1.bf16.msra.mxu0 0
  %63 = vmatprep.subr.bf16.mxu0 0
  %64 = vmatpush1.bf16.msra.mxu0 0
  %65 = vmatprep.subr.bf16.mxu0 0
  %66 = vmatpush1.bf16.msra.mxu0 0
  %67 = vmatprep.subr.bf16.mxu0 0
  %68 = vmatpush1.bf16.msra.mxu0 0
  %69 = vmatprep.subr.bf16.mxu0 0
  %70 = vmatpush1.bf16.msra.mxu0 %v50
  %71 = vmatprep.subr.bf16.mxu0 0
  %72 = vmatpush1.bf16.msra.mxu0 %v49
  %73 = vmatprep.subr.bf16.mxu0 0
  %74 = vmatpush2.bf16.msra.mxu0 0
  %75 = vmatprep.subr.bf16.mxu0 0
  %76 = vmatpush2.bf16.msra.mxu0 0
  %77 = vmatprep.subr.bf16.mxu0 0
  %78 = vmatpush2.bf16.msra.mxu0 0
  %79 = vmatprep.subr.bf16.mxu0 0
  %80 = vmatpush2.bf16.msra.mxu0 0
  %81 = vmatprep.subr.bf16.mxu0 0
  %82 = vmatpush2.bf16.msra.mxu0 0
  %83 = vmatprep.subr.bf16.mxu0 0
  %84 = vmatpush2.bf16.msra.mxu0 0
  %85 = vmatprep.subr.bf16.mxu0 0
  %86 = vmatpush2.bf16.msra.mxu0 0
  %87 = vmatprep.subr.bf16.mxu0 0
  %88 = vmatpush2.bf16.msra.mxu0 0
  %89 = vmatprep.mubr.bf16.mxu0 0
  %90 = vmatmul.mubr.bf16.gmra.mxu0 %v55
  %v91 = vpop.f32.mrf.mxu0
  %v92 = vadd.f32 %v39, %v91
  %v93 = vpop.f32.mrf.mxu0
  %v94 = vpop.f32.mrf.mxu0
  %v95 = vadd.f32 %v39, %v94
  %v96 = vpop.f32.mrf.mxu0
  %97 = vdwg.mxu0
  %v98 = vmul.f32 %v92, 0.5
  %v99 = vmul.f32 %v95, 0.5
  %v100 = vmul.f32 %v92, 0.044715
  %v101 = vmul.f32 %v95, 0.044715
  %v102 = vmul.f32 %v100, %v92
  %v103 = vmul.f32 %v101, %v95
  %v104 = vmul.f32 %v102, %v92
  %v105 = vmul.f32 %v103, %v95
  %v106 = vadd.f32 %v92, %v104
  %v107 = vadd.f32 %v95, %v105
  %v108 = vmul.f32 %v106, 0.7978846
  %v109 = vmul.f32 %v107, 0.7978846
  %v110 = vtanh.pop %v108
  %v111 = vtanh.pop %v109
  %v112 = vadd.f32 %v110, 1.0
  %v113 = vadd.f32 %v111, 1.0
  %v114 = vmul.f32 %v98, %v112
  %v115 = vmul.f32 %v99, %v113
  %v116 = vld [vmem:[%s3] sm:$0x1]
  %v117 = vld [vmem:[%s4] sm:$0x1]
  %v118 = vsel %vm53, %v114, 0.0
  %119 = vadd.xlane.f32.xlu0 %v118
  %v120 = vpop.xlane.xlu0 %119
  %v121 = vsel %vm53, %v115, 0.0
  %122 = vadd.xlane.f32.xlu0 %v121
  %v123 = vpop.xlane.xlu0 %122
  %v124 = vrcp.pop 32.0
  %v125 = vmul.f32 %v120, %v124
  %v126 = vmul.f32 %v123, %v124
  %v127 = vsub.f32 %v114, %v125
  %v128 = vsub.f32 %v115, %v126
  %v129 = vmul.f32 %v127, %v127
  %v130 = vmul.f32 %v128, %v128
  %v131 = vsel %vm53, %v129, 0.0
  %132 = vadd.xlane.f32.xlu0 %v131
  %v133 = vpop.xlane.xlu0 %132
  %v134 = vsel %vm53, %v130, 0.0
  %135 = vadd.xlane.f32.xlu0 %v134
  %v136 = vpop.xlane.xlu0 %135
  %v137 = vmul.f32 %v133, %v124
  %v138 = vmul.f32 %v136, %v124
  %v139 = vadd.f32 %v137, 1e-12
  %v140 = vadd.f32 %v138, 1e-12
  %v141 = vrsqrt.pop %v139
  %v142 = vrsqrt.pop %v140
  %v143 = vmul.f32 %v127, %v141
  %v144 = vmul.f32 %v128, %v142
  %v146 = vlaneseq
  %v147 = vshrl.u32 %v146, 7
  %v148 = vsub.s32 0, %v147
  %v149 = vrot.slane %v116, %v148
  %v151 = vmul.f32 %v143, %v149
  %v152 = vmul.f32 %v144, %v149
  %v154 = vlaneseq
  %v155 = vshrl.u32 %v154, 7
  %v156 = vsub.s32 0, %v155
  %v157 = vrot.slane %v117, %v156
  %v159 = vadd.f32 %v151, %v157
  %v160 = vadd.f32 %v152, %v157
  %v161 = vpack.c.bf16 %v160, %v159
  %v162 = vld [vmem:[%s5] sm:$0xf]
  %v163 = vld [vmem:[%s5 + $0x4] sm:$0xf]
  %v164 = vld [vmem:[%s5 + $0x8] sm:$0xf]
  %v165 = vld [vmem:[%s5 + $0xc] sm:$0xf]
  %v166 = vld [vmem:[%s6] sm:$0x1]
  %v168 = vlaneseq
  %v169 = vshrl.u32 %v168, 7
  %v170 = vsub.s32 0, %v169
  %v171 = vrot.slane %v166, %v170
  %v177 = vunpack.c.l.b16 %v162
  %v178 = vunpack.c.l.b16 %v163
  %v179 = vunpack.c.l.b16 %v164
  %v180 = vunpack.c.l.b16 %v165
  %v181 = vpack.c.b16 %v178, %v177
  %v182 = vpack.c.b16 %v180, %v179
  %v186 = vsel %vm53, %v161, 0
  %188 = vmatprep.subr.bf16.mxu0 0
  %189 = vmatpush1.bf16.msra.mxu0 0
  %190 = vmatprep.subr.bf16.mxu0 0
  %191 = vmatpush1.bf16.msra.mxu0 0
  %192 = vmatprep.subr.bf16.mxu0 0
  %193 = vmatpush1.bf16.msra.mxu0 0
  %194 = vmatprep.subr.bf16.mxu0 0
  %195 = vmatpush1.bf16.msra.mxu0 0
  %196 = vmatprep.subr.bf16.mxu0 0
  %197 = vmatpush1.bf16.msra.mxu0 0
  %198 = vmatprep.subr.bf16.mxu0 0
  %199 = vmatpush1.bf16.msra.mxu0 0
  %200 = vmatprep.subr.bf16.mxu0 0
  %201 = vmatpush1.bf16.msra.mxu0 %v182
  %202 = vmatprep.subr.bf16.mxu0 0
  %203 = vmatpush1.bf16.msra.mxu0 %v181
  %204 = vmatprep.subr.bf16.mxu0 0
  %205 = vmatpush2.bf16.msra.mxu0 0
  %206 = vmatprep.subr.bf16.mxu0 0
  %207 = vmatpush2.bf16.msra.mxu0 0
  %208 = vmatprep.subr.bf16.mxu0 0
  %209 = vmatpush2.bf16.msra.mxu0 0
  %210 = vmatprep.subr.bf16.mxu0 0
  %211 = vmatpush2.bf16.msra.mxu0 0
  %212 = vmatprep.subr.bf16.mxu0 0
  %213 = vmatpush2.bf16.msra.mxu0 0
  %214 = vmatprep.subr.bf16.mxu0 0
  %215 = vmatpush2.bf16.msra.mxu0 0
  %216 = vmatprep.subr.bf16.mxu0 0
  %217 = vmatpush2.bf16.msra.mxu0 0
  %218 = vmatprep.subr.bf16.mxu0 0
  %219 = vmatpush2.bf16.msra.mxu0 0
  %220 = vmatprep.mubr.bf16.mxu0 0
  %221 = vmatmul.mubr.bf16.gmra.mxu0 %v186
  %v222 = vpop.f32.mrf.mxu0
  %v223 = vadd.f32 %v171, %v222
  %v224 = vpop.f32.mrf.mxu0
  %v225 = vpop.f32.mrf.mxu0
  %v226 = vadd.f32 %v171, %v225
  %v227 = vpop.f32.mrf.mxu0
  %228 = vdwg.mxu0
  %229 = vst [vmem:[%s7] sm:$0xff] %v223
  %230 = vst [vmem:[%s7 + $0x8] sm:$0xff] %v226
  // Predicated region
  $region30: #{_lambda_.7} parent=0 // pred_check
    _
  $region31: #{_lambda_.7} parent=0 // pred_check_branch
    %232 = sbr.rel (0) target = $region33
  $region32: #{_lambda_.7} parent=0 // pred_region
    _
  $region33: #{_lambda_.7} parent=0 // pred_fallthru
    _
  // Predicated region
  $region34: #{_lambda_.7} parent=0 // pred_check
    _
  $region35: #{_lambda_.7} parent=0 // pred_check_branch
    %234 = sbr.rel (0) target = $region37
  $region36: #{_lambda_.7} parent=0 // pred_region
    _
  $region37: #{_lambda_.7} parent=0 // pred_fallthru
    _

// kernel: _lambda_.4
$region0: #{_lambda_.4}
  #allocation0 [shape = 'u32[]', space=smem, size = 0x4, offset = 0x4, fixed_abs, tag = 'smem constant byte address 0x4 - core index']
  #allocation1 [shape = 'u32[144,128]{1,0:T(1,128)}', space=vmem, size = 0x12000, scoped, tag = 'internal scratch']
  %s0 = inlined_call_operand.vmem [shape: f32[2,8,32], index: 0, kind: input, shape index: {}]
  %s1 = inlined_call_operand.vmem [shape: f32[2,6,64], index: 1, kind: input, shape index: {}]
  %s2 = inlined_call_operand.vmem [shape: f32[2,14,32], index: 2, kind: input, shape index: {}]
  %s3 = inlined_call_operand.vmem [shape: f32[1,32], index: 3, kind: input, shape index: {}]
  %s4 = inlined_call_operand.vmem [shape: f32[1,32], index: 4, kind: input, shape index: {}]
  %s5 = inlined_call_operand.vmem [shape: bf16[32,32], index: 5, kind: input, shape index: {}]
  %s6 = inlined_call_operand.vmem [shape: f32[1,32], index: 6, kind: input, shape index: {}]
  %s7 = inlined_call_operand.vmem [shape: f32[1,32], index: 7, kind: input, shape index: {}]
  %s8 = inlined_call_operand.vmem [shape: f32[1,32], index: 8, kind: input, shape index: {}]
  %s9 = inlined_call_operand.vmem [shape: f32[1,64], index: 9, kind: input, shape index: {}]
  %s10 = inlined_call_operand.vmem [shape: f32[1,64], index: 10, kind: input, shape index: {}]
  %s11 = inlined_call_operand.vmem [shape: bf16[64,32], index: 11, kind: input, shape index: {}]
  %s12 = inlined_call_operand.vmem [shape: f32[1,32], index: 12, kind: input, shape index: {}]
  %s13 = inlined_call_operand.vmem [shape: f32[1,32], index: 13, kind: input, shape index: {}]
  %s14 = inlined_call_operand.vmem [shape: f32[1,32], index: 14, kind: input, shape index: {}]
  %s15 = inlined_call_operand.vmem [shape: f32[1,32], index: 15, kind: input, shape index: {}]
  %s16 = inlined_call_operand.vmem [shape: f32[1,32], index: 16, kind: input, shape index: {}]
  %s17 = inlined_call_operand.vmem [shape: f32[2,14,32], index: 17, kind: output, shape index: {}]
  %s18 = sld [smem:[#allocation0]]
  $region101: #{_lambda_.4} parent=0
    _
  %s20 = ssub.s32 1, %s18
  %s21 = scalar_select 0, %s20, %s18
  loop: start=0, step=1, limit=4
  $region2: #{_lambda_.4} parent=0 // loop_pre_header
    _
  $region3: #{_lambda_.4} parent=0 // loop_header
    %s23 = sphi 0, %s27
    %p24 = scmp.ge.s32.totalorder %s23, 4
    %s33 = sphi 0, %s35
    %s36 = sphi 0, %s33
    %s37 = sphi 0, %s36
    %s53 = sphi 0, %s37
    %s59 = sphi 0, %s61
    %s62 = sphi 0, %s59
    %s63 = sphi 0, %s62
    %s79 = sphi 0, %s63
    %s85 = sphi 0, %s87
    %s88 = sphi 0, %s85
    %s89 = sphi 0, %s88
    %s105 = sphi 0, %s89
    %s109 = sphi 0, %s109
    %s111 = sphi 0, %s109
    %s112 = sphi 0, %s111
    %s126 = sphi 0, %s112
    %s130 = sphi 0, %s130
    %s132 = sphi 0, %s130
    %s133 = sphi 0, %s132
    %s147 = sphi 0, %s133
    %s151 = sphi 0, %s151
    %s153 = sphi 0, %s151
    %s154 = sphi 0, %s153
    %s168 = sphi 0, %s154
    %s172 = sphi 0, %s172
    %s174 = sphi 0, %s172
    %s175 = sphi 0, %s174
    %s189 = sphi 0, %s175
    %s193 = sphi 0, %s193
    %s195 = sphi 0, %s193
    %s196 = sphi 0, %s195
    %s210 = sphi 0, %s196
    %s214 = sphi 0, %s214
    %s216 = sphi 0, %s214
    %s217 = sphi 0, %s216
    %s231 = sphi 0, %s217
    %s235 = sphi 0, %s235
    %s237 = sphi 0, %s235
    %s238 = sphi 0, %s237
    %s252 = sphi 0, %s238
    %s256 = sphi 0, %s256
    %s258 = sphi 0, %s256
    %s259 = sphi 0, %s258
    %s273 = sphi 0, %s259
    %s277 = sphi 0, %s277
    %s279 = sphi 0, %s277
    %s280 = sphi 0, %s279
    %s294 = sphi 0, %s280
    %s298 = sphi 0, %s298
    %s300 = sphi 0, %s298
    %s301 = sphi 0, %s300
    %s315 = sphi 0, %s301
    %s319 = sphi 0, %s319
    %s321 = sphi 0, %s319
    %s322 = sphi 0, %s321
    %s336 = sphi 0, %s322
    %s340 = sphi 0, %s340
    %s342 = sphi 0, %s340
    %s343 = sphi 0, %s342
    %s357 = sphi 0, %s343
    %s361 = sphi 0, %s361
    %s363 = sphi 0, %s361
    %s364 = sphi 0, %s363
    %s378 = sphi 0, %s364
    %s382 = sphi 0, %s382
    %s384 = sphi 0, %s382
    %s385 = sphi 0, %s384
    %s399 = sphi 0, %s385
    %s405 = sphi 0, %s407
    %s408 = sphi 0, %s405
    %s409 = sphi 0, %s408
    %s425 = sphi 0, %s409
  $region4: #{_lambda_.4} parent=0 // loop_header_branch
    %26 = sbr.rel (%p24) target = $region8
  $region5: #{_lambda_.4} parent=0 // loop_body
    %s28 = ssub.s32 %s23, 1
    %s29 = ssub.s32 %s23, 2
    %s30 = sadd.s32 %s23, 1
    %s31 = ssub.s32 %s23, %s30
    %p32 = scmp.eq.s32.totalorder %s31, 0
    %s34 = sadd.s32 %s33, 1
    %s35 = scalar_select %p32, %s33, %s34
    %p38 = pneg %p32
    %p39 = scmp.eq.s32.totalorder %s23, 1
    %p40 = por %p38, %p39
    %p41 = scmp.ne.s32.totalorder %s33, %s36
    %p42 = scmp.eq.s32.totalorder %s23, 0
    %p43 = por %p41, %p42
    %p44 = scmp.ne.s32.totalorder %s33, %s36
    %p45 = scmp.eq.s32.totalorder %s28, 1
    %p46 = por %p44, %p45
    %p47 = scmp.ne.s32.totalorder %s36, %s37
    %p48 = scmp.eq.s32.totalorder %s28, 0
    %p49 = por %p47, %p48
    %p50 = scmp.ne.s32.totalorder %s36, %s37
    %p51 = scmp.eq.s32.totalorder %s29, 1
    %p52 = por %p50, %p51
    %p54 = scmp.ne.s32.totalorder %s37, %s53
    %p55 = scmp.eq.s32.totalorder %s29, 0
    %p56 = por %p54, %p55
    %s57 = ssub.s32 %s23, %s30
    %p58 = scmp.eq.s32.totalorder %s57, 0
    %s60 = sadd.s32 %s59, 1
    %s61 = scalar_select %p58, %s59, %s60
    %p64 = pneg %p58
    %p65 = scmp.eq.s32.totalorder %s23, 1
    %p66 = por %p64, %p65
    %p67 = scmp.ne.s32.totalorder %s59, %s62
    %p68 = scmp.eq.s32.totalorder %s23, 0
    %p69 = por %p67, %p68
    %p70 = scmp.ne.s32.totalorder %s59, %s62
    %p71 = scmp.eq.s32.totalorder %s28, 1
    %p72 = por %p70, %p71
    %p73 = scmp.ne.s32.totalorder %s62, %s63
    %p74 = scmp.eq.s32.totalorder %s28, 0
    %p75 = por %p73, %p74
    %p76 = scmp.ne.s32.totalorder %s62, %s63
    %p77 = scmp.eq.s32.totalorder %s29, 1
    %p78 = por %p76, %p77
    %p80 = scmp.ne.s32.totalorder %s63, %s79
    %p81 = scmp.eq.s32.totalorder %s29, 0
    %p82 = por %p80, %p81
    %s83 = ssub.s32 %s23, %s30
    %p84 = scmp.eq.s32.totalorder %s83, 0
    %s86 = sadd.s32 %s85, 1
    %s87 = scalar_select %p84, %s85, %s86
    %p90 = pneg %p84
    %p91 = scmp.eq.s32.totalorder %s23, 1
    %p92 = por %p90, %p91
    %p93 = scmp.ne.s32.totalorder %s85, %s88
    %p94 = scmp.eq.s32.totalorder %s23, 0
    %p95 = por %p93, %p94
    %p96 = scmp.ne.s32.totalorder %s85, %s88
    %p97 = scmp.eq.s32.totalorder %s28, 1
    %p98 = por %p96, %p97
    %p99 = scmp.ne.s32.totalorder %s88, %s89
    %p100 = scmp.eq.s32.totalorder %s28, 0
    %p101 = por %p99, %p100
    %p102 = scmp.ne.s32.totalorder %s88, %s89
    %p103 = scmp.eq.s32.totalorder %s29, 1
    %p104 = por %p102, %p103
    %p106 = scmp.ne.s32.totalorder %s89, %s105
    %p107 = scmp.eq.s32.totalorder %s29, 0
    %p108 = por %p106, %p107
    %s110 = sadd.s32 %s109, 1
    %p113 = scmp.eq.s32.totalorder %s23, 1
    %p114 = scmp.ne.s32.totalorder %s109, %s111
    %p115 = scmp.eq.s32.totalorder %s23, 0
    %p116 = por %p114, %p115
    %p117 = scmp.ne.s32.totalorder %s109, %s111
    %p118 = scmp.eq.s32.totalorder %s28, 1
    %p119 = por %p117, %p118
    %p120 = scmp.ne.s32.totalorder %s111, %s112
    %p121 = scmp.eq.s32.totalorder %s28, 0
    %p122 = por %p120, %p121
    %p123 = scmp.ne.s32.totalorder %s111, %s112
    %p124 = scmp.eq.s32.totalorder %s29, 1
    %p125 = por %p123, %p124
    %p127 = scmp.ne.s32.totalorder %s112, %s126
    %p128 = scmp.eq.s32.totalorder %s29, 0
    %p129 = por %p127, %p128
    %s131 = sadd.s32 %s130, 1
    %p134 = scmp.eq.s32.totalorder %s23, 1
    %p135 = scmp.ne.s32.totalorder %s130, %s132
    %p136 = scmp.eq.s32.totalorder %s23, 0
    %p137 = por %p135, %p136
    %p138 = scmp.ne.s32.totalorder %s130, %s132
    %p139 = scmp.eq.s32.totalorder %s28, 1
    %p140 = por %p138, %p139
    %p141 = scmp.ne.s32.totalorder %s132, %s133
    %p142 = scmp.eq.s32.totalorder %s28, 0
    %p143 = por %p141, %p142
    %p144 = scmp.ne.s32.totalorder %s132, %s133
    %p145 = scmp.eq.s32.totalorder %s29, 1
    %p146 = por %p144, %p145
    %p148 = scmp.ne.s32.totalorder %s133, %s147
    %p149 = scmp.eq.s32.totalorder %s29, 0
    %p150 = por %p148, %p149
    %s152 = sadd.s32 %s151, 1
    %p155 = scmp.eq.s32.totalorder %s23, 1
    %p156 = scmp.ne.s32.totalorder %s151, %s153
    %p157 = scmp.eq.s32.totalorder %s23, 0
    %p158 = por %p156, %p157
    %p159 = scmp.ne.s32.totalorder %s151, %s153
    %p160 = scmp.eq.s32.totalorder %s28, 1
    %p161 = por %p159, %p160
    %p162 = scmp.ne.s32.totalorder %s153, %s154
    %p163 = scmp.eq.s32.totalorder %s28, 0
    %p164 = por %p162, %p163
    %p165 = scmp.ne.s32.totalorder %s153, %s154
    %p166 = scmp.eq.s32.totalorder %s29, 1
    %p167 = por %p165, %p166
    %p169 = scmp.ne.s32.totalorder %s154, %s168
    %p170 = scmp.eq.s32.totalorder %s29, 0
    %p171 = por %p169, %p170
    %s173 = sadd.s32 %s172, 1
    %p176 = scmp.eq.s32.totalorder %s23, 1
    %p177 = scmp.ne.s32.totalorder %s172, %s174
    %p178 = scmp.eq.s32.totalorder %s23, 0
    %p179 = por %p177, %p178
    %p180 = scmp.ne.s32.totalorder %s172, %s174
    %p181 = scmp.eq.s32.totalorder %s28, 1
    %p182 = por %p180, %p181
    %p183 = scmp.ne.s32.totalorder %s174, %s175
    %p184 = scmp.eq.s32.totalorder %s28, 0
    %p185 = por %p183, %p184
    %p186 = scmp.ne.s32.totalorder %s174, %s175
    %p187 = scmp.eq.s32.totalorder %s29, 1
    %p188 = por %p186, %p187
    %p190 = scmp.ne.s32.totalorder %s175, %s189
    %p191 = scmp.eq.s32.totalorder %s29, 0
    %p192 = por %p190, %p191
    %s194 = sadd.s32 %s193, 1
    %p197 = scmp.eq.s32.totalorder %s23, 1
    %p198 = scmp.ne.s32.totalorder %s193, %s195
    %p199 = scmp.eq.s32.totalorder %s23, 0
    %p200 = por %p198, %p199
    %p201 = scmp.ne.s32.totalorder %s193, %s195
    %p202 = scmp.eq.s32.totalorder %s28, 1
    %p203 = por %p201, %p202
    %p204 = scmp.ne.s32.totalorder %s195, %s196
    %p205 = scmp.eq.s32.totalorder %s28, 0
    %p206 = por %p204, %p205
    %p207 = scmp.ne.s32.totalorder %s195, %s196
    %p208 = scmp.eq.s32.totalorder %s29, 1
    %p209 = por %p207, %p208
    %p211 = scmp.ne.s32.totalorder %s196, %s210
    %p212 = scmp.eq.s32.totalorder %s29, 0
    %p213 = por %p211, %p212
    %s215 = sadd.s32 %s214, 1
    %p218 = scmp.eq.s32.totalorder %s23, 1
    %p219 = scmp.ne.s32.totalorder %s214, %s216
    %p220 = scmp.eq.s32.totalorder %s23, 0
    %p221 = por %p219, %p220
    %p222 = scmp.ne.s32.totalorder %s214, %s216
    %p223 = scmp.eq.s32.totalorder %s28, 1
    %p224 = por %p222, %p223
    %p225 = scmp.ne.s32.totalorder %s216, %s217
    %p226 = scmp.eq.s32.totalorder %s28, 0
    %p227 = por %p225, %p226
    %p228 = scmp.ne.s32.totalorder %s216, %s217
    %p229 = scmp.eq.s32.totalorder %s29, 1
    %p230 = por %p228, %p229
    %p232 = scmp.ne.s32.totalorder %s217, %s231
    %p233 = scmp.eq.s32.totalorder %s29, 0
    %p234 = por %p232, %p233
    %s236 = sadd.s32 %s235, 1
    %p239 = scmp.eq.s32.totalorder %s23, 1
    %p240 = scmp.ne.s32.totalorder %s235, %s237
    %p241 = scmp.eq.s32.totalorder %s23, 0
    %p242 = por %p240, %p241
    %p243 = scmp.ne.s32.totalorder %s235, %s237
    %p244 = scmp.eq.s32.totalorder %s28, 1
    %p245 = por %p243, %p244
    %p246 = scmp.ne.s32.totalorder %s237, %s238
    %p247 = scmp.eq.s32.totalorder %s28, 0
    %p248 = por %p246, %p247
    %p249 = scmp.ne.s32.totalorder %s237, %s238
    %p250 = scmp.eq.s32.totalorder %s29, 1
    %p251 = por %p249, %p250
    %p253 = scmp.ne.s32.totalorder %s238, %s252
    %p254 = scmp.eq.s32.totalorder %s29, 0
    %p255 = por %p253, %p254
    %s257 = sadd.s32 %s256, 1
    %p260 = scmp.eq.s32.totalorder %s23, 1
    %p261 = scmp.ne.s32.totalorder %s256, %s258
    %p262 = scmp.eq.s32.totalorder %s23, 0
    %p263 = por %p261, %p262
    %p264 = scmp.ne.s32.totalorder %s256, %s258
    %p265 = scmp.eq.s32.totalorder %s28, 1
    %p266 = por %p264, %p265
    %p267 = scmp.ne.s32.totalorder %s258, %s259
    %p268 = scmp.eq.s32.totalorder %s28, 0
    %p269 = por %p267, %p268
    %p270 = scmp.ne.s32.totalorder %s258, %s259
    %p271 = scmp.eq.s32.totalorder %s29, 1
    %p272 = por %p270, %p271
    %p274 = scmp.ne.s32.totalorder %s259, %s273
    %p275 = scmp.eq.s32.totalorder %s29, 0
    %p276 = por %p274, %p275
    %s278 = sadd.s32 %s277, 1
    %p281 = scmp.eq.s32.totalorder %s23, 1
    %p282 = scmp.ne.s32.totalorder %s277, %s279
    %p283 = scmp.eq.s32.totalorder %s23, 0
    %p284 = por %p282, %p283
    %p285 = scmp.ne.s32.totalorder %s277, %s279
    %p286 = scmp.eq.s32.totalorder %s28, 1
    %p287 = por %p285, %p286
    %p288 = scmp.ne.s32.totalorder %s279, %s280
    %p289 = scmp.eq.s32.totalorder %s28, 0
    %p290 = por %p288, %p289
    %p291 = scmp.ne.s32.totalorder %s279, %s280
    %p292 = scmp.eq.s32.totalorder %s29, 1
    %p293 = por %p291, %p292
    %p295 = scmp.ne.s32.totalorder %s280, %s294
    %p296 = scmp.eq.s32.totalorder %s29, 0
    %p297 = por %p295, %p296
    %s299 = sadd.s32 %s298, 1
    %p302 = scmp.eq.s32.totalorder %s23, 1
    %p303 = scmp.ne.s32.totalorder %s298, %s300
    %p304 = scmp.eq.s32.totalorder %s23, 0
    %p305 = por %p303, %p304
    %p306 = scmp.ne.s32.totalorder %s298, %s300
    %p307 = scmp.eq.s32.totalorder %s28, 1
    %p308 = por %p306, %p307
    %p309 = scmp.ne.s32.totalorder %s300, %s301
    %p310 = scmp.eq.s32.totalorder %s28, 0
    %p311 = por %p309, %p310
    %p312 = scmp.ne.s32.totalorder %s300, %s301
    %p313 = scmp.eq.s32.totalorder %s29, 1
    %p314 = por %p312, %p313
    %p316 = scmp.ne.s32.totalorder %s301, %s315
    %p317 = scmp.eq.s32.totalorder %s29, 0
    %p318 = por %p316, %p317
    %s320 = sadd.s32 %s319, 1
    %p323 = scmp.eq.s32.totalorder %s23, 1
    %p324 = scmp.ne.s32.totalorder %s319, %s321
    %p325 = scmp.eq.s32.totalorder %s23, 0
    %p326 = por %p324, %p325
    %p327 = scmp.ne.s32.totalorder %s319, %s321
    %p328 = scmp.eq.s32.totalorder %s28, 1
    %p329 = por %p327, %p328
    %p330 = scmp.ne.s32.totalorder %s321, %s322
    %p331 = scmp.eq.s32.totalorder %s28, 0
    %p332 = por %p330, %p331
    %p333 = scmp.ne.s32.totalorder %s321, %s322
    %p334 = scmp.eq.s32.totalorder %s29, 1
    %p335 = por %p333, %p334
    %p337 = scmp.ne.s32.totalorder %s322, %s336
    %p338 = scmp.eq.s32.totalorder %s29, 0
    %p339 = por %p337, %p338
    %s341 = sadd.s32 %s340, 1
    %p344 = scmp.eq.s32.totalorder %s23, 1
    %p345 = scmp.ne.s32.totalorder %s340, %s342
    %p346 = scmp.eq.s32.totalorder %s23, 0
    %p347 = por %p345, %p346
    %p348 = scmp.ne.s32.totalorder %s340, %s342
    %p349 = scmp.eq.s32.totalorder %s28, 1
    %p350 = por %p348, %p349
    %p351 = scmp.ne.s32.totalorder %s342, %s343
    %p352 = scmp.eq.s32.totalorder %s28, 0
    %p353 = por %p351, %p352
    %p354 = scmp.ne.s32.totalorder %s342, %s343
    %p355 = scmp.eq.s32.totalorder %s29, 1
    %p356 = por %p354, %p355
    %p358 = scmp.ne.s32.totalorder %s343, %s357
    %p359 = scmp.eq.s32.totalorder %s29, 0
    %p360 = por %p358, %p359
    %s362 = sadd.s32 %s361, 1
    %p365 = scmp.eq.s32.totalorder %s23, 1
    %p366 = scmp.ne.s32.totalorder %s361, %s363
    %p367 = scmp.eq.s32.totalorder %s23, 0
    %p368 = por %p366, %p367
    %p369 = scmp.ne.s32.totalorder %s361, %s363
    %p370 = scmp.eq.s32.totalorder %s28, 1
    %p371 = por %p369, %p370
    %p372 = scmp.ne.s32.totalorder %s363, %s364
    %p373 = scmp.eq.s32.totalorder %s28, 0
    %p374 = por %p372, %p373
    %p375 = scmp.ne.s32.totalorder %s363, %s364
    %p376 = scmp.eq.s32.totalorder %s29, 1
    %p377 = por %p375, %p376
    %p379 = scmp.ne.s32.totalorder %s364, %s378
    %p380 = scmp.eq.s32.totalorder %s29, 0
    %p381 = por %p379, %p380
    %s383 = sadd.s32 %s382, 1
    %p386 = scmp.eq.s32.totalorder %s23, 1
    %p387 = scmp.ne.s32.totalorder %s382, %s384
    %p388 = scmp.eq.s32.totalorder %s23, 0
    %p389 = por %p387, %p388
    %p390 = scmp.ne.s32.totalorder %s382, %s384
    %p391 = scmp.eq.s32.totalorder %s28, 1
    %p392 = por %p390, %p391
    %p393 = scmp.ne.s32.totalorder %s384, %s385
    %p394 = scmp.eq.s32.totalorder %s28, 0
    %p395 = por %p393, %p394
    %p396 = scmp.ne.s32.totalorder %s384, %s385
    %p397 = scmp.eq.s32.totalorder %s29, 1
    %p398 = por %p396, %p397
    %p400 = scmp.ne.s32.totalorder %s385, %s399
    %p401 = scmp.eq.s32.totalorder %s29, 0
    %p402 = por %p400, %p401
    %s403 = ssub.s32 %s23, %s30
    %p404 = scmp.eq.s32.totalorder %s403, 0
    %s406 = sadd.s32 %s405, 1
    %s407 = scalar_select %p404, %s405, %s406
    %p410 = pneg %p404
    %p411 = scmp.eq.s32.totalorder %s23, 1
    %p412 = por %p410, %p411
    %p413 = scmp.ne.s32.totalorder %s405, %s408
    %p414 = scmp.eq.s32.totalorder %s23, 0
    %p415 = por %p413, %p414
    %p416 = scmp.ne.s32.totalorder %s405, %s408
    %p417 = scmp.eq.s32.totalorder %s28, 1
    %p418 = por %p416, %p417
    %p419 = scmp.ne.s32.totalorder %s408, %s409
    %p420 = scmp.eq.s32.totalorder %s28, 0
    %p421 = por %p419, %p420
    %p422 = scmp.ne.s32.totalorder %s408, %s409
    %p423 = scmp.eq.s32.totalorder %s29, 1
    %p424 = por %p422, %p423
    %p426 = scmp.ne.s32.totalorder %s409, %s425
    %p427 = scmp.eq.s32.totalorder %s29, 0
    %p428 = por %p426, %p427
    %p429 = scmp.le.s32.totalorder 1, %s23
    %p430 = scmp.lt.s32.totalorder %s23, 3
    %p431 = pnand %p429, %p430
    %p432 = pneg %p431
    // Predicated region
    $region9: #{_lambda_.4} parent=5 // pred_check
      _
    $region10: #{_lambda_.4} parent=5 // pred_check_branch
      %434 = sbr.rel (%p431) target = $region12
    $region11: #{_lambda_.4} parent=5 // pred_region
      %s435 = ssub.s32 %s23, 1
      // Predicated region
      $region13: #{_lambda_.4} parent=11 // pred_check
        %p436 = pneg %p122
      $region14: #{_lambda_.4} parent=11 // pred_check_branch
        %438 = sbr.rel (%p436) target = $region16
      $region15: #{_lambda_.4} parent=11 // pred_region
        _
      $region16: #{_lambda_.4} parent=11 // pred_fallthru
        _
      // Predicated region
      $region17: #{_lambda_.4} parent=11 // pred_check
        %p439 = pneg %p143
      $region18: #{_lambda_.4} parent=11 // pred_check_branch
        %441 = sbr.rel (%p439) target = $region20
      $region19: #{_lambda_.4} parent=11 // pred_region
        _
      $region20: #{_lambda_.4} parent=11 // pred_fallthru
        _
      // Predicated region
      $region21: #{_lambda_.4} parent=11 // pred_check
        %p442 = pneg %p164
      $region22: #{_lambda_.4} parent=11 // pred_check_branch
        %444 = sbr.rel (%p442) target = $region24
      $region23: #{_lambda_.4} parent=11 // pred_region
        _
      $region24: #{_lambda_.4} parent=11 // pred_fallthru
        _
      // Predicated region
      $region25: #{_lambda_.4} parent=11 // pred_check
        %p445 = pneg %p185
      $region26: #{_lambda_.4} parent=11 // pred_check_branch
        %447 = sbr.rel (%p445) target = $region28
      $region27: #{_lambda_.4} parent=11 // pred_region
        _
      $region28: #{_lambda_.4} parent=11 // pred_fallthru
        _
      // Predicated region
      $region29: #{_lambda_.4} parent=11 // pred_check
        %p448 = pneg %p206
      $region30: #{_lambda_.4} parent=11 // pred_check_branch
        %450 = sbr.rel (%p448) target = $region32
      $region31: #{_lambda_.4} parent=11 // pred_region
        _
      $region32: #{_lambda_.4} parent=11 // pred_fallthru
        _
      // Predicated region
      $region33: #{_lambda_.4} parent=11 // pred_check
        %p451 = pneg %p227
      $region34: #{_lambda_.4} parent=11 // pred_check_branch
        %453 = sbr.rel (%p451) target = $region36
      $region35: #{_lambda_.4} parent=11 // pred_region
        _
      $region36: #{_lambda_.4} parent=11 // pred_fallthru
        _
      // Predicated region
      $region37: #{_lambda_.4} parent=11 // pred_check
        %p454 = pneg %p248
      $region38: #{_lambda_.4} parent=11 // pred_check_branch
        %456 = sbr.rel (%p454) target = $region40
      $region39: #{_lambda_.4} parent=11 // pred_region
        _
      $region40: #{_lambda_.4} parent=11 // pred_fallthru
        _
      // Predicated region
      $region41: #{_lambda_.4} parent=11 // pred_check
        %p457 = pneg %p269
      $region42: #{_lambda_.4} parent=11 // pred_check_branch
        %459 = sbr.rel (%p457) target = $region44
      $region43: #{_lambda_.4} parent=11 // pred_region
        _
      $region44: #{_lambda_.4} parent=11 // pred_fallthru
        _
      // Predicated region
      $region45: #{_lambda_.4} parent=11 // pred_check
        %p460 = pneg %p290
      $region46: #{_lambda_.4} parent=11 // pred_check_branch
        %462 = sbr.rel (%p460) target = $region48
      $region47: #{_lambda_.4} parent=11 // pred_region
        _
      $region48: #{_lambda_.4} parent=11 // pred_fallthru
        _
      // Predicated region
      $region49: #{_lambda_.4} parent=11 // pred_check
        %p463 = pneg %p311
      $region50: #{_lambda_.4} parent=11 // pred_check_branch
        %465 = sbr.rel (%p463) target = $region52
      $region51: #{_lambda_.4} parent=11 // pred_region
        _
      $region52: #{_lambda_.4} parent=11 // pred_fallthru
        _
      // Predicated region
      $region53: #{_lambda_.4} parent=11 // pred_check
        %p466 = pneg %p332
      $region54: #{_lambda_.4} parent=11 // pred_check_branch
        %468 = sbr.rel (%p466) target = $region56
      $region55: #{_lambda_.4} parent=11 // pred_region
        _
      $region56: #{_lambda_.4} parent=11 // pred_fallthru
        _
      // Predicated region
      $region57: #{_lambda_.4} parent=11 // pred_check
        %p469 = pneg %p353
      $region58: #{_lambda_.4} parent=11 // pred_check_branch
        %471 = sbr.rel (%p469) target = $region60
      $region59: #{_lambda_.4} parent=11 // pred_region
        _
      $region60: #{_lambda_.4} parent=11 // pred_fallthru
        _
      // Predicated region
      $region61: #{_lambda_.4} parent=11 // pred_check
        %p472 = pneg %p374
      $region62: #{_lambda_.4} parent=11 // pred_check_branch
        %474 = sbr.rel (%p472) target = $region64
      $region63: #{_lambda_.4} parent=11 // pred_region
        _
      $region64: #{_lambda_.4} parent=11 // pred_fallthru
        _
      // Predicated region
      $region65: #{_lambda_.4} parent=11 // pred_check
        %p475 = pneg %p395
      $region66: #{_lambda_.4} parent=11 // pred_check_branch
        %477 = sbr.rel (%p475) target = $region68
      $region67: #{_lambda_.4} parent=11 // pred_region
        _
      $region68: #{_lambda_.4} parent=11 // pred_fallthru
        _
    $region12: #{_lambda_.4} parent=5 // pred_fallthru
      _
    %p478 = scmp.lt.s32.totalorder %s23, 2
    // Predicated region
    $region69: #{_lambda_.4} parent=5 // pred_check
      %p479 = pneg %p478
    $region70: #{_lambda_.4} parent=5 // pred_check_branch
      %481 = sbr.rel (%p479) target = $region72
    $region71: #{_lambda_.4} parent=5 // pred_region
      // Predicated region
      $region73: #{_lambda_.4} parent=71 // pred_check
        %p482 = pneg %p43
      $region74: #{_lambda_.4} parent=71 // pred_check_branch
        %484 = sbr.rel (%p482) target = $region76
      $region75: #{_lambda_.4} parent=71 // pred_region
        %p485 = scmp.lt.s32.totalorder %s23, 1
        %s486 = scalar_select %p485, %s23, 1
        %s487 = smul.addr %s486, 8
        %s488 = scalar_lea.vmem %s0, %s487
      $region76: #{_lambda_.4} parent=71 // pred_fallthru
        _
      // Predicated region
      $region77: #{_lambda_.4} parent=71 // pred_check
        %p489 = pneg %p69
      $region78: #{_lambda_.4} parent=71 // pred_check_branch
        %491 = sbr.rel (%p489) target = $region80
      $region79: #{_lambda_.4} parent=71 // pred_region
        %p492 = scmp.lt.s32.totalorder %s23, 1
        %s493 = scalar_select %p492, %s23, 1
        %s494 = smul.addr %s493, 8
        %s495 = scalar_lea.vmem %s1, %s494
      $region80: #{_lambda_.4} parent=71 // pred_fallthru
        _
      // Predicated region
      $region81: #{_lambda_.4} parent=71 // pred_check
        %p496 = pneg %p95
      $region82: #{_lambda_.4} parent=71 // pred_check_branch
        %498 = sbr.rel (%p496) target = $region84
      $region83: #{_lambda_.4} parent=71 // pred_region
        %p499 = scmp.lt.s32.totalorder %s23, 1
        %s500 = scalar_select %p499, %s23, 1
        %s501 = smul.addr %s500, 2
        %s502 = smul.addr %s501, 8
        %s503 = scalar_lea.vmem %s2, %s502
      $region84: #{_lambda_.4} parent=71 // pred_fallthru
        _
    $region72: #{_lambda_.4} parent=5 // pred_fallthru
      _
    %p504 = scmp.le.s32.totalorder 1, %s23
    %p505 = scmp.lt.s32.totalorder %s23, 3
    %p506 = pnand %p504, %p505
    %p507 = pneg %p506
    // Predicated region
    $region85: #{_lambda_.4} parent=5 // pred_check
      _
    $region86: #{_lambda_.4} parent=5 // pred_check_branch
      %509 = sbr.rel (%p506) target = $region88
    $region87: #{_lambda_.4} parent=5 // pred_region
      %s510 = ssub.s32 %s23, 1
      %p511 = scmp.lt.s32.totalorder %s28, 1
      %s512 = scalar_select %p511, %s28, 1
      %s513 = smul.addr %s512, 8
      %s514 = scalar_lea.vmem %s0, %s513
      %p515 = pneg %p49
      %p516 = pneg %p46
      %p517 = scmp.lt.s32.totalorder %s28, 1
      %s518 = scalar_select %p517, %s28, 1
      %s519 = smul.addr %s518, 8
      %s520 = scalar_lea.vmem %s1, %s519
      %p521 = pneg %p75
      %p522 = pneg %p72
      %p523 = scmp.lt.s32.totalorder %s28, 1
      %s524 = scalar_select %p523, %s28, 1
      %s525 = smul.addr %s524, 2
      %s526 = smul.addr %s525, 8
      %s527 = scalar_lea.vmem %s2, %s526
      %p528 = pneg %p101
      %p529 = pneg %p98
      %p530 = pneg %p122
      %p531 = pneg %p119
      %p532 = pneg %p143
      %p533 = pneg %p140
      %p534 = pneg %p164
      %p535 = pneg %p161
      %p536 = pneg %p185
      %p537 = pneg %p182
      %p538 = pneg %p206
      %p539 = pneg %p203
      %p540 = pneg %p227
      %p541 = pneg %p224
      %p542 = pneg %p248
      %p543 = pneg %p245
      %p544 = pneg %p269
      %p545 = pneg %p266
      %p546 = pneg %p290
      %p547 = pneg %p287
      %p548 = pneg %p311
      %p549 = pneg %p308
      %p550 = pneg %p332
      %p551 = pneg %p329
      %p552 = pneg %p353
      %p553 = pneg %p350
      %p554 = pneg %p374
      %p555 = pneg %p371
      %p556 = pneg %p395
      %p557 = pneg %p392
      %p558 = pneg %p421
      %p559 = pneg %p418
      %p560 = scmp.lt.s32.totalorder %s28, 1
      %s561 = scalar_select %p560, %s28, 1
      %s562 = smul.addr %s561, 2
      %s563 = smul.addr %s562, 8
      %s564 = scalar_lea.vmem %s17, %s563
      %p565 = scmp.lt.s32.totalorder %s28, 1
      %s566 = scalar_select %p565, %s28, 1
      %s567 = smul.addr %s566, 8
      %s568 = scalar_lea.vmem %s0, %s567
      %p569 = scmp.lt.s32.totalorder %s28, 1
      %s570 = scalar_select %p569, %s28, 1
      %s571 = smul.addr %s570, 8
      %s572 = scalar_lea.vmem %s1, %s571
      %p573 = scmp.lt.s32.totalorder %s28, 1
      %s574 = scalar_select %p573, %s28, 1
      %s575 = smul.addr %s574, 2
      %s576 = smul.addr %s575, 8
      %s577 = scalar_lea.vmem %s2, %s576
      %p578 = scmp.lt.s32.totalorder %s28, 1
      %s579 = scalar_select %p578, %s28, 1
      %s580 = smul.addr %s579, 2
      %s581 = smul.addr %s580, 8
      %s582 = scalar_lea.vmem %s17, %s581
      %v584 = vld [vmem:[%s15] sm:$0x1]
      %v585 = vld [vmem:[%s16] sm:$0x1]
      %v586 = vld [vmem:[%s568] sm:$0xff]
      %v587 = vld [vmem:[%s3] sm:$0x1]
      %v588 = vld [vmem:[%s4] sm:$0x1]
      %vm589 = vcmask 261120
      %v590 = vsel %vm589, %v586, 0.0
      %591 = vadd.xlane.f32.xlu0 %v590
      %v592 = vpop.xlane.xlu0 %591
      %v593 = vrcp.pop 32.0
      %v594 = vmul.f32 %v592, %v593
      %v595 = vsub.f32 %v586, %v594
      %v596 = vmul.f32 %v595, %v595
      %v597 = vsel %vm589, %v596, 0.0
      %598 = vadd.xlane.f32.xlu0 %v597
      %v599 = vpop.xlane.xlu0 %598
      %v600 = vmul.f32 %v599, %v593
      %v601 = vadd.f32 %v600, 1e-12
      %v602 = vrsqrt.pop %v601
      %v603 = vmul.f32 %v595, %v602
      %v605 = vlaneseq
      %v606 = vshrl.u32 %v605, 7
      %v607 = vsub.s32 0, %v606
      %v608 = vrot.slane %v587, %v607
      %v610 = vmul.f32 %v603, %v608
      %v612 = vlaneseq
      %v613 = vshrl.u32 %v612, 7
      %v614 = vsub.s32 0, %v613
      %v615 = vrot.slane %v588, %v614
      %v617 = vadd.f32 %v610, %v615
      %v618 = vpack.c.bf16 %v617, %v617
      %v619 = vld [vmem:[%s5] sm:$0xf]
      %v620 = vld [vmem:[%s5 + $0x4] sm:$0xf]
      %v621 = vld [vmem:[%s5 + $0x8] sm:$0xf]
      %v622 = vld [vmem:[%s5 + $0xc] sm:$0xf]
      %v623 = vld [vmem:[%s6] sm:$0x1]
      %v625 = vlaneseq
      %v626 = vshrl.u32 %v625, 7
      %v627 = vsub.s32 0, %v626
      %v628 = vrot.slane %v623, %v627
      %v634 = vunpack.c.l.b16 %v619
      %v635 = vunpack.c.l.b16 %v620
      %v636 = vunpack.c.l.b16 %v621
      %v637 = vunpack.c.l.b16 %v622
      %v638 = vpack.c.b16 %v635, %v634
      %v639 = vpack.c.b16 %v637, %v636
      %v643 = vsel %vm589, %v618, 0
      %645 = vmatprep.subr.bf16.mxu0 0
      %646 = vmatpush1.bf16.msra.mxu0 0
      %647 = vmatprep.subr.bf16.mxu0 0
      %648 = vmatpush1.bf16.msra.mxu0 0
      %649 = vmatprep.subr.bf16.mxu0 0
      %650 = vmatpush1.bf16.msra.mxu0 0
      %651 = vmatprep.subr.bf16.mxu0 0
      %652 = vmatpush1.bf16.msra.mxu0 0
      %653 = vmatprep.subr.bf16.mxu0 0
      %654 = vmatpush1.bf16.msra.mxu0 0
      %655 = vmatprep.subr.bf16.mxu0 0
      %656 = vmatpush1.bf16.msra.mxu0 0
      %657 = vmatprep.subr.bf16.mxu0 0
      %658 = vmatpush1.bf16.msra.mxu0 %v639
      %659 = vmatprep.subr.bf16.mxu0 0
      %660 = vmatpush1.bf16.msra.mxu0 %v638
      %661 = vmatprep.subr.bf16.mxu0 0
      %662 = vmatpush2.bf16.msra.mxu0 0
      %663 = vmatprep.subr.bf16.mxu0 0
      %664 = vmatpush2.bf16.msra.mxu0 0
      %665 = vmatprep.subr.bf16.mxu0 0
      %666 = vmatpush2.bf16.msra.mxu0 0
      %667 = vmatprep.subr.bf16.mxu0 0
      %668 = vmatpush2.bf16.msra.mxu0 0
      %669 = vmatprep.subr.bf16.mxu0 0
      %670 = vmatpush2.bf16.msra.mxu0 0
      %671 = vmatprep.subr.bf16.mxu0 0
      %672 = vmatpush2.bf16.msra.mxu0 0
      %673 = vmatprep.subr.bf16.mxu0 0
      %674 = vmatpush2.bf16.msra.mxu0 0
      %675 = vmatprep.subr.bf16.mxu0 0
      %676 = vmatpush2.bf16.msra.mxu0 0
      %677 = vmatprep.mubr.bf16.mxu0 0
      %678 = vmatmul.mubr.bf16.gmra.mxu0 %v643
      %v679 = vpop.f32.mrf.mxu0
      %v680 = vadd.f32 %v628, %v679
      %v681 = vpop.f32.mrf.mxu0
      %v682 = vpop.f32.mrf.mxu0
      %v683 = vpop.f32.mrf.mxu0
      %684 = vdwg.mxu0
      %v685 = vmax.f32 %v680, 0.0
      %v686 = vld [vmem:[%s7] sm:$0x1]
      %v687 = vld [vmem:[%s8] sm:$0x1]
      %v688 = vsel %vm589, %v685, 0.0
      %689 = vadd.xlane.f32.xlu0 %v688
      %v690 = vpop.xlane.xlu0 %689
      %v691 = vmul.f32 %v690, %v593
      %v692 = vsub.f32 %v685, %v691
      %v693 = vmul.f32 %v692, %v692
      %v694 = vsel %vm589, %v693, 0.0
      %695 = vadd.xlane.f32.xlu0 %v694
      %v696 = vpop.xlane.xlu0 %695
      %v697 = vmul.f32 %v696, %v593
      %v698 = vadd.f32 %v697, 1e-12
      %v699 = vrsqrt.pop %v698
      %v700 = vmul.f32 %v692, %v699
      %v702 = vlaneseq
      %v703 = vshrl.u32 %v702, 7
      %v704 = vsub.s32 0, %v703
      %v705 = vrot.slane %v686, %v704
      %v707 = vmul.f32 %v700, %v705
      %v709 = vlaneseq
      %v710 = vshrl.u32 %v709, 7
      %v711 = vsub.s32 0, %v710
      %v712 = vrot.slane %v687, %v711
      %v714 = vadd.f32 %v707, %v712
      %v715 = vld [vmem:[%s572] sm:$0x3f]
      %v716 = vld [vmem:[%s9] sm:$0x1]
      %v717 = vld [vmem:[%s10] sm:$0x1]
      %vm718 = vcmask 521216
      %v719 = vsel %vm718, %v715, 0.0
      %720 = vadd.xlane.f32.xlu0 %v719
      %v721 = vpop.xlane.xlu0 %720
      %v722 = vrcp.pop 64.0
      %v723 = vmul.f32 %v721, %v722
      %v724 = vsub.f32 %v715, %v723
      %v725 = vmul.f32 %v724, %v724
      %v726 = vsel %vm718, %v725, 0.0
      %727 = vadd.xlane.f32.xlu0 %v726
      %v728 = vpop.xlane.xlu0 %727
      %v729 = vmul.f32 %v728, %v722
      %v730 = vadd.f32 %v729, 1e-12
      %v731 = vrsqrt.pop %v730
      %v732 = vmul.f32 %v724, %v731
      %v734 = vlaneseq
      %v735 = vshrl.u32 %v734, 7
      %v736 = vsub.s32 0, %v735
      %v737 = vrot.slane %v716, %v736
      %v739 = vmul.f32 %v732, %v737
      %v741 = vlaneseq
      %v742 = vshrl.u32 %v741, 7
      %v743 = vsub.s32 0, %v742
      %v744 = vrot.slane %v717, %v743
      %v746 = vadd.f32 %v739, %v744
      %v747 = vpack.c.bf16 %v746, %v746
      %v748 = vld [vmem:[%s11] sm:$0xf]
      %v749 = vld [vmem:[%s11 + $0x4] sm:$0xf]
      %v750 = vld [vmem:[%s11 + $0x8] sm:$0xf]
      %v751 = vld [vmem:[%s11 + $0xc] sm:$0xf]
      %v752 = vld [vmem:[%s11 + $0x10] sm:$0xf]
      %v753 = vld [vmem:[%s11 + $0x14] sm:$0xf]
      %v754 = vld [vmem:[%s11 + $0x18] sm:$0xf]
      %v755 = vld [vmem:[%s11 + $0x1c] sm:$0xf]
      %v756 = vld [vmem:[%s12] sm:$0x1]
      %v758 = vlaneseq
      %v759 = vshrl.u32 %v758, 7
      %v760 = vsub.s32 0, %v759
      %v761 = vrot.slane %v756, %v760
      %v771 = vunpack.c.l.b16 %v748
      %v772 = vunpack.c.l.b16 %v749
      %v773 = vunpack.c.l.b16 %v750
      %v774 = vunpack.c.l.b16 %v751
      %v775 = vunpack.c.l.b16 %v752
      %v776 = vunpack.c.l.b16 %v753
      %v777 = vunpack.c.l.b16 %v754
      %v778 = vunpack.c.l.b16 %v755
      %v779 = vpack.c.b16 %v772, %v771
      %v780 = vpack.c.b16 %v774, %v773
      %v781 = vpack.c.b16 %v776, %v775
      %v782 = vpack.c.b16 %v778, %v777
      %vm787 = vcmask 523264
      %v789 = vsel %vm787, %v747, 0
      %791 = vmatprep.subr.bf16.mxu0 0
      %792 = vmatpush1.bf16.msra.mxu0 0
      %793 = vmatprep.subr.bf16.mxu0 0
      %794 = vmatpush1.bf16.msra.mxu0 0
      %795 = vmatprep.subr.bf16.mxu0 0
      %796 = vmatpush1.bf16.msra.mxu0 0
      %797 = vmatprep.subr.bf16.mxu0 0
      %798 = vmatpush1.bf16.msra.mxu0 0
      %799 = vmatprep.subr.bf16.mxu0 0
      %800 = vmatpush1.bf16.msra.mxu0 %v782
      %801 = vmatprep.subr.bf16.mxu0 0
      %802 = vmatpush1.bf16.msra.mxu0 %v781
      %803 = vmatprep.subr.bf16.mxu0 0
      %804 = vmatpush1.bf16.msra.mxu0 %v780
      %805 = vmatprep.subr.bf16.mxu0 0
      %806 = vmatpush1.bf16.msra.mxu0 %v779
      %807 = vmatprep.subr.bf16.mxu0 0
      %808 = vmatpush2.bf16.msra.mxu0 0
      %809 = vmatprep.subr.bf16.mxu0 0
      %810 = vmatpush2.bf16.msra.mxu0 0
      %811 = vmatprep.subr.bf16.mxu0 0
      %812 = vmatpush2.bf16.msra.mxu0 0
      %813 = vmatprep.subr.bf16.mxu0 0
      %814 = vmatpush2.bf16.msra.mxu0 0
      %815 = vmatprep.subr.bf16.mxu0 0
      %816 = vmatpush2.bf16.msra.mxu0 0
      %817 = vmatprep.subr.bf16.mxu0 0
      %818 = vmatpush2.bf16.msra.mxu0 0
      %819 = vmatprep.subr.bf16.mxu0 0
      %820 = vmatpush2.bf16.msra.mxu0 0
      %821 = vmatprep.subr.bf16.mxu0 0
      %822 = vmatpush2.bf16.msra.mxu0 0
      %823 = vmatprep.mubr.bf16.mxu0 0
      %824 = vmatmul.mubr.bf16.gmra.mxu0 %v789
      %v825 = vpop.f32.mrf.mxu0
      %v826 = vadd.f32 %v761, %v825
      %v827 = vpop.f32.mrf.mxu0
      %v828 = vpop.f32.mrf.mxu0
      %v829 = vpop.f32.mrf.mxu0
      %830 = vdwg.mxu0
      %v831 = vmax.f32 %v826, 0.0
      %v832 = vld [vmem:[%s13] sm:$0x1]
      %v833 = vld [vmem:[%s14] sm:$0x1]
      %vm834 = vcmask 259072
      %v835 = vsel %vm834, %v831, 0.0
      %836 = vadd.xlane.f32.xlu0 %v835
      %v837 = vpop.xlane.xlu0 %836
      %v838 = vmul.f32 %v837, %v593
      %v839 = vsub.f32 %v831, %v838
      %v840 = vmul.f32 %v839, %v839
      %v841 = vsel %vm834, %v840, 0.0
      %842 = vadd.xlane.f32.xlu0 %v841
      %v843 = vpop.xlane.xlu0 %842
      %v844 = vmul.f32 %v843, %v593
      %v845 = vadd.f32 %v844, 1e-12
      %v846 = vrsqrt.pop %v845
      %v847 = vmul.f32 %v839, %v846
      %v849 = vlaneseq
      %v850 = vshrl.u32 %v849, 7
      %v851 = vsub.s32 0, %v850
      %v852 = vrot.slane %v832, %v851
      %v854 = vmul.f32 %v847, %v852
      %v856 = vlaneseq
      %v857 = vshrl.u32 %v856, 7
      %v858 = vsub.s32 0, %v857
      %v859 = vrot.slane %v833, %v858
      %v861 = vadd.f32 %v854, %v859
      %v862 = vld [vmem:[%s577] sm:$0xff]
      %v863 = vld [vmem:[%s577 + $0x8] sm:$0x3f]
      %v864 = vadd.f32 %v861, %v862
      %v865 = vsel %vm834, %v864, 0.0
      %866 = vadd.xlane.f32.xlu0 %v865
      %v867 = vpop.xlane.xlu0 %866
      %v868 = vmul.f32 %v867, %v593
      %v869 = vsub.f32 %v864, %v868
      %v870 = vmul.f32 %v869, %v869
      %v871 = vsel %vm834, %v870, 0.0
      %872 = vadd.xlane.f32.xlu0 %v871
      %v873 = vpop.xlane.xlu0 %872
      %v874 = vmul.f32 %v873, %v593
      %v875 = vadd.f32 %v874, 1e-12
      %v876 = vrsqrt.pop %v875
      %v877 = vmul.f32 %v869, %v876
      %v879 = vlaneseq
      %v880 = vshrl.u32 %v879, 7
      %v881 = vsub.s32 0, %v880
      %v882 = vrot.slane %v584, %v881
      %v884 = vmul.f32 %v877, %v882
      %v886 = vlaneseq
      %v887 = vshrl.u32 %v886, 7
      %v888 = vsub.s32 0, %v887
      %v889 = vrot.slane %v585, %v888
      %v891 = vadd.f32 %v884, %v889
      %892 = vst.msk [vmem:[%s582] sm:$0x3f] %vm834, %v891
      %vm895 = vcmask 1041408
      %v896 = vrot.slane %v862, 6
      %v897 = vrot.slane %v863, 6
      %v898 = vsel %vm895, %v896, %v897
      %v900 = vadd.f32 %v714, %v898
      %v901 = vsel %vm589, %v900, 0.0
      %902 = vadd.xlane.f32.xlu0 %v901
      %v903 = vpop.xlane.xlu0 %902
      %v904 = vmul.f32 %v903, %v593
      %v905 = vsub.f32 %v900, %v904
      %v906 = vmul.f32 %v905, %v905
      %v907 = vsel %vm589, %v906, 0.0
      %908 = vadd.xlane.f32.xlu0 %v907
      %v909 = vpop.xlane.xlu0 %908
      %v910 = vmul.f32 %v909, %v593
      %v911 = vadd.f32 %v910, 1e-12
      %v912 = vrsqrt.pop %v911
      %v913 = vmul.f32 %v905, %v912
      %v914 = vmul.f32 %v913, %v882
      %v915 = vadd.f32 %v914, %v889
      %916 = vst.msk [vmem:[%s582 + $0x6] sm:$0xff] %vm589, %v915
      %p917 = scmp.lt.s32.totalorder %s28, 1
      %s918 = scalar_select %p917, %s28, 1
      %s919 = smul.addr %s918, 2
      %s920 = smul.addr %s919, 8
      %s921 = scalar_lea.vmem %s17, %s920
      // Predicated region
      $region89: #{_lambda_.4} parent=87 // pred_check
        %p922 = pneg %p418
      $region90: #{_lambda_.4} parent=87 // pred_check_branch
        %924 = sbr.rel (%p922) target = $region92
      $region91: #{_lambda_.4} parent=87 // pred_region
        _
      $region92: #{_lambda_.4} parent=87 // pred_fallthru
        _
    $region88: #{_lambda_.4} parent=5 // pred_fallthru
      _
    %p925 = scmp.le.s32.totalorder 2, %s23
    // Predicated region
    $region93: #{_lambda_.4} parent=5 // pred_check
      %p926 = pneg %p925
    $region94: #{_lambda_.4} parent=5 // pred_check_branch
      %928 = sbr.rel (%p926) target = $region96
    $region95: #{_lambda_.4} parent=5 // pred_region
      %s929 = ssub.s32 %s23, 2
      // Predicated region
      $region97: #{_lambda_.4} parent=95 // pred_check
        %p930 = pneg %p424
      $region98: #{_lambda_.4} parent=95 // pred_check_branch
        %932 = sbr.rel (%p930) target = $region100
      $region99: #{_lambda_.4} parent=95 // pred_region
        %p933 = scmp.lt.s32.totalorder %s29, 1
        %s934 = scalar_select %p933, %s29, 1
        %s935 = smul.addr %s934, 2
        %s936 = smul.addr %s935, 8
        %s937 = scalar_lea.vmem %s17, %s936
      $region100: #{_lambda_.4} parent=95 // pred_fallthru
        _
    $region96: #{_lambda_.4} parent=5 // pred_fallthru
      _
  $region6: #{_lambda_.4} parent=0 // loop_footer
    %s27 = sadd.s32 1, %s23
  $region7: #{_lambda_.4} parent=0 // loop_footer_branch
    %22 = sbr.rel target = $region3
  $region8: #{_lambda_.4} parent=0 // loop_exit
    _

// kernel: _lambda_.5
$region0: #{_lambda_.5}
  #allocation0 [shape = 'u32[]', space=smem, size = 0x4, offset = 0x4, fixed_abs, tag = 'smem constant byte address 0x4 - core index']
  #allocation1 [shape = 'u32[144,128]{1,0:T(1,128)}', space=vmem, size = 0x12000, scoped, tag = 'internal scratch']
  %s0 = inlined_call_operand.vmem [shape: f32[2,14,32], index: 0, kind: input, shape index: {}]
  %s1 = inlined_call_operand.vmem [shape: f32[2,14,14], index: 1, kind: input, shape index: {}]
  %s2 = inlined_call_operand.vmem [shape: bf16[32,96], index: 2, kind: input, shape index: {}]
  %s3 = inlined_call_operand.vmem [shape: f32[1,96], index: 3, kind: input, shape index: {}]
  %s4 = inlined_call_operand.vmem [shape: bf16[8,4,32], index: 4, kind: input, shape index: {}]
  %s5 = inlined_call_operand.vmem [shape: f32[1,32], index: 5, kind: input, shape index: {}]
  %s6 = inlined_call_operand.vmem [shape: f32[1,32], index: 6, kind: input, shape index: {}]
  %s7 = inlined_call_operand.vmem [shape: f32[1,32], index: 7, kind: input, shape index: {}]
  %s8 = inlined_call_operand.vmem [shape: bf16[32,32], index: 8, kind: input, shape index: {}]
  %s9 = inlined_call_operand.vmem [shape: f32[1,32], index: 9, kind: input, shape index: {}]
  %s10 = inlined_call_operand.vmem [shape: bf16[32,32], index: 10, kind: input, shape index: {}]
  %s11 = inlined_call_operand.vmem [shape: f32[1,32], index: 11, kind: input, shape index: {}]
  %s12 = inlined_call_operand.vmem [shape: f32[1,32], index: 12, kind: input, shape index: {}]
  %s13 = inlined_call_operand.vmem [shape: f32[1,32], index: 13, kind: input, shape index: {}]
  %s14 = inlined_call_operand.vmem [shape: f32[2,14,32], index: 14, kind: output, shape index: {}]
  %s15 = sld [smem:[#allocation0]]
  $region89: #{_lambda_.5} parent=0
    _
  %s17 = ssub.s32 1, %s15
  %s18 = scalar_select 0, %s17, %s15
  loop: start=0, step=1, limit=4
  $region2: #{_lambda_.5} parent=0 // loop_pre_header
    _
  $region3: #{_lambda_.5} parent=0 // loop_header
    %s20 = sphi 0, %s24
    %p21 = scmp.ge.s32.totalorder %s20, 4
    %s30 = sphi 0, %s32
    %s33 = sphi 0, %s30
    %s34 = sphi 0, %s33
    %s50 = sphi 0, %s34
    %s56 = sphi 0, %s58
    %s59 = sphi 0, %s56
    %s60 = sphi 0, %s59
    %s76 = sphi 0, %s60
    %s80 = sphi 0, %s80
    %s82 = sphi 0, %s80
    %s83 = sphi 0, %s82
    %s97 = sphi 0, %s83
    %s101 = sphi 0, %s101
    %s103 = sphi 0, %s101
    %s104 = sphi 0, %s103
    %s118 = sphi 0, %s104
    %s122 = sphi 0, %s122
    %s124 = sphi 0, %s122
    %s125 = sphi 0, %s124
    %s139 = sphi 0, %s125
    %s143 = sphi 0, %s143
    %s145 = sphi 0, %s143
    %s146 = sphi 0, %s145
    %s160 = sphi 0, %s146
    %s164 = sphi 0, %s164
    %s166 = sphi 0, %s164
    %s167 = sphi 0, %s166
    %s181 = sphi 0, %s167
    %s185 = sphi 0, %s185
    %s187 = sphi 0, %s185
    %s188 = sphi 0, %s187
    %s202 = sphi 0, %s188
    %s206 = sphi 0, %s206
    %s208 = sphi 0, %s206
    %s209 = sphi 0, %s208
    %s223 = sphi 0, %s209
    %s227 = sphi 0, %s227
    %s229 = sphi 0, %s227
    %s230 = sphi 0, %s229
    %s244 = sphi 0, %s230
    %s248 = sphi 0, %s248
    %s250 = sphi 0, %s248
    %s251 = sphi 0, %s250
    %s265 = sphi 0, %s251
    %s269 = sphi 0, %s269
    %s271 = sphi 0, %s269
    %s272 = sphi 0, %s271
    %s286 = sphi 0, %s272
    %s290 = sphi 0, %s290
    %s292 = sphi 0, %s290
    %s293 = sphi 0, %s292
    %s307 = sphi 0, %s293
    %s311 = sphi 0, %s311
    %s313 = sphi 0, %s311
    %s314 = sphi 0, %s313
    %s328 = sphi 0, %s314
    %s334 = sphi 0, %s336
    %s337 = sphi 0, %s334
    %s338 = sphi 0, %s337
    %s354 = sphi 0, %s338
  $region4: #{_lambda_.5} parent=0 // loop_header_branch
    %23 = sbr.rel (%p21) target = $region8
  $region5: #{_lambda_.5} parent=0 // loop_body
    %s25 = ssub.s32 %s20, 1
    %s26 = ssub.s32 %s20, 2
    %s27 = sadd.s32 %s20, 1
    %s28 = ssub.s32 %s20, %s27
    %p29 = scmp.eq.s32.totalorder %s28, 0
    %s31 = sadd.s32 %s30, 1
    %s32 = scalar_select %p29, %s30, %s31
    %p35 = pneg %p29
    %p36 = scmp.eq.s32.totalorder %s20, 1
    %p37 = por %p35, %p36
    %p38 = scmp.ne.s32.totalorder %s30, %s33
    %p39 = scmp.eq.s32.totalorder %s20, 0
    %p40 = por %p38, %p39
    %p41 = scmp.ne.s32.totalorder %s30, %s33
    %p42 = scmp.eq.s32.totalorder %s25, 1
    %p43 = por %p41, %p42
    %p44 = scmp.ne.s32.totalorder %s33, %s34
    %p45 = scmp.eq.s32.totalorder %s25, 0
    %p46 = por %p44, %p45
    %p47 = scmp.ne.s32.totalorder %s33, %s34
    %p48 = scmp.eq.s32.totalorder %s26, 1
    %p49 = por %p47, %p48
    %p51 = scmp.ne.s32.totalorder %s34, %s50
    %p52 = scmp.eq.s32.totalorder %s26, 0
    %p53 = por %p51, %p52
    %s54 = ssub.s32 %s20, %s27
    %p55 = scmp.eq.s32.totalorder %s54, 0
    %s57 = sadd.s32 %s56, 1
    %s58 = scalar_select %p55, %s56, %s57
    %p61 = pneg %p55
    %p62 = scmp.eq.s32.totalorder %s20, 1
    %p63 = por %p61, %p62
    %p64 = scmp.ne.s32.totalorder %s56, %s59
    %p65 = scmp.eq.s32.totalorder %s20, 0
    %p66 = por %p64, %p65
    %p67 = scmp.ne.s32.totalorder %s56, %s59
    %p68 = scmp.eq.s32.totalorder %s25, 1
    %p69 = por %p67, %p68
    %p70 = scmp.ne.s32.totalorder %s59, %s60
    %p71 = scmp.eq.s32.totalorder %s25, 0
    %p72 = por %p70, %p71
    %p73 = scmp.ne.s32.totalorder %s59, %s60
    %p74 = scmp.eq.s32.totalorder %s26, 1
    %p75 = por %p73, %p74
    %p77 = scmp.ne.s32.totalorder %s60, %s76
    %p78 = scmp.eq.s32.totalorder %s26, 0
    %p79 = por %p77, %p78
    %s81 = sadd.s32 %s80, 1
    %p84 = scmp.eq.s32.totalorder %s20, 1
    %p85 = scmp.ne.s32.totalorder %s80, %s82
    %p86 = scmp.eq.s32.totalorder %s20, 0
    %p87 = por %p85, %p86
    %p88 = scmp.ne.s32.totalorder %s80, %s82
    %p89 = scmp.eq.s32.totalorder %s25, 1
    %p90 = por %p88, %p89
    %p91 = scmp.ne.s32.totalorder %s82, %s83
    %p92 = scmp.eq.s32.totalorder %s25, 0
    %p93 = por %p91, %p92
    %p94 = scmp.ne.s32.totalorder %s82, %s83
    %p95 = scmp.eq.s32.totalorder %s26, 1
    %p96 = por %p94, %p95
    %p98 = scmp.ne.s32.totalorder %s83, %s97
    %p99 = scmp.eq.s32.totalorder %s26, 0
    %p100 = por %p98, %p99
    %s102 = sadd.s32 %s101, 1
    %p105 = scmp.eq.s32.totalorder %s20, 1
    %p106 = scmp.ne.s32.totalorder %s101, %s103
    %p107 = scmp.eq.s32.totalorder %s20, 0
    %p108 = por %p106, %p107
    %p109 = scmp.ne.s32.totalorder %s101, %s103
    %p110 = scmp.eq.s32.totalorder %s25, 1
    %p111 = por %p109, %p110
    %p112 = scmp.ne.s32.totalorder %s103, %s104
    %p113 = scmp.eq.s32.totalorder %s25, 0
    %p114 = por %p112, %p113
    %p115 = scmp.ne.s32.totalorder %s103, %s104
    %p116 = scmp.eq.s32.totalorder %s26, 1
    %p117 = por %p115, %p116
    %p119 = scmp.ne.s32.totalorder %s104, %s118
    %p120 = scmp.eq.s32.totalorder %s26, 0
    %p121 = por %p119, %p120
    %s123 = sadd.s32 %s122, 1
    %p126 = scmp.eq.s32.totalorder %s20, 1
    %p127 = scmp.ne.s32.totalorder %s122, %s124
    %p128 = scmp.eq.s32.totalorder %s20, 0
    %p129 = por %p127, %p128
    %p130 = scmp.ne.s32.totalorder %s122, %s124
    %p131 = scmp.eq.s32.totalorder %s25, 1
    %p132 = por %p130, %p131
    %p133 = scmp.ne.s32.totalorder %s124, %s125
    %p134 = scmp.eq.s32.totalorder %s25, 0
    %p135 = por %p133, %p134
    %p136 = scmp.ne.s32.totalorder %s124, %s125
    %p137 = scmp.eq.s32.totalorder %s26, 1
    %p138 = por %p136, %p137
    %p140 = scmp.ne.s32.totalorder %s125, %s139
    %p141 = scmp.eq.s32.totalorder %s26, 0
    %p142 = por %p140, %p141
    %s144 = sadd.s32 %s143, 1
    %p147 = scmp.eq.s32.totalorder %s20, 1
    %p148 = scmp.ne.s32.totalorder %s143, %s145
    %p149 = scmp.eq.s32.totalorder %s20, 0
    %p150 = por %p148, %p149
    %p151 = scmp.ne.s32.totalorder %s143, %s145
    %p152 = scmp.eq.s32.totalorder %s25, 1
    %p153 = por %p151, %p152
    %p154 = scmp.ne.s32.totalorder %s145, %s146
    %p155 = scmp.eq.s32.totalorder %s25, 0
    %p156 = por %p154, %p155
    %p157 = scmp.ne.s32.totalorder %s145, %s146
    %p158 = scmp.eq.s32.totalorder %s26, 1
    %p159 = por %p157, %p158
    %p161 = scmp.ne.s32.totalorder %s146, %s160
    %p162 = scmp.eq.s32.totalorder %s26, 0
    %p163 = por %p161, %p162
    %s165 = sadd.s32 %s164, 1
    %p168 = scmp.eq.s32.totalorder %s20, 1
    %p169 = scmp.ne.s32.totalorder %s164, %s166
    %p170 = scmp.eq.s32.totalorder %s20, 0
    %p171 = por %p169, %p170
    %p172 = scmp.ne.s32.totalorder %s164, %s166
    %p173 = scmp.eq.s32.totalorder %s25, 1
    %p174 = por %p172, %p173
    %p175 = scmp.ne.s32.totalorder %s166, %s167
    %p176 = scmp.eq.s32.totalorder %s25, 0
    %p177 = por %p175, %p176
    %p178 = scmp.ne.s32.totalorder %s166, %s167
    %p179 = scmp.eq.s32.totalorder %s26, 1
    %p180 = por %p178, %p179
    %p182 = scmp.ne.s32.totalorder %s167, %s181
    %p183 = scmp.eq.s32.totalorder %s26, 0
    %p184 = por %p182, %p183
    %s186 = sadd.s32 %s185, 1
    %p189 = scmp.eq.s32.totalorder %s20, 1
    %p190 = scmp.ne.s32.totalorder %s185, %s187
    %p191 = scmp.eq.s32.totalorder %s20, 0
    %p192 = por %p190, %p191
    %p193 = scmp.ne.s32.totalorder %s185, %s187
    %p194 = scmp.eq.s32.totalorder %s25, 1
    %p195 = por %p193, %p194
    %p196 = scmp.ne.s32.totalorder %s187, %s188
    %p197 = scmp.eq.s32.totalorder %s25, 0
    %p198 = por %p196, %p197
    %p199 = scmp.ne.s32.totalorder %s187, %s188
    %p200 = scmp.eq.s32.totalorder %s26, 1
    %p201 = por %p199, %p200
    %p203 = scmp.ne.s32.totalorder %s188, %s202
    %p204 = scmp.eq.s32.totalorder %s26, 0
    %p205 = por %p203, %p204
    %s207 = sadd.s32 %s206, 1
    %p210 = scmp.eq.s32.totalorder %s20, 1
    %p211 = scmp.ne.s32.totalorder %s206, %s208
    %p212 = scmp.eq.s32.totalorder %s20, 0
    %p213 = por %p211, %p212
    %p214 = scmp.ne.s32.totalorder %s206, %s208
    %p215 = scmp.eq.s32.totalorder %s25, 1
    %p216 = por %p214, %p215
    %p217 = scmp.ne.s32.totalorder %s208, %s209
    %p218 = scmp.eq.s32.totalorder %s25, 0
    %p219 = por %p217, %p218
    %p220 = scmp.ne.s32.totalorder %s208, %s209
    %p221 = scmp.eq.s32.totalorder %s26, 1
    %p222 = por %p220, %p221
    %p224 = scmp.ne.s32.totalorder %s209, %s223
    %p225 = scmp.eq.s32.totalorder %s26, 0
    %p226 = por %p224, %p225
    %s228 = sadd.s32 %s227, 1
    %p231 = scmp.eq.s32.totalorder %s20, 1
    %p232 = scmp.ne.s32.totalorder %s227, %s229
    %p233 = scmp.eq.s32.totalorder %s20, 0
    %p234 = por %p232, %p233
    %p235 = scmp.ne.s32.totalorder %s227, %s229
    %p236 = scmp.eq.s32.totalorder %s25, 1
    %p237 = por %p235, %p236
    %p238 = scmp.ne.s32.totalorder %s229, %s230
    %p239 = scmp.eq.s32.totalorder %s25, 0
    %p240 = por %p238, %p239
    %p241 = scmp.ne.s32.totalorder %s229, %s230
    %p242 = scmp.eq.s32.totalorder %s26, 1
    %p243 = por %p241, %p242
    %p245 = scmp.ne.s32.totalorder %s230, %s244
    %p246 = scmp.eq.s32.totalorder %s26, 0
    %p247 = por %p245, %p246
    %s249 = sadd.s32 %s248, 1
    %p252 = scmp.eq.s32.totalorder %s20, 1
    %p253 = scmp.ne.s32.totalorder %s248, %s250
    %p254 = scmp.eq.s32.totalorder %s20, 0
    %p255 = por %p253, %p254
    %p256 = scmp.ne.s32.totalorder %s248, %s250
    %p257 = scmp.eq.s32.totalorder %s25, 1
    %p258 = por %p256, %p257
    %p259 = scmp.ne.s32.totalorder %s250, %s251
    %p260 = scmp.eq.s32.totalorder %s25, 0
    %p261 = por %p259, %p260
    %p262 = scmp.ne.s32.totalorder %s250, %s251
    %p263 = scmp.eq.s32.totalorder %s26, 1
    %p264 = por %p262, %p263
    %p266 = scmp.ne.s32.totalorder %s251, %s265
    %p267 = scmp.eq.s32.totalorder %s26, 0
    %p268 = por %p266, %p267
    %s270 = sadd.s32 %s269, 1
    %p273 = scmp.eq.s32.totalorder %s20, 1
    %p274 = scmp.ne.s32.totalorder %s269, %s271
    %p275 = scmp.eq.s32.totalorder %s20, 0
    %p276 = por %p274, %p275
    %p277 = scmp.ne.s32.totalorder %s269, %s271
    %p278 = scmp.eq.s32.totalorder %s25, 1
    %p279 = por %p277, %p278
    %p280 = scmp.ne.s32.totalorder %s271, %s272
    %p281 = scmp.eq.s32.totalorder %s25, 0
    %p282 = por %p280, %p281
    %p283 = scmp.ne.s32.totalorder %s271, %s272
    %p284 = scmp.eq.s32.totalorder %s26, 1
    %p285 = por %p283, %p284
    %p287 = scmp.ne.s32.totalorder %s272, %s286
    %p288 = scmp.eq.s32.totalorder %s26, 0
    %p289 = por %p287, %p288
    %s291 = sadd.s32 %s290, 1
    %p294 = scmp.eq.s32.totalorder %s20, 1
    %p295 = scmp.ne.s32.totalorder %s290, %s292
    %p296 = scmp.eq.s32.totalorder %s20, 0
    %p297 = por %p295, %p296
    %p298 = scmp.ne.s32.totalorder %s290, %s292
    %p299 = scmp.eq.s32.totalorder %s25, 1
    %p300 = por %p298, %p299
    %p301 = scmp.ne.s32.totalorder %s292, %s293
    %p302 = scmp.eq.s32.totalorder %s25, 0
    %p303 = por %p301, %p302
    %p304 = scmp.ne.s32.totalorder %s292, %s293
    %p305 = scmp.eq.s32.totalorder %s26, 1
    %p306 = por %p304, %p305
    %p308 = scmp.ne.s32.totalorder %s293, %s307
    %p309 = scmp.eq.s32.totalorder %s26, 0
    %p310 = por %p308, %p309
    %s312 = sadd.s32 %s311, 1
    %p315 = scmp.eq.s32.totalorder %s20, 1
    %p316 = scmp.ne.s32.totalorder %s311, %s313
    %p317 = scmp.eq.s32.totalorder %s20, 0
    %p318 = por %p316, %p317
    %p319 = scmp.ne.s32.totalorder %s311, %s313
    %p320 = scmp.eq.s32.totalorder %s25, 1
    %p321 = por %p319, %p320
    %p322 = scmp.ne.s32.totalorder %s313, %s314
    %p323 = scmp.eq.s32.totalorder %s25, 0
    %p324 = por %p322, %p323
    %p325 = scmp.ne.s32.totalorder %s313, %s314
    %p326 = scmp.eq.s32.totalorder %s26, 1
    %p327 = por %p325, %p326
    %p329 = scmp.ne.s32.totalorder %s314, %s328
    %p330 = scmp.eq.s32.totalorder %s26, 0
    %p331 = por %p329, %p330
    %s332 = ssub.s32 %s20, %s27
    %p333 = scmp.eq.s32.totalorder %s332, 0
    %s335 = sadd.s32 %s334, 1
    %s336 = scalar_select %p333, %s334, %s335
    %p339 = pneg %p333
    %p340 = scmp.eq.s32.totalorder %s20, 1
    %p341 = por %p339, %p340
    %p342 = scmp.ne.s32.totalorder %s334, %s337
    %p343 = scmp.eq.s32.totalorder %s20, 0
    %p344 = por %p342, %p343
    %p345 = scmp.ne.s32.totalorder %s334, %s337
    %p346 = scmp.eq.s32.totalorder %s25, 1
    %p347 = por %p345, %p346
    %p348 = scmp.ne.s32.totalorder %s337, %s338
    %p349 = scmp.eq.s32.totalorder %s25, 0
    %p350 = por %p348, %p349
    %p351 = scmp.ne.s32.totalorder %s337, %s338
    %p352 = scmp.eq.s32.totalorder %s26, 1
    %p353 = por %p351, %p352
    %p355 = scmp.ne.s32.totalorder %s338, %s354
    %p356 = scmp.eq.s32.totalorder %s26, 0
    %p357 = por %p355, %p356
    %p358 = scmp.le.s32.totalorder 1, %s20
    %p359 = scmp.lt.s32.totalorder %s20, 3
    %p360 = pnand %p358, %p359
    %p361 = pneg %p360
    // Predicated region
    $region9: #{_lambda_.5} parent=5 // pred_check
      _
    $region10: #{_lambda_.5} parent=5 // pred_check_branch
      %363 = sbr.rel (%p360) target = $region12
    $region11: #{_lambda_.5} parent=5 // pred_region
      %s364 = ssub.s32 %s20, 1
      // Predicated region
      $region13: #{_lambda_.5} parent=11 // pred_check
        %p365 = pneg %p93
      $region14: #{_lambda_.5} parent=11 // pred_check_branch
        %367 = sbr.rel (%p365) target = $region16
      $region15: #{_lambda_.5} parent=11 // pred_region
        _
      $region16: #{_lambda_.5} parent=11 // pred_fallthru
        _
      // Predicated region
      $region17: #{_lambda_.5} parent=11 // pred_check
        %p368 = pneg %p114
      $region18: #{_lambda_.5} parent=11 // pred_check_branch
        %370 = sbr.rel (%p368) target = $region20
      $region19: #{_lambda_.5} parent=11 // pred_region
        _
      $region20: #{_lambda_.5} parent=11 // pred_fallthru
        _
      // Predicated region
      $region21: #{_lambda_.5} parent=11 // pred_check
        %p371 = pneg %p135
      $region22: #{_lambda_.5} parent=11 // pred_check_branch
        %373 = sbr.rel (%p371) target = $region24
      $region23: #{_lambda_.5} parent=11 // pred_region
        _
      $region24: #{_lambda_.5} parent=11 // pred_fallthru
        _
      // Predicated region
      $region25: #{_lambda_.5} parent=11 // pred_check
        %p374 = pneg %p156
      $region26: #{_lambda_.5} parent=11 // pred_check_branch
        %376 = sbr.rel (%p374) target = $region28
      $region27: #{_lambda_.5} parent=11 // pred_region
        _
      $region28: #{_lambda_.5} parent=11 // pred_fallthru
        _
      // Predicated region
      $region29: #{_lambda_.5} parent=11 // pred_check
        %p377 = pneg %p177
      $region30: #{_lambda_.5} parent=11 // pred_check_branch
        %379 = sbr.rel (%p377) target = $region32
      $region31: #{_lambda_.5} parent=11 // pred_region
        _
      $region32: #{_lambda_.5} parent=11 // pred_fallthru
        _
      // Predicated region
      $region33: #{_lambda_.5} parent=11 // pred_check
        %p380 = pneg %p198
      $region34: #{_lambda_.5} parent=11 // pred_check_branch
        %382 = sbr.rel (%p380) target = $region36
      $region35: #{_lambda_.5} parent=11 // pred_region
        _
      $region36: #{_lambda_.5} parent=11 // pred_fallthru
        _
      // Predicated region
      $region37: #{_lambda_.5} parent=11 // pred_check
        %p383 = pneg %p219
      $region38: #{_lambda_.5} parent=11 // pred_check_branch
        %385 = sbr.rel (%p383) target = $region40
      $region39: #{_lambda_.5} parent=11 // pred_region
        _
      $region40: #{_lambda_.5} parent=11 // pred_fallthru
        _
      // Predicated region
      $region41: #{_lambda_.5} parent=11 // pred_check
        %p386 = pneg %p240
      $region42: #{_lambda_.5} parent=11 // pred_check_branch
        %388 = sbr.rel (%p386) target = $region44
      $region43: #{_lambda_.5} parent=11 // pred_region
        _
      $region44: #{_lambda_.5} parent=11 // pred_fallthru
        _
      // Predicated region
      $region45: #{_lambda_.5} parent=11 // pred_check
        %p389 = pneg %p261
      $region46: #{_lambda_.5} parent=11 // pred_check_branch
        %391 = sbr.rel (%p389) target = $region48
      $region47: #{_lambda_.5} parent=11 // pred_region
        _
      $region48: #{_lambda_.5} parent=11 // pred_fallthru
        _
      // Predicated region
      $region49: #{_lambda_.5} parent=11 // pred_check
        %p392 = pneg %p282
      $region50: #{_lambda_.5} parent=11 // pred_check_branch
        %394 = sbr.rel (%p392) target = $region52
      $region51: #{_lambda_.5} parent=11 // pred_region
        _
      $region52: #{_lambda_.5} parent=11 // pred_fallthru
        _
      // Predicated region
      $region53: #{_lambda_.5} parent=11 // pred_check
        %p395 = pneg %p303
      $region54: #{_lambda_.5} parent=11 // pred_check_branch
        %397 = sbr.rel (%p395) target = $region56
      $region55: #{_lambda_.5} parent=11 // pred_region
        _
      $region56: #{_lambda_.5} parent=11 // pred_fallthru
        _
      // Predicated region
      $region57: #{_lambda_.5} parent=11 // pred_check
        %p398 = pneg %p324
      $region58: #{_lambda_.5} parent=11 // pred_check_branch
        %400 = sbr.rel (%p398) target = $region60
      $region59: #{_lambda_.5} parent=11 // pred_region
        _
      $region60: #{_lambda_.5} parent=11 // pred_fallthru
        _
    $region12: #{_lambda_.5} parent=5 // pred_fallthru
      _
    %p401 = scmp.lt.s32.totalorder %s20, 2
    // Predicated region
    $region61: #{_lambda_.5} parent=5 // pred_check
      %p402 = pneg %p401
    $region62: #{_lambda_.5} parent=5 // pred_check_branch
      %404 = sbr.rel (%p402) target = $region64
    $region63: #{_lambda_.5} parent=5 // pred_region
      // Predicated region
      $region65: #{_lambda_.5} parent=63 // pred_check
        %p405 = pneg %p40
      $region66: #{_lambda_.5} parent=63 // pred_check_branch
        %407 = sbr.rel (%p405) target = $region68
      $region67: #{_lambda_.5} parent=63 // pred_region
        %p408 = scmp.lt.s32.totalorder %s20, 1
        %s409 = scalar_select %p408, %s20, 1
        %s410 = smul.addr %s409, 2
        %s411 = smul.addr %s410, 8
        %s412 = scalar_lea.vmem %s0, %s411
      $region68: #{_lambda_.5} parent=63 // pred_fallthru
        _
      // Predicated region
      $region69: #{_lambda_.5} parent=63 // pred_check
        %p413 = pneg %p66
      $region70: #{_lambda_.5} parent=63 // pred_check_branch
        %415 = sbr.rel (%p413) target = $region72
      $region71: #{_lambda_.5} parent=63 // pred_region
        %p416 = scmp.lt.s32.totalorder %s20, 1
        %s417 = scalar_select %p416, %s20, 1
        %s418 = smul.addr %s417, 2
        %s419 = smul.addr %s418, 8
        %s420 = scalar_lea.vmem %s1, %s419
      $region72: #{_lambda_.5} parent=63 // pred_fallthru
        _
    $region64: #{_lambda_.5} parent=5 // pred_fallthru
      _
    %p421 = scmp.le.s32.totalorder 1, %s20
    %p422 = scmp.lt.s32.totalorder %s20, 3
    %p423 = pnand %p421, %p422
    %p424 = pneg %p423
    // Predicated region
    $region73: #{_lambda_.5} parent=5 // pred_check
      _
    $region74: #{_lambda_.5} parent=5 // pred_check_branch
      %426 = sbr.rel (%p423) target = $region76
    $region75: #{_lambda_.5} parent=5 // pred_region
      %s427 = ssub.s32 %s20, 1
      %p428 = scmp.lt.s32.totalorder %s25, 1
      %s429 = scalar_select %p428, %s25, 1
      %s430 = smul.addr %s429, 2
      %s431 = smul.addr %s430, 8
      %s432 = scalar_lea.vmem %s0, %s431
      %p433 = pneg %p46
      %p434 = pneg %p43
      %p435 = scmp.lt.s32.totalorder %s25, 1
      %s436 = scalar_select %p435, %s25, 1
      %s437 = smul.addr %s436, 2
      %s438 = smul.addr %s437, 8
      %s439 = scalar_lea.vmem %s1, %s438
      %p440 = pneg %p72
      %p441 = pneg %p69
      %p442 = pneg %p93
      %p443 = pneg %p90
      %p444 = pneg %p114
      %p445 = pneg %p111
      %p446 = pneg %p135
      %p447 = pneg %p132
      %p448 = pneg %p156
      %p449 = pneg %p153
      %p450 = pneg %p177
      %p451 = pneg %p174
      %p452 = pneg %p198
      %p453 = pneg %p195
      %p454 = pneg %p219
      %p455 = pneg %p216
      %p456 = pneg %p240
      %p457 = pneg %p237
      %p458 = pneg %p261
      %p459 = pneg %p258
      %p460 = pneg %p282
      %p461 = pneg %p279
      %p462 = pneg %p303
      %p463 = pneg %p300
      %p464 = pneg %p324
      %p465 = pneg %p321
      %p466 = pneg %p350
      %p467 = pneg %p347
      %p468 = scmp.lt.s32.totalorder %s25, 1
      %s469 = scalar_select %p468, %s25, 1
      %s470 = smul.addr %s469, 2
      %s471 = smul.addr %s470, 8
      %s472 = scalar_lea.vmem %s14, %s471
      %p473 = scmp.lt.s32.totalorder %s25, 1
      %s474 = scalar_select %p473, %s25, 1
      %s475 = smul.addr %s474, 2
      %s476 = smul.addr %s475, 8
      %s477 = scalar_lea.vmem %s0, %s476
      %p478 = scmp.lt.s32.totalorder %s25, 1
      %s479 = scalar_select %p478, %s25, 1
      %s480 = smul.addr %s479, 2
      %s481 = smul.addr %s480, 8
      %s482 = scalar_lea.vmem %s1, %s481
      %p483 = scmp.lt.s32.totalorder %s25, 1
      %s484 = scalar_select %p483, %s25, 1
      %s485 = smul.addr %s484, 2
      %s486 = smul.addr %s485, 8
      %s487 = scalar_lea.vmem %s14, %s486
      %v489 = vld [vmem:[%s477] sm:$0xff]
      %v490 = vld [vmem:[%s477 + $0x8] sm:$0x3f]
      %v491 = vld [vmem:[%s482] sm:$0xff]
      %v492 = vld [vmem:[%s482 + $0x8] sm:$0x3f]
      %v493 = vpack.c.bf16 %v490, %v489
      %v494 = vld [vmem:[%s2] sm:$0xf]
      %v495 = vld [vmem:[%s2 + $0x4] sm:$0xf]
      %v496 = vld [vmem:[%s2 + $0x8] sm:$0xf]
      %v497 = vld [vmem:[%s2 + $0xc] sm:$0xf]
      %v498 = vld [vmem:[%s3] sm:$0x1]
      %v500 = vlaneseq
      %v501 = vshrl.u32 %v500, 7
      %v502 = vsub.s32 0, %v501
      %v503 = vrot.slane %v498, %v502
      %v509 = vunpack.c.l.b16 %v494
      %v510 = vunpack.c.l.b16 %v495
      %v511 = vunpack.c.l.b16 %v496
      %v512 = vunpack.c.l.b16 %v497
      %v513 = vpack.c.b16 %v510, %v509
      %v514 = vpack.c.b16 %v512, %v511
      %vm517 = vcmask 261120
      %v519 = vsel %vm517, %v493, 0
      %521 = vmatprep.subr.bf16.mxu0 0
      %522 = vmatpush1.bf16.msra.mxu0 0
      %523 = vmatprep.subr.bf16.mxu0 0
      %524 = vmatpush1.bf16.msra.mxu0 0
      %525 = vmatprep.subr.bf16.mxu0 0
      %526 = vmatpush1.bf16.msra.mxu0 0
      %527 = vmatprep.subr.bf16.mxu0 0
      %528 = vmatpush1.bf16.msra.mxu0 0
      %529 = vmatprep.subr.bf16.mxu0 0
      %530 = vmatpush1.bf16.msra.mxu0 0
      %531 = vmatprep.subr.bf16.mxu0 0
      %532 = vmatpush1.bf16.msra.mxu0 0
      %533 = vmatprep.subr.bf16.mxu0 0
      %534 = vmatpush1.bf16.msra.mxu0 %v514
      %535 = vmatprep.subr.bf16.mxu0 0
      %536 = vmatpush1.bf16.msra.mxu0 %v513
      %537 = vmatprep.subr.bf16.mxu0 0
      %538 = vmatpush2.bf16.msra.mxu0 0
      %539 = vmatprep.subr.bf16.mxu0 0
      %540 = vmatpush2.bf16.msra.mxu0 0
      %541 = vmatprep.subr.bf16.mxu0 0
      %542 = vmatpush2.bf16.msra.mxu0 0
      %543 = vmatprep.subr.bf16.mxu0 0
      %544 = vmatpush2.bf16.msra.mxu0 0
      %545 = vmatprep.subr.bf16.mxu0 0
      %546 = vmatpush2.bf16.msra.mxu0 0
      %547 = vmatprep.subr.bf16.mxu0 0
      %548 = vmatpush2.bf16.msra.mxu0 0
      %549 = vmatprep.subr.bf16.mxu0 0
      %550 = vmatpush2.bf16.msra.mxu0 0
      %551 = vmatprep.subr.bf16.mxu0 0
      %552 = vmatpush2.bf16.msra.mxu0 0
      %553 = vmatprep.mubr.bf16.mxu0 0
      %554 = vmatmul.mubr.bf16.gmra.mxu0 %v519
      %v555 = vpop.f32.mrf.mxu0
      %v556 = vadd.f32 %v503, %v555
      %v557 = vpop.f32.mrf.mxu0
      %v558 = vpop.f32.mrf.mxu0
      %v559 = vadd.f32 %v503, %v558
      %v560 = vpop.f32.mrf.mxu0
      %561 = vdwg.mxu0
      %v562 = vld [vmem:[%s5] sm:$0x1]
      %v564 = vlaneseq
      %v565 = vshrl.u32 %v564, 7
      %v566 = vsub.s32 0, %v565
      %v567 = vrot.slane %v562, %v566
      %v569 = vadd.f32 %v567, 0.0
      %v570 = vpack.c.bf16 %v559, %v556
      %572 = vrot.lane.b32.xlu0 %v570, 96
      %v573 = vpop.permute.xlu0 %572
      %vm574 = vcmask 31744
      %v576 = vsel %vm574, %v570, 0
      %v579 = vsel %vm574, %v573, 0
      %581 = vmatprep.subr.bf16.mxu0 0
      %582 = vmatpush1.bf16.xpose.msra.mxu0 0
      %583 = vmatprep.subr.bf16.mxu0 0
      %584 = vmatpush1.bf16.xpose.msra.mxu0 0
      %585 = vmatprep.subr.bf16.mxu0 0
      %586 = vmatpush1.bf16.xpose.msra.mxu0 0
      %587 = vmatprep.subr.bf16.mxu0 0
      %588 = vmatpush1.bf16.xpose.msra.mxu0 0
      %589 = vmatprep.subr.bf16.mxu0 0
      %590 = vmatpush1.bf16.xpose.msra.mxu0 0
      %591 = vmatprep.subr.bf16.mxu0 0
      %592 = vmatpush1.bf16.xpose.msra.mxu0 0
      %593 = vmatprep.subr.bf16.mxu0 0
      %594 = vmatpush1.bf16.xpose.msra.mxu0 0
      %595 = vmatprep.subr.bf16.mxu0 0
      %596 = vmatpush1.bf16.xpose.msra.mxu0 %v579
      %597 = vmatprep.subr.bf16.mxu0 0
      %598 = vmatpush2.bf16.xpose.msra.mxu0 0
      %599 = vmatprep.subr.bf16.mxu0 0
      %600 = vmatpush2.bf16.xpose.msra.mxu0 0
      %601 = vmatprep.subr.bf16.mxu0 0
      %602 = vmatpush2.bf16.xpose.msra.mxu0 0
      %603 = vmatprep.subr.bf16.mxu0 0
      %604 = vmatpush2.bf16.xpose.msra.mxu0 0
      %605 = vmatprep.subr.bf16.mxu0 0
      %606 = vmatpush2.bf16.xpose.msra.mxu0 0
      %607 = vmatprep.subr.bf16.mxu0 0
      %608 = vmatpush2.bf16.xpose.msra.mxu0 0
      %609 = vmatprep.subr.bf16.mxu0 0
      %610 = vmatpush2.bf16.xpose.msra.mxu0 0
      %611 = vmatprep.subr.bf16.mxu0 0
      %612 = vmatpush2.bf16.xpose.msra.mxu0 0
      %613 = vmatprep.mubr.bf16.mxu0 0
      %614 = vmatmul.mubr.bf16.gmra.mxu0 %v576
      %v615 = vpop.f32.mrf.mxu0
      %v616 = vadd.f32 0.0, %v615
      %v617 = vpop.f32.mrf.mxu0
      %v618 = vpop.f32.mrf.mxu0
      %v619 = vadd.f32 0.0, %v618
      %v620 = vpop.f32.mrf.mxu0
      %621 = vdwg.mxu0
      %v622 = vmul.f32 %v616, 0.5
      %v623 = vmul.f32 %v619, 0.5
      %v624 = vadd.f32 %v622, %v491
      %v625 = vadd.f32 %v623, %v492
      %vm626 = vcmask 113664
      %v627 = vsel %vm626, %v624, -inf
      %628 = vmax.xlane.f32.xlu0 %v627
      %v629 = vpop.xlane.xlu0 %628
      %vm630 = vcmask 111616
      %v631 = vsel %vm630, %v625, -inf
      %632 = vmax.xlane.f32.xlu0 %v631
      %v633 = vpop.xlane.xlu0 %632
      %v634 = vsub.f32 %v624, %v629
      %v635 = vsub.f32 %v625, %v633
      %v636 = vmul.f32 %v634, 1.442695
      %v637 = vpow.pop %v636
      %v638 = vmul.f32 %v635, 1.442695
      %v639 = vpow.pop %v638
      %v640 = vsel %vm626, %v637, 0.0
      %641 = vadd.xlane.f32.xlu0 %v640
      %v642 = vpop.xlane.xlu0 %641
      %v643 = vsel %vm630, %v639, 0.0
      %644 = vadd.xlane.f32.xlu0 %v643
      %v645 = vpop.xlane.xlu0 %644
      %v646 = vrcp.pop %v642
      %v647 = vrcp.pop %v645
      %v648 = vmul.f32 %v637, %v646
      %v649 = vmul.f32 %v639, %v647
      %v650 = vpack.c.bf16 %v649, %v648
      %651 = vrot.lane.b32.xlu0 %v570, 64
      %v652 = vpop.permute.xlu0 %651
      %v654 = vsel %vm626, %v650, 0
      %vm656 = vcmask 1046528
      %v658 = vsel %vm656, %v652, 0
      %660 = vmatprep.subr.bf16.mxu0 0
      %661 = vmatpush1.bf16.msra.mxu0 0
      %662 = vmatprep.subr.bf16.mxu0 0
      %663 = vmatpush1.bf16.msra.mxu0 0
      %664 = vmatprep.subr.bf16.mxu0 0
      %665 = vmatpush1.bf16.msra.mxu0 0
      %666 = vmatprep.subr.bf16.mxu0 0
      %667 = vmatpush1.bf16.msra.mxu0 0
      %668 = vmatprep.subr.bf16.mxu0 0
      %669 = vmatpush1.bf16.msra.mxu0 0
      %670 = vmatprep.subr.bf16.mxu0 0
      %671 = vmatpush1.bf16.msra.mxu0 0
      %672 = vmatprep.subr.bf16.mxu0 0
      %673 = vmatpush1.bf16.msra.mxu0 0
      %674 = vmatprep.subr.bf16.mxu0 0
      %675 = vmatpush1.bf16.msra.mxu0 %v658
      %676 = vmatprep.subr.bf16.mxu0 0
      %677 = vmatpush2.bf16.msra.mxu0 0
      %678 = vmatprep.subr.bf16.mxu0 0
      %679 = vmatpush2.bf16.msra.mxu0 0
      %680 = vmatprep.subr.bf16.mxu0 0
      %681 = vmatpush2.bf16.msra.mxu0 0
      %682 = vmatprep.subr.bf16.mxu0 0
      %683 = vmatpush2.bf16.msra.mxu0 0
      %684 = vmatprep.subr.bf16.mxu0 0
      %685 = vmatpush2.bf16.msra.mxu0 0
      %686 = vmatprep.subr.bf16.mxu0 0
      %687 = vmatpush2.bf16.msra.mxu0 0
      %688 = vmatprep.subr.bf16.mxu0 0
      %689 = vmatpush2.bf16.msra.mxu0 0
      %690 = vmatprep.subr.bf16.mxu0 0
      %691 = vmatpush2.bf16.msra.mxu0 0
      %692 = vmatprep.mubr.bf16.mxu0 0
      %693 = vmatmul.mubr.bf16.gmra.mxu0 %v654
      %v694 = vpop.f32.mrf.mxu0
      %v695 = vadd.f32 0.0, %v694
      %v696 = vpop.f32.mrf.mxu0
      %v697 = vpop.f32.mrf.mxu0
      %v698 = vadd.f32 0.0, %v697
      %v699 = vpop.f32.mrf.mxu0
      %700 = vdwg.mxu0
      %v701 = vpack.c.bf16 %v698, %v695
      %v702 = vld [vmem:[%s4] sm:$0x3]
      %v704 = vsel %vm574, %v701, 0
      %vm706 = vcmask 1041408
      %v708 = vsel %vm706, %v702, 0
      %710 = vmatprep.subr.bf16.mxu0 0
      %711 = vmatpush1.bf16.msra.mxu0 0
      %712 = vmatprep.subr.bf16.mxu0 0
      %713 = vmatpush1.bf16.msra.mxu0 0
      %714 = vmatprep.subr.bf16.mxu0 0
      %715 = vmatpush1.bf16.msra.mxu0 0
      %716 = vmatprep.subr.bf16.mxu0 0
      %717 = vmatpush1.bf16.msra.mxu0 0
      %718 = vmatprep.subr.bf16.mxu0 0
      %719 = vmatpush1.bf16.msra.mxu0 0
      %720 = vmatprep.subr.bf16.mxu0 0
      %721 = vmatpush1.bf16.msra.mxu0 0
      %722 = vmatprep.subr.bf16.mxu0 0
      %723 = vmatpush1.bf16.msra.mxu0 0
      %724 = vmatprep.subr.bf16.mxu0 0
      %725 = vmatpush1.bf16.msra.mxu0 %v708
      %726 = vmatprep.subr.bf16.mxu0 0
      %727 = vmatpush2.bf16.msra.mxu0 0
      %728 = vmatprep.subr.bf16.mxu0 0
      %729 = vmatpush2.bf16.msra.mxu0 0
      %730 = vmatprep.subr.bf16.mxu0 0
      %731 = vmatpush2.bf16.msra.mxu0 0
      %732 = vmatprep.subr.bf16.mxu0 0
      %733 = vmatpush2.bf16.msra.mxu0 0
      %734 = vmatprep.subr.bf16.mxu0 0
      %735 = vmatpush2.bf16.msra.mxu0 0
      %736 = vmatprep.subr.bf16.mxu0 0
      %737 = vmatpush2.bf16.msra.mxu0 0
      %738 = vmatprep.subr.bf16.mxu0 0
      %739 = vmatpush2.bf16.msra.mxu0 0
      %740 = vmatprep.subr.bf16.mxu0 0
      %741 = vmatpush2.bf16.msra.mxu0 0
      %742 = vmatprep.mubr.bf16.mxu0 0
      %743 = vmatmul.mubr.bf16.gmra.mxu0 %v704
      %v744 = vpop.f32.mrf.mxu0
      %v745 = vadd.f32 0.0, %v744
      %v746 = vpop.f32.mrf.mxu0
      %v747 = vpop.f32.mrf.mxu0
      %v748 = vadd.f32 0.0, %v747
      %v749 = vpop.f32.mrf.mxu0
      %750 = vdwg.mxu0
      %v751 = vadd.f32 %v569, %v745
      %v752 = vadd.f32 %v569, %v748
      %753 = vrot.lane.b32.xlu0 %v570, 124
      %v754 = vpop.permute.xlu0 %753
      %755 = vrot.lane.b32.xlu0 %v570, 92
      %v756 = vpop.permute.xlu0 %755
      %v758 = vsel %vm574, %v754, 0
      %v761 = vsel %vm574, %v756, 0
      %763 = vmatprep.subr.bf16.mxu0 0
      %764 = vmatpush1.bf16.xpose.msra.mxu0 0
      %765 = vmatprep.subr.bf16.mxu0 0
      %766 = vmatpush1.bf16.xpose.msra.mxu0 0
      %767 = vmatprep.subr.bf16.mxu0 0
      %768 = vmatpush1.bf16.xpose.msra.mxu0 0
      %769 = vmatprep.subr.bf16.mxu0 0
      %770 = vmatpush1.bf16.xpose.msra.mxu0 0
      %771 = vmatprep.subr.bf16.mxu0 0
      %772 = vmatpush1.bf16.xpose.msra.mxu0 0
      %773 = vmatprep.subr.bf16.mxu0 0
      %774 = vmatpush1.bf16.xpose.msra.mxu0 0
      %775 = vmatprep.subr.bf16.mxu0 0
      %776 = vmatpush1.bf16.xpose.msra.mxu0 0
      %777 = vmatprep.subr.bf16.mxu0 0
      %778 = vmatpush1.bf16.xpose.msra.mxu0 %v761
      %779 = vmatprep.subr.bf16.mxu0 0
      %780 = vmatpush2.bf16.xpose.msra.mxu0 0
      %781 = vmatprep.subr.bf16.mxu0 0
      %782 = vmatpush2.bf16.xpose.msra.mxu0 0
      %783 = vmatprep.subr.bf16.mxu0 0
      %784 = vmatpush2.bf16.xpose.msra.mxu0 0
      %785 = vmatprep.subr.bf16.mxu0 0
      %786 = vmatpush2.bf16.xpose.msra.mxu0 0
      %787 = vmatprep.subr.bf16.mxu0 0
      %788 = vmatpush2.bf16.xpose.msra.mxu0 0
      %789 = vmatprep.subr.bf16.mxu0 0
      %790 = vmatpush2.bf16.xpose.msra.mxu0 0
      %791 = vmatprep.subr.bf16.mxu0 0
      %792 = vmatpush2.bf16.xpose.msra.mxu0 0
      %793 = vmatprep.subr.bf16.mxu0 0
      %794 = vmatpush2.bf16.xpose.msra.mxu0 0
      %795 = vmatprep.mubr.bf16.mxu0 0
      %796 = vmatmul.mubr.bf16.gmra.mxu0 %v758
      %v797 = vpop.f32.mrf.mxu0
      %v798 = vadd.f32 0.0, %v797
      %v799 = vpop.f32.mrf.mxu0
      %v800 = vpop.f32.mrf.mxu0
      %v801 = vadd.f32 0.0, %v800
      %v802 = vpop.f32.mrf.mxu0
      %803 = vdwg.mxu0
      %v804 = vmul.f32 %v798, 0.5
      %v805 = vmul.f32 %v801, 0.5
      %v806 = vadd.f32 %v804, %v491
      %v807 = vadd.f32 %v805, %v492
      %v808 = vsel %vm626, %v806, -inf
      %809 = vmax.xlane.f32.xlu0 %v808
      %v810 = vpop.xlane.xlu0 %809
      %v811 = vsel %vm630, %v807, -inf
      %812 = vmax.xlane.f32.xlu0 %v811
      %v813 = vpop.xlane.xlu0 %812
      %v814 = vsub.f32 %v806, %v810
      %v815 = vsub.f32 %v807, %v813
      %v816 = vmul.f32 %v814, 1.442695
      %v817 = vpow.pop %v816
      %v818 = vmul.f32 %v815, 1.442695
      %v819 = vpow.pop %v818
      %v820 = vsel %vm626, %v817, 0.0
      %821 = vadd.xlane.f32.xlu0 %v820
      %v822 = vpop.xlane.xlu0 %821
      %v823 = vsel %vm630, %v819, 0.0
      %824 = vadd.xlane.f32.xlu0 %v823
      %v825 = vpop.xlane.xlu0 %824
      %v826 = vrcp.pop %v822
      %v827 = vrcp.pop %v825
      %v828 = vmul.f32 %v817, %v826
      %v829 = vmul.f32 %v819, %v827
      %v830 = vpack.c.bf16 %v829, %v828
      %831 = vrot.lane.b32.xlu0 %v570, 60
      %v832 = vpop.permute.xlu0 %831
      %v834 = vsel %vm626, %v830, 0
      %v837 = vsel %vm656, %v832, 0
      %839 = vmatprep.subr.bf16.mxu0 0
      %840 = vmatpush1.bf16.msra.mxu0 0
      %841 = vmatprep.subr.bf16.mxu0 0
      %842 = vmatpush1.bf16.msra.mxu0 0
      %843 = vmatprep.subr.bf16.mxu0 0
      %844 = vmatpush1.bf16.msra.mxu0 0
      %845 = vmatprep.subr.bf16.mxu0 0
      %846 = vmatpush1.bf16.msra.mxu0 0
      %847 = vmatprep.subr.bf16.mxu0 0
      %848 = vmatpush1.bf16.msra.mxu0 0
      %849 = vmatprep.subr.bf16.mxu0 0
      %850 = vmatpush1.bf16.msra.mxu0 0
      %851 = vmatprep.subr.bf16.mxu0 0
      %852 = vmatpush1.bf16.msra.mxu0 0
      %853 = vmatprep.subr.bf16.mxu0 0
      %854 = vmatpush1.bf16.msra.mxu0 %v837
      %855 = vmatprep.subr.bf16.mxu0 0
      %856 = vmatpush2.bf16.msra.mxu0 0
      %857 = vmatprep.subr.bf16.mxu0 0
      %858 = vmatpush2.bf16.msra.mxu0 0
      %859 = vmatprep.subr.bf16.mxu0 0
      %860 = vmatpush2.bf16.msra.mxu0 0
      %861 = vmatprep.subr.bf16.mxu0 0
      %862 = vmatpush2.bf16.msra.mxu0 0
      %863 = vmatprep.subr.bf16.mxu0 0
      %864 = vmatpush2.bf16.msra.mxu0 0
      %865 = vmatprep.subr.bf16.mxu0 0
      %866 = vmatpush2.bf16.msra.mxu0 0
      %867 = vmatprep.subr.bf16.mxu0 0
      %868 = vmatpush2.bf16.msra.mxu0 0
      %869 = vmatprep.subr.bf16.mxu0 0
      %870 = vmatpush2.bf16.msra.mxu0 0
      %871 = vmatprep.mubr.bf16.mxu0 0
      %872 = vmatmul.mubr.bf16.gmra.mxu0 %v834
      %v873 = vpop.f32.mrf.mxu0
      %v874 = vadd.f32 0.0, %v873
      %v875 = vpop.f32.mrf.mxu0
      %v876 = vpop.f32.mrf.mxu0
      %v877 = vadd.f32 0.0, %v876
      %v878 = vpop.f32.mrf.mxu0
      %879 = vdwg.mxu0
      %v880 = vpack.c.bf16 %v877, %v874
      %s881 = scalar_lea.vmem %s4, 2
      %v882 = vld [vmem:[%s881] sm:$0x3]
      %v884 = vsel %vm574, %v880, 0
      %v887 = vsel %vm706, %v882, 0
      %889 = vmatprep.subr.bf16.mxu0 0
      %890 = vmatpush1.bf16.msra.mxu0 0
      %891 = vmatprep.subr.bf16.mxu0 0
      %892 = vmatpush1.bf16.msra.mxu0 0
      %893 = vmatprep.subr.bf16.mxu0 0
      %894 = vmatpush1.bf16.msra.mxu0 0
      %895 = vmatprep.subr.bf16.mxu0 0
      %896 = vmatpush1.bf16.msra.mxu0 0
      %897 = vmatprep.subr.bf16.mxu0 0
      %898 = vmatpush1.bf16.msra.mxu0 0
      %899 = vmatprep.subr.bf16.mxu0 0
      %900 = vmatpush1.bf16.msra.mxu0 0
      %901 = vmatprep.subr.bf16.mxu0 0
      %902 = vmatpush1.bf16.msra.mxu0 0
      %903 = vmatprep.subr.bf16.mxu0 0
      %904 = vmatpush1.bf16.msra.mxu0 %v887
      %905 = vmatprep.subr.bf16.mxu0 0
      %906 = vmatpush2.bf16.msra.mxu0 0
      %907 = vmatprep.subr.bf16.mxu0 0
      %908 = vmatpush2.bf16.msra.mxu0 0
      %909 = vmatprep.subr.bf16.mxu0 0
      %910 = vmatpush2.bf16.msra.mxu0 0
      %911 = vmatprep.subr.bf16.mxu0 0
      %912 = vmatpush2.bf16.msra.mxu0 0
      %913 = vmatprep.subr.bf16.mxu0 0
      %914 = vmatpush2.bf16.msra.mxu0 0
      %915 = vmatprep.subr.bf16.mxu0 0
      %916 = vmatpush2.bf16.msra.mxu0 0
      %917 = vmatprep.subr.bf16.mxu0 0
      %918 = vmatpush2.bf16.msra.mxu0 0
      %919 = vmatprep.subr.bf16.mxu0 0
      %920 = vmatpush2.bf16.msra.mxu0 0
      %921 = vmatprep.mubr.bf16.mxu0 0
      %922 = vmatmul.mubr.bf16.gmra.mxu0 %v884
      %v923 = vpop.f32.mrf.mxu0
      %v924 = vadd.f32 0.0, %v923
      %v925 = vpop.f32.mrf.mxu0
      %v926 = vpop.f32.mrf.mxu0
      %v927 = vadd.f32 0.0, %v926
      %v928 = vpop.f32.mrf.mxu0
      %929 = vdwg.mxu0
      %v930 = vadd.f32 %v751, %v924
      %v931 = vadd.f32 %v752, %v927
      %932 = vrot.lane.b32.xlu0 %v570, 120
      %v933 = vpop.permute.xlu0 %932
      %934 = vrot.lane.b32.xlu0 %v570, 88
      %v935 = vpop.permute.xlu0 %934
      %v937 = vsel %vm574, %v933, 0
      %v940 = vsel %vm574, %v935, 0
      %942 = vmatprep.subr.bf16.mxu0 0
      %943 = vmatpush1.bf16.xpose.msra.mxu0 0
      %944 = vmatprep.subr.bf16.mxu0 0
      %945 = vmatpush1.bf16.xpose.msra.mxu0 0
      %946 = vmatprep.subr.bf16.mxu0 0
      %947 = vmatpush1.bf16.xpose.msra.mxu0 0
      %948 = vmatprep.subr.bf16.mxu0 0
      %949 = vmatpush1.bf16.xpose.msra.mxu0 0
      %950 = vmatprep.subr.bf16.mxu0 0
      %951 = vmatpush1.bf16.xpose.msra.mxu0 0
      %952 = vmatprep.subr.bf16.mxu0 0
      %953 = vmatpush1.bf16.xpose.msra.mxu0 0
      %954 = vmatprep.subr.bf16.mxu0 0
      %955 = vmatpush1.bf16.xpose.msra.mxu0 0
      %956 = vmatprep.subr.bf16.mxu0 0
      %957 = vmatpush1.bf16.xpose.msra.mxu0 %v940
      %958 = vmatprep.subr.bf16.mxu0 0
      %959 = vmatpush2.bf16.xpose.msra.mxu0 0
      %960 = vmatprep.subr.bf16.mxu0 0
      %961 = vmatpush2.bf16.xpose.msra.mxu0 0
      %962 = vmatprep.subr.bf16.mxu0 0
      %963 = vmatpush2.bf16.xpose.msra.mxu0 0
      %964 = vmatprep.subr.bf16.mxu0 0
      %965 = vmatpush2.bf16.xpose.msra.mxu0 0
      %966 = vmatprep.subr.bf16.mxu0 0
      %967 = vmatpush2.bf16.xpose.msra.mxu0 0
      %968 = vmatprep.subr.bf16.mxu0 0
      %969 = vmatpush2.bf16.xpose.msra.mxu0 0
      %970 = vmatprep.subr.bf16.mxu0 0
      %971 = vmatpush2.bf16.xpose.msra.mxu0 0
      %972 = vmatprep.subr.bf16.mxu0 0
      %973 = vmatpush2.bf16.xpose.msra.mxu0 0
      %974 = vmatprep.mubr.bf16.mxu0 0
      %975 = vmatmul.mubr.bf16.gmra.mxu0 %v937
      %v976 = vpop.f32.mrf.mxu0
      %v977 = vadd.f32 0.0, %v976
      %v978 = vpop.f32.mrf.mxu0
      %v979 = vpop.f32.mrf.mxu0
      %v980 = vadd.f32 0.0, %v979
      %v981 = vpop.f32.mrf.mxu0
      %982 = vdwg.mxu0
      %v983 = vmul.f32 %v977, 0.5
      %v984 = vmul.f32 %v980, 0.5
      %v985 = vadd.f32 %v983, %v491
      %v986 = vadd.f32 %v984, %v492
      %v987 = vsel %vm626, %v985, -inf
      %988 = vmax.xlane.f32.xlu0 %v987
      %v989 = vpop.xlane.xlu0 %988
      %v990 = vsel %vm630, %v986, -inf
      %991 = vmax.xlane.f32.xlu0 %v990
      %v992 = vpop.xlane.xlu0 %991
      %v993 = vsub.f32 %v985, %v989
      %v994 = vsub.f32 %v986, %v992
      %v995 = vmul.f32 %v993, 1.442695
      %v996 = vpow.pop %v995
      %v997 = vmul.f32 %v994, 1.442695
      %v998 = vpow.pop %v997
      %v999 = vsel %vm626, %v996, 0.0
      %1000 = vadd.xlane.f32.xlu0 %v999
      %v1001 = vpop.xlane.xlu0 %1000
      %v1002 = vsel %vm630, %v998, 0.0
      %1003 = vadd.xlane.f32.xlu0 %v1002
      %v1004 = vpop.xlane.xlu0 %1003
      %v1005 = vrcp.pop %v1001
      %v1006 = vrcp.pop %v1004
      %v1007 = vmul.f32 %v996, %v1005
      %v1008 = vmul.f32 %v998, %v1006
      %v1009 = vpack.c.bf16 %v1008, %v1007
      %1010 = vrot.lane.b32.xlu0 %v570, 56
      %v1011 = vpop.permute.xlu0 %1010
      %v1013 = vsel %vm626, %v1009, 0
      %v1016 = vsel %vm656, %v1011, 0
      %1018 = vmatprep.subr.bf16.mxu0 0
      %1019 = vmatpush1.bf16.msra.mxu0 0
      %1020 = vmatprep.subr.bf16.mxu0 0
      %1021 = vmatpush1.bf16.msra.mxu0 0
      %1022 = vmatprep.subr.bf16.mxu0 0
      %1023 = vmatpush1.bf16.msra.mxu0 0
      %1024 = vmatprep.subr.bf16.mxu0 0
      %1025 = vmatpush1.bf16.msra.mxu0 0
      %1026 = vmatprep.subr.bf16.mxu0 0
      %1027 = vmatpush1.bf16.msra.mxu0 0
      %1028 = vmatprep.subr.bf16.mxu0 0
      %1029 = vmatpush1.bf16.msra.mxu0 0
      %1030 = vmatprep.subr.bf16.mxu0 0
      %1031 = vmatpush1.bf16.msra.mxu0 0
      %1032 = vmatprep.subr.bf16.mxu0 0
      %1033 = vmatpush1.bf16.msra.mxu0 %v1016
      %1034 = vmatprep.subr.bf16.mxu0 0
      %1035 = vmatpush2.bf16.msra.mxu0 0
      %1036 = vmatprep.subr.bf16.mxu0 0
      %1037 = vmatpush2.bf16.msra.mxu0 0
      %1038 = vmatprep.subr.bf16.mxu0 0
      %1039 = vmatpush2.bf16.msra.mxu0 0
      %1040 = vmatprep.subr.bf16.mxu0 0
      %1041 = vmatpush2.bf16.msra.mxu0 0
      %1042 = vmatprep.subr.bf16.mxu0 0
      %1043 = vmatpush2.bf16.msra.mxu0 0
      %1044 = vmatprep.subr.bf16.mxu0 0
      %1045 = vmatpush2.bf16.msra.mxu0 0
      %1046 = vmatprep.subr.bf16.mxu0 0
      %1047 = vmatpush2.bf16.msra.mxu0 0
      %1048 = vmatprep.subr.bf16.mxu0 0
      %1049 = vmatpush2.bf16.msra.mxu0 0
      %1050 = vmatprep.mubr.bf16.mxu0 0
      %1051 = vmatmul.mubr.bf16.gmra.mxu0 %v1013
      %v1052 = vpop.f32.mrf.mxu0
      %v1053 = vadd.f32 0.0, %v1052
      %v1054 = vpop.f32.mrf.mxu0
      %v1055 = vpop.f32.mrf.mxu0
      %v1056 = vadd.f32 0.0, %v1055
      %v1057 = vpop.f32.mrf.mxu0
      %1058 = vdwg.mxu0
      %v1059 = vpack.c.bf16 %v1056, %v1053
      %s1060 = scalar_lea.vmem %s4, 4
      %v1061 = vld [vmem:[%s1060] sm:$0x3]
      %v1063 = vsel %vm574, %v1059, 0
      %v1066 = vsel %vm706, %v1061, 0
      %1068 = vmatprep.subr.bf16.mxu0 0
      %1069 = vmatpush1.bf16.msra.mxu0 0
      %1070 = vmatprep.subr.bf16.mxu0 0
      %1071 = vmatpush1.bf16.msra.mxu0 0
      %1072 = vmatprep.subr.bf16.mxu0 0
      %1073 = vmatpush1.bf16.msra.mxu0 0
      %1074 = vmatprep.subr.bf16.mxu0 0
      %1075 = vmatpush1.bf16.msra.mxu0 0
      %1076 = vmatprep.subr.bf16.mxu0 0
      %1077 = vmatpush1.bf16.msra.mxu0 0
      %1078 = vmatprep.subr.bf16.mxu0 0
      %1079 = vmatpush1.bf16.msra.mxu0 0
      %1080 = vmatprep.subr.bf16.mxu0 0
      %1081 = vmatpush1.bf16.msra.mxu0 0
      %1082 = vmatprep.subr.bf16.mxu0 0
      %1083 = vmatpush1.bf16.msra.mxu0 %v1066
      %1084 = vmatprep.subr.bf16.mxu0 0
      %1085 = vmatpush2.bf16.msra.mxu0 0
      %1086 = vmatprep.subr.bf16.mxu0 0
      %1087 = vmatpush2.bf16.msra.mxu0 0
      %1088 = vmatprep.subr.bf16.mxu0 0
      %1089 = vmatpush2.bf16.msra.mxu0 0
      %1090 = vmatprep.subr.bf16.mxu0 0
      %1091 = vmatpush2.bf16.msra.mxu0 0
      %1092 = vmatprep.subr.bf16.mxu0 0
      %1093 = vmatpush2.bf16.msra.mxu0 0
      %1094 = vmatprep.subr.bf16.mxu0 0
      %1095 = vmatpush2.bf16.msra.mxu0 0
      %1096 = vmatprep.subr.bf16.mxu0 0
      %1097 = vmatpush2.bf16.msra.mxu0 0
      %1098 = vmatprep.subr.bf16.mxu0 0
      %1099 = vmatpush2.bf16.msra.mxu0 0
      %1100 = vmatprep.mubr.bf16.mxu0 0
      %1101 = vmatmul.mubr.bf16.gmra.mxu0 %v1063
      %v1102 = vpop.f32.mrf.mxu0
      %v1103 = vadd.f32 0.0, %v1102
      %v1104 = vpop.f32.mrf.mxu0
      %v1105 = vpop.f32.mrf.mxu0
      %v1106 = vadd.f32 0.0, %v1105
      %v1107 = vpop.f32.mrf.mxu0
      %1108 = vdwg.mxu0
      %v1109 = vadd.f32 %v930, %v1103
      %v1110 = vadd.f32 %v931, %v1106
      %1111 = vrot.lane.b32.xlu0 %v570, 116
      %v1112 = vpop.permute.xlu0 %1111
      %1113 = vrot.lane.b32.xlu0 %v570, 84
      %v1114 = vpop.permute.xlu0 %1113
      %v1116 = vsel %vm574, %v1112, 0
      %v1119 = vsel %vm574, %v1114, 0
      %1121 = vmatprep.subr.bf16.mxu0 0
      %1122 = vmatpush1.bf16.xpose.msra.mxu0 0
      %1123 = vmatprep.subr.bf16.mxu0 0
      %1124 = vmatpush1.bf16.xpose.msra.mxu0 0
      %1125 = vmatprep.subr.bf16.mxu0 0
      %1126 = vmatpush1.bf16.xpose.msra.mxu0 0
      %1127 = vmatprep.subr.bf16.mxu0 0
      %1128 = vmatpush1.bf16.xpose.msra.mxu0 0
      %1129 = vmatprep.subr.bf16.mxu0 0
      %1130 = vmatpush1.bf16.xpose.msra.mxu0 0
      %1131 = vmatprep.subr.bf16.mxu0 0
      %1132 = vmatpush1.bf16.xpose.msra.mxu0 0
      %1133 = vmatprep.subr.bf16.mxu0 0
      %1134 = vmatpush1.bf16.xpose.msra.mxu0 0
      %1135 = vmatprep.subr.bf16.mxu0 0
      %1136 = vmatpush1.bf16.xpose.msra.mxu0 %v1119
      %1137 = vmatprep.subr.bf16.mxu0 0
      %1138 = vmatpush2.bf16.xpose.msra.mxu0 0
      %1139 = vmatprep.subr.bf16.mxu0 0
      %1140 = vmatpush2.bf16.xpose.msra.mxu0 0
      %1141 = vmatprep.subr.bf16.mxu0 0
      %1142 = vmatpush2.bf16.xpose.msra.mxu0 0
      %1143 = vmatprep.subr.bf16.mxu0 0
      %1144 = vmatpush2.bf16.xpose.msra.mxu0 0
      %1145 = vmatprep.subr.bf16.mxu0 0
      %1146 = vmatpush2.bf16.xpose.msra.mxu0 0
      %1147 = vmatprep.subr.bf16.mxu0 0
      %1148 = vmatpush2.bf16.xpose.msra.mxu0 0
      %1149 = vmatprep.subr.bf16.mxu0 0
      %1150 = vmatpush2.bf16.xpose.msra.mxu0 0
      %1151 = vmatprep.subr.bf16.mxu0 0
      %1152 = vmatpush2.bf16.xpose.msra.mxu0 0
      %1153 = vmatprep.mubr.bf16.mxu0 0
      %1154 = vmatmul.mubr.bf16.gmra.mxu0 %v1116
      %v1155 = vpop.f32.mrf.mxu0
      %v1156 = vadd.f32 0.0, %v1155
      %v1157 = vpop.f32.mrf.mxu0
      %v1158 = vpop.f32.mrf.mxu0
      %v1159 = vadd.f32 0.0, %v1158
      %v1160 = vpop.f32.mrf.mxu0
      %1161 = vdwg.mxu0
      %v1162 = vmul.f32 %v1156, 0.5
      %v1163 = vmul.f32 %v1159, 0.5
      %v1164 = vadd.f32 %v1162, %v491
      %v1165 = vadd.f32 %v1163, %v492
      %v1166 = vsel %vm626, %v1164, -inf
      %1167 = vmax.xlane.f32.xlu0 %v1166
      %v1168 = vpop.xlane.xlu0 %1167
      %v1169 = vsel %vm630, %v1165, -inf
      %1170 = vmax.xlane.f32.xlu0 %v1169
      %v1171 = vpop.xlane.xlu0 %1170
      %v1172 = vsub.f32 %v1164, %v1168
      %v1173 = vsub.f32 %v1165, %v1171
      %v1174 = vmul.f32 %v1172, 1.442695
      %v1175 = vpow.pop %v1174
      %v1176 = vmul.f32 %v1173, 1.442695
      %v1177 = vpow.pop %v1176
      %v1178 = vsel %vm626, %v1175, 0.0
      %1179 = vadd.xlane.f32.xlu0 %v1178
      %v1180 = vpop.xlane.xlu0 %1179
      %v1181 = vsel %vm630, %v1177, 0.0
      %1182 = vadd.xlane.f32.xlu0 %v1181
      %v1183 = vpop.xlane.xlu0 %1182
      %v1184 = vrcp.pop %v1180
      %v1185 = vrcp.pop %v1183
      %v1186 = vmul.f32 %v1175, %v1184
      %v1187 = vmul.f32 %v1177, %v1185
      %v1188 = vpack.c.bf16 %v1187, %v1186
      %1189 = vrot.lane.b32.xlu0 %v570, 52
      %v1190 = vpop.permute.xlu0 %1189
      %v1192 = vsel %vm626, %v1188, 0
      %v1195 = vsel %vm656, %v1190, 0
      %1197 = vmatprep.subr.bf16.mxu0 0
      %1198 = vmatpush1.bf16.msra.mxu0 0
      %1199 = vmatprep.subr.bf16.mxu0 0
      %1200 = vmatpush1.bf16.msra.mxu0 0
      %1201 = vmatprep.subr.bf16.mxu0 0
      %1202 = vmatpush1.bf16.msra.mxu0 0
      %1203 = vmatprep.subr.bf16.mxu0 0
      %1204 = vmatpush1.bf16.msra.mxu0 0
      %1205 = vmatprep.subr.bf16.mxu0 0
      %1206 = vmatpush1.bf16.msra.mxu0 0
      %1207 = vmatprep.subr.bf16.mxu0 0
      %1208 = vmatpush1.bf16.msra.mxu0 0
      %1209 = vmatprep.subr.bf16.mxu0 0
      %1210 = vmatpush1.bf16.msra.mxu0 0
      %1211 = vmatprep.subr.bf16.mxu0 0
      %1212 = vmatpush1.bf16.msra.mxu0 %v1195
      %1213 = vmatprep.subr.bf16.mxu0 0
      %1214 = vmatpush2.bf16.msra.mxu0 0
      %1215 = vmatprep.subr.bf16.mxu0 0
      %1216 = vmatpush2.bf16.msra.mxu0 0
      %1217 = vmatprep.subr.bf16.mxu0 0
      %1218 = vmatpush2.bf16.msra.mxu0 0
      %1219 = vmatprep.subr.bf16.mxu0 0
      %1220 = vmatpush2.bf16.msra.mxu0 0
      %1221 = vmatprep.subr.bf16.mxu0 0
      %1222 = vmatpush2.bf16.msra.mxu0 0
      %1223 = vmatprep.subr.bf16.mxu0 0
      %1224 = vmatpush2.bf16.msra.mxu0 0
      %1225 = vmatprep.subr.bf16.mxu0 0
      %1226 = vmatpush2.bf16.msra.mxu0 0
      %1227 = vmatprep.subr.bf16.mxu0 0
      %1228 = vmatpush2.bf16.msra.mxu0 0
      %1229 = vmatprep.mubr.bf16.mxu0 0
      %1230 = vmatmul.mubr.bf16.gmra.mxu0 %v1192
      %v1231 = vpop.f32.mrf.mxu0
      %v1232 = vadd.f32 0.0, %v1231
      %v1233 = vpop.f32.mrf.mxu0
      %v1234 = vpop.f32.mrf.mxu0
      %v1235 = vadd.f32 0.0, %v1234
      %v1236 = vpop.f32.mrf.mxu0
      %1237 = vdwg.mxu0
      %v1238 = vpack.c.bf16 %v1235, %v1232
      %s1239 = scalar_lea.vmem %s4, 6
      %v1240 = vld [vmem:[%s1239] sm:$0x3]
      %v1242 = vsel %vm574, %v1238, 0
      %v1245 = vsel %vm706, %v1240, 0
      %1247 = vmatprep.subr.bf16.mxu0 0
      %1248 = vmatpush1.bf16.msra.mxu0 0
      %1249 = vmatprep.subr.bf16.mxu0 0
      %1250 = vmatpush1.bf16.msra.mxu0 0
      %1251 = vmatprep.subr.bf16.mxu0 0
      %1252 = vmatpush1.bf16.msra.mxu0 0
      %1253 = vmatprep.subr.bf16.mxu0 0
      %1254 = vmatpush1.bf16.msra.mxu0 0
      %1255 = vmatprep.subr.bf16.mxu0 0
      %1256 = vmatpush1.bf16.msra.mxu0 0
      %1257 = vmatprep.subr.bf16.mxu0 0
      %1258 = vmatpush1.bf16.msra.mxu0 0
      %1259 = vmatprep.subr.bf16.mxu0 0
      %1260 = vmatpush1.bf16.msra.mxu0 0
      %1261 = vmatprep.subr.bf16.mxu0 0
      %1262 = vmatpush1.bf16.msra.mxu0 %v1245
      %1263 = vmatprep.subr.bf16.mxu0 0
      %1264 = vmatpush2.bf16.msra.mxu0 0
      %1265 = vmatprep.subr.bf16.mxu0 0
      %1266 = vmatpush2.bf16.msra.mxu0 0
      %1267 = vmatprep.subr.bf16.mxu0 0
      %1268 = vmatpush2.bf16.msra.mxu0 0
      %1269 = vmatprep.subr.bf16.mxu0 0
      %1270 = vmatpush2.bf16.msra.mxu0 0
      %1271 = vmatprep.subr.bf16.mxu0 0
      %1272 = vmatpush2.bf16.msra.mxu0 0
      %1273 = vmatprep.subr.bf16.mxu0 0
      %1274 = vmatpush2.bf16.msra.mxu0 0
      %1275 = vmatprep.subr.bf16.mxu0 0
      %1276 = vmatpush2.bf16.msra.mxu0 0
      %1277 = vmatprep.subr.bf16.mxu0 0
      %1278 = vmatpush2.bf16.msra.mxu0 0
      %1279 = vmatprep.mubr.bf16.mxu0 0
      %1280 = vmatmul.mubr.bf16.gmra.mxu0 %v1242
      %v1281 = vpop.f32.mrf.mxu0
      %v1282 = vadd.f32 0.0, %v1281
      %v1283 = vpop.f32.mrf.mxu0
      %v1284 = vpop.f32.mrf.mxu0
      %v1285 = vadd.f32 0.0, %v1284
      %v1286 = vpop.f32.mrf.mxu0
      %1287 = vdwg.mxu0
      %v1288 = vadd.f32 %v1109, %v1282
      %v1289 = vadd.f32 %v1110, %v1285
      %1290 = vrot.lane.b32.xlu0 %v570, 112
      %v1291 = vpop.permute.xlu0 %1290
      %1292 = vrot.lane.b32.xlu0 %v570, 80
      %v1293 = vpop.permute.xlu0 %1292
      %v1295 = vsel %vm574, %v1291, 0
      %v1298 = vsel %vm574, %v1293, 0
      %1300 = vmatprep.subr.bf16.mxu0 0
      %1301 = vmatpush1.bf16.xpose.msra.mxu0 0
      %1302 = vmatprep.subr.bf16.mxu0 0
      %1303 = vmatpush1.bf16.xpose.msra.mxu0 0
      %1304 = vmatprep.subr.bf16.mxu0 0
      %1305 = vmatpush1.bf16.xpose.msra.mxu0 0
      %1306 = vmatprep.subr.bf16.mxu0 0
      %1307 = vmatpush1.bf16.xpose.msra.mxu0 0
      %1308 = vmatprep.subr.bf16.mxu0 0
      %1309 = vmatpush1.bf16.xpose.msra.mxu0 0
      %1310 = vmatprep.subr.bf16.mxu0 0
      %1311 = vmatpush1.bf16.xpose.msra.mxu0 0
      %1312 = vmatprep.subr.bf16.mxu0 0
      %1313 = vmatpush1.bf16.xpose.msra.mxu0 0
      %1314 = vmatprep.subr.bf16.mxu0 0
      %1315 = vmatpush1.bf16.xpose.msra.mxu0 %v1298
      %1316 = vmatprep.subr.bf16.mxu0 0
      %1317 = vmatpush2.bf16.xpose.msra.mxu0 0
      %1318 = vmatprep.subr.bf16.mxu0 0
      %1319 = vmatpush2.bf16.xpose.msra.mxu0 0
      %1320 = vmatprep.subr.bf16.mxu0 0
      %1321 = vmatpush2.bf16.xpose.msra.mxu0 0
      %1322 = vmatprep.subr.bf16.mxu0 0
      %1323 = vmatpush2.bf16.xpose.msra.mxu0 0
      %1324 = vmatprep.subr.bf16.mxu0 0
      %1325 = vmatpush2.bf16.xpose.msra.mxu0 0
      %1326 = vmatprep.subr.bf16.mxu0 0
      %1327 = vmatpush2.bf16.xpose.msra.mxu0 0
      %1328 = vmatprep.subr.bf16.mxu0 0
      %1329 = vmatpush2.bf16.xpose.msra.mxu0 0
      %1330 = vmatprep.subr.bf16.mxu0 0
      %1331 = vmatpush2.bf16.xpose.msra.mxu0 0
      %1332 = vmatprep.mubr.bf16.mxu0 0
      %1333 = vmatmul.mubr.bf16.gmra.mxu0 %v1295
      %v1334 = vpop.f32.mrf.mxu0
      %v1335 = vadd.f32 0.0, %v1334
      %v1336 = vpop.f32.mrf.mxu0
      %v1337 = vpop.f32.mrf.mxu0
      %v1338 = vadd.f32 0.0, %v1337
      %v1339 = vpop.f32.mrf.mxu0
      %1340 = vdwg.mxu0
      %v1341 = vmul.f32 %v1335, 0.5
      %v1342 = vmul.f32 %v1338, 0.5
      %v1343 = vadd.f32 %v1341, %v491
      %v1344 = vadd.f32 %v1342, %v492
      %v1345 = vsel %vm626, %v1343, -inf
      %1346 = vmax.xlane.f32.xlu0 %v1345
      %v1347 = vpop.xlane.xlu0 %1346
      %v1348 = vsel %vm630, %v1344, -inf
      %1349 = vmax.xlane.f32.xlu0 %v1348
      %v1350 = vpop.xlane.xlu0 %1349
      %v1351 = vsub.f32 %v1343, %v1347
      %v1352 = vsub.f32 %v1344, %v1350
      %v1353 = vmul.f32 %v1351, 1.442695
      %v1354 = vpow.pop %v1353
      %v1355 = vmul.f32 %v1352, 1.442695
      %v1356 = vpow.pop %v1355
      %v1357 = vsel %vm626, %v1354, 0.0
      %1358 = vadd.xlane.f32.xlu0 %v1357
      %v1359 = vpop.xlane.xlu0 %1358
      %v1360 = vsel %vm630, %v1356, 0.0
      %1361 = vadd.xlane.f32.xlu0 %v1360
      %v1362 = vpop.xlane.xlu0 %1361
      %v1363 = vrcp.pop %v1359
      %v1364 = vrcp.pop %v1362
      %v1365 = vmul.f32 %v1354, %v1363
      %v1366 = vmul.f32 %v1356, %v1364
      %v1367 = vpack.c.bf16 %v1366, %v1365
      %1368 = vrot.lane.b32.xlu0 %v570, 48
      %v1369 = vpop.permute.xlu0 %1368
      %v1371 = vsel %vm626, %v1367, 0
      %v1374 = vsel %vm656, %v1369, 0
      %1376 = vmatprep.subr.bf16.mxu0 0
      %1377 = vmatpush1.bf16.msra.mxu0 0
      %1378 = vmatprep.subr.bf16.mxu0 0
      %1379 = vmatpush1.bf16.msra.mxu0 0
      %1380 = vmatprep.subr.bf16.mxu0 0
      %1381 = vmatpush1.bf16.msra.mxu0 0
      %1382 = vmatprep.subr.bf16.mxu0 0
      %1383 = vmatpush1.bf16.msra.mxu0 0
      %1384 = vmatprep.subr.bf16.mxu0 0
      %1385 = vmatpush1.bf16.msra.mxu0 0
      %1386 = vmatprep.subr.bf16.mxu0 0
      %1387 = vmatpush1.bf16.msra.mxu0 0
      %1388 = vmatprep.subr.bf16.mxu0 0
      %1389 = vmatpush1.bf16.msra.mxu0 0
      %1390 = vmatprep.subr.bf16.mxu0 0
      %1391 = vmatpush1.bf16.msra.mxu0 %v1374
      %1392 = vmatprep.subr.bf16.mxu0 0
      %1393 = vmatpush2.bf16.msra.mxu0 0
      %1394 = vmatprep.subr.bf16.mxu0 0
      %1395 = vmatpush2.bf16.msra.mxu0 0
      %1396 = vmatprep.subr.bf16.mxu0 0
      %1397 = vmatpush2.bf16.msra.mxu0 0
      %1398 = vmatprep.subr.bf16.mxu0 0
      %1399 = vmatpush2.bf16.msra.mxu0 0
      %1400 = vmatprep.subr.bf16.mxu0 0
      %1401 = vmatpush2.bf16.msra.mxu0 0
      %1402 = vmatprep.subr.bf16.mxu0 0
      %1403 = vmatpush2.bf16.msra.mxu0 0
      %1404 = vmatprep.subr.bf16.mxu0 0
      %1405 = vmatpush2.bf16.msra.mxu0 0
      %1406 = vmatprep.subr.bf16.mxu0 0
      %1407 = vmatpush2.bf16.msra.mxu0 0
      %1408 = vmatprep.mubr.bf16.mxu0 0
      %1409 = vmatmul.mubr.bf16.gmra.mxu0 %v1371
      %v1410 = vpop.f32.mrf.mxu0
      %v1411 = vadd.f32 0.0, %v1410
      %v1412 = vpop.f32.mrf.mxu0
      %v1413 = vpop.f32.mrf.mxu0
      %v1414 = vadd.f32 0.0, %v1413
      %v1415 = vpop.f32.mrf.mxu0
      %1416 = vdwg.mxu0
      %v1417 = vpack.c.bf16 %v1414, %v1411
      %s1418 = scalar_lea.vmem %s4, 8
      %v1419 = vld [vmem:[%s1418] sm:$0x3]
      %v1421 = vsel %vm574, %v1417, 0
      %v1424 = vsel %vm706, %v1419, 0
      %1426 = vmatprep.subr.bf16.mxu0 0
      %1427 = vmatpush1.bf16.msra.mxu0 0
      %1428 = vmatprep.subr.bf16.mxu0 0
      %1429 = vmatpush1.bf16.msra.mxu0 0
      %1430 = vmatprep.subr.bf16.mxu0 0
      %1431 = vmatpush1.bf16.msra.mxu0 0
      %1432 = vmatprep.subr.bf16.mxu0 0
      %1433 = vmatpush1.bf16.msra.mxu0 0
      %1434 = vmatprep.subr.bf16.mxu0 0
      %1435 = vmatpush1.bf16.msra.mxu0 0
      %1436 = vmatprep.subr.bf16.mxu0 0
      %1437 = vmatpush1.bf16.msra.mxu0 0
      %1438 = vmatprep.subr.bf16.mxu0 0
      %1439 = vmatpush1.bf16.msra.mxu0 0
      %1440 = vmatprep.subr.bf16.mxu0 0
      %1441 = vmatpush1.bf16.msra.mxu0 %v1424
      %1442 = vmatprep.subr.bf16.mxu0 0
      %1443 = vmatpush2.bf16.msra.mxu0 0
      %1444 = vmatprep.subr.bf16.mxu0 0
      %1445 = vmatpush2.bf16.msra.mxu0 0
      %1446 = vmatprep.subr.bf16.mxu0 0
      %1447 = vmatpush2.bf16.msra.mxu0 0
      %1448 = vmatprep.subr.bf16.mxu0 0
      %1449 = vmatpush2.bf16.msra.mxu0 0
      %1450 = vmatprep.subr.bf16.mxu0 0
      %1451 = vmatpush2.bf16.msra.mxu0 0
      %1452 = vmatprep.subr.bf16.mxu0 0
      %1453 = vmatpush2.bf16.msra.mxu0 0
      %1454 = vmatprep.subr.bf16.mxu0 0
      %1455 = vmatpush2.bf16.msra.mxu0 0
      %1456 = vmatprep.subr.bf16.mxu0 0
      %1457 = vmatpush2.bf16.msra.mxu0 0
      %1458 = vmatprep.mubr.bf16.mxu0 0
      %1459 = vmatmul.mubr.bf16.gmra.mxu0 %v1421
      %v1460 = vpop.f32.mrf.mxu0
      %v1461 = vadd.f32 0.0, %v1460
      %v1462 = vpop.f32.mrf.mxu0
      %v1463 = vpop.f32.mrf.mxu0
      %v1464 = vadd.f32 0.0, %v1463
      %v1465 = vpop.f32.mrf.mxu0
      %1466 = vdwg.mxu0
      %v1467 = vadd.f32 %v1288, %v1461
      %v1468 = vadd.f32 %v1289, %v1464
      %1469 = vrot.lane.b32.xlu0 %v570, 108
      %v1470 = vpop.permute.xlu0 %1469
      %1471 = vrot.lane.b32.xlu0 %v570, 76
      %v1472 = vpop.permute.xlu0 %1471
      %v1474 = vsel %vm574, %v1470, 0
      %v1477 = vsel %vm574, %v1472, 0
      %1479 = vmatprep.subr.bf16.mxu0 0
      %1480 = vmatpush1.bf16.xpose.msra.mxu0 0
      %1481 = vmatprep.subr.bf16.mxu0 0
      %1482 = vmatpush1.bf16.xpose.msra.mxu0 0
      %1483 = vmatprep.subr.bf16.mxu0 0
      %1484 = vmatpush1.bf16.xpose.msra.mxu0 0
      %1485 = vmatprep.subr.bf16.mxu0 0
      %1486 = vmatpush1.bf16.xpose.msra.mxu0 0
      %1487 = vmatprep.subr.bf16.mxu0 0
      %1488 = vmatpush1.bf16.xpose.msra.mxu0 0
      %1489 = vmatprep.subr.bf16.mxu0 0
      %1490 = vmatpush1.bf16.xpose.msra.mxu0 0
      %1491 = vmatprep.subr.bf16.mxu0 0
      %1492 = vmatpush1.bf16.xpose.msra.mxu0 0
      %1493 = vmatprep.subr.bf16.mxu0 0
      %1494 = vmatpush1.bf16.xpose.msra.mxu0 %v1477
      %1495 = vmatprep.subr.bf16.mxu0 0
      %1496 = vmatpush2.bf16.xpose.msra.mxu0 0
      %1497 = vmatprep.subr.bf16.mxu0 0
      %1498 = vmatpush2.bf16.xpose.msra.mxu0 0
      %1499 = vmatprep.subr.bf16.mxu0 0
      %1500 = vmatpush2.bf16.xpose.msra.mxu0 0
      %1501 = vmatprep.subr.bf16.mxu0 0
      %1502 = vmatpush2.bf16.xpose.msra.mxu0 0
      %1503 = vmatprep.subr.bf16.mxu0 0
      %1504 = vmatpush2.bf16.xpose.msra.mxu0 0
      %1505 = vmatprep.subr.bf16.mxu0 0
      %1506 = vmatpush2.bf16.xpose.msra.mxu0 0
      %1507 = vmatprep.subr.bf16.mxu0 0
      %1508 = vmatpush2.bf16.xpose.msra.mxu0 0
      %1509 = vmatprep.subr.bf16.mxu0 0
      %1510 = vmatpush2.bf16.xpose.msra.mxu0 0
      %1511 = vmatprep.mubr.bf16.mxu0 0
      %1512 = vmatmul.mubr.bf16.gmra.mxu0 %v1474
      %v1513 = vpop.f32.mrf.mxu0
      %v1514 = vadd.f32 0.0, %v1513
      %v1515 = vpop.f32.mrf.mxu0
      %v1516 = vpop.f32.mrf.mxu0
      %v1517 = vadd.f32 0.0, %v1516
      %v1518 = vpop.f32.mrf.mxu0
      %1519 = vdwg.mxu0
      %v1520 = vmul.f32 %v1514, 0.5
      %v1521 = vmul.f32 %v1517, 0.5
      %v1522 = vadd.f32 %v1520, %v491
      %v1523 = vadd.f32 %v1521, %v492
      %v1524 = vsel %vm626, %v1522, -inf
      %1525 = vmax.xlane.f32.xlu0 %v1524
      %v1526 = vpop.xlane.xlu0 %1525
      %v1527 = vsel %vm630, %v1523, -inf
      %1528 = vmax.xlane.f32.xlu0 %v1527
      %v1529 = vpop.xlane.xlu0 %1528
      %v1530 = vsub.f32 %v1522, %v1526
      %v1531 = vsub.f32 %v1523, %v1529
      %v1532 = vmul.f32 %v1530, 1.442695
      %v1533 = vpow.pop %v1532
      %v1534 = vmul.f32 %v1531, 1.442695
      %v1535 = vpow.pop %v1534
      %v1536 = vsel %vm626, %v1533, 0.0
      %1537 = vadd.xlane.f32.xlu0 %v1536
      %v1538 = vpop.xlane.xlu0 %1537
      %v1539 = vsel %vm630, %v1535, 0.0
      %1540 = vadd.xlane.f32.xlu0 %v1539
      %v1541 = vpop.xlane.xlu0 %1540
      %v1542 = vrcp.pop %v1538
      %v1543 = vrcp.pop %v1541
      %v1544 = vmul.f32 %v1533, %v1542
      %v1545 = vmul.f32 %v1535, %v1543
      %v1546 = vpack.c.bf16 %v1545, %v1544
      %1547 = vrot.lane.b32.xlu0 %v570, 44
      %v1548 = vpop.permute.xlu0 %1547
      %v1550 = vsel %vm626, %v1546, 0
      %v1553 = vsel %vm656, %v1548, 0
      %1555 = vmatprep.subr.bf16.mxu0 0
      %1556 = vmatpush1.bf16.msra.mxu0 0
      %1557 = vmatprep.subr.bf16.mxu0 0
      %1558 = vmatpush1.bf16.msra.mxu0 0
      %1559 = vmatprep.subr.bf16.mxu0 0
      %1560 = vmatpush1.bf16.msra.mxu0 0
      %1561 = vmatprep.subr.bf16.mxu0 0
      %1562 = vmatpush1.bf16.msra.mxu0 0
      %1563 = vmatprep.subr.bf16.mxu0 0
      %1564 = vmatpush1.bf16.msra.mxu0 0
      %1565 = vmatprep.subr.bf16.mxu0 0
      %1566 = vmatpush1.bf16.msra.mxu0 0
      %1567 = vmatprep.subr.bf16.mxu0 0
      %1568 = vmatpush1.bf16.msra.mxu0 0
      %1569 = vmatprep.subr.bf16.mxu0 0
      %1570 = vmatpush1.bf16.msra.mxu0 %v1553
      %1571 = vmatprep.subr.bf16.mxu0 0
      %1572 = vmatpush2.bf16.msra.mxu0 0
      %1573 = vmatprep.subr.bf16.mxu0 0
      %1574 = vmatpush2.bf16.msra.mxu0 0
      %1575 = vmatprep.subr.bf16.mxu0 0
      %1576 = vmatpush2.bf16.msra.mxu0 0
      %1577 = vmatprep.subr.bf16.mxu0 0
      %1578 = vmatpush2.bf16.msra.mxu0 0
      %1579 = vmatprep.subr.bf16.mxu0 0
      %1580 = vmatpush2.bf16.msra.mxu0 0
      %1581 = vmatprep.subr.bf16.mxu0 0
      %1582 = vmatpush2.bf16.msra.mxu0 0
      %1583 = vmatprep.subr.bf16.mxu0 0
      %1584 = vmatpush2.bf16.msra.mxu0 0
      %1585 = vmatprep.subr.bf16.mxu0 0
      %1586 = vmatpush2.bf16.msra.mxu0 0
      %1587 = vmatprep.mubr.bf16.mxu0 0
      %1588 = vmatmul.mubr.bf16.gmra.mxu0 %v1550
      %v1589 = vpop.f32.mrf.mxu0
      %v1590 = vadd.f32 0.0, %v1589
      %v1591 = vpop.f32.mrf.mxu0
      %v1592 = vpop.f32.mrf.mxu0
      %v1593 = vadd.f32 0.0, %v1592
      %v1594 = vpop.f32.mrf.mxu0
      %1595 = vdwg.mxu0
      %v1596 = vpack.c.bf16 %v1593, %v1590
      %s1597 = scalar_lea.vmem %s4, 10
      %v1598 = vld [vmem:[%s1597] sm:$0x3]
      %v1600 = vsel %vm574, %v1596, 0
      %v1603 = vsel %vm706, %v1598, 0
      %1605 = vmatprep.subr.bf16.mxu0 0
      %1606 = vmatpush1.bf16.msra.mxu0 0
      %1607 = vmatprep.subr.bf16.mxu0 0
      %1608 = vmatpush1.bf16.msra.mxu0 0
      %1609 = vmatprep.subr.bf16.mxu0 0
      %1610 = vmatpush1.bf16.msra.mxu0 0
      %1611 = vmatprep.subr.bf16.mxu0 0
      %1612 = vmatpush1.bf16.msra.mxu0 0
      %1613 = vmatprep.subr.bf16.mxu0 0
      %1614 = vmatpush1.bf16.msra.mxu0 0
      %1615 = vmatprep.subr.bf16.mxu0 0
      %1616 = vmatpush1.bf16.msra.mxu0 0
      %1617 = vmatprep.subr.bf16.mxu0 0
      %1618 = vmatpush1.bf16.msra.mxu0 0
      %1619 = vmatprep.subr.bf16.mxu0 0
      %1620 = vmatpush1.bf16.msra.mxu0 %v1603
      %1621 = vmatprep.subr.bf16.mxu0 0
      %1622 = vmatpush2.bf16.msra.mxu0 0
      %1623 = vmatprep.subr.bf16.mxu0 0
      %1624 = vmatpush2.bf16.msra.mxu0 0
      %1625 = vmatprep.subr.bf16.mxu0 0
      %1626 = vmatpush2.bf16.msra.mxu0 0
      %1627 = vmatprep.subr.bf16.mxu0 0
      %1628 = vmatpush2.bf16.msra.mxu0 0
      %1629 = vmatprep.subr.bf16.mxu0 0
      %1630 = vmatpush2.bf16.msra.mxu0 0
      %1631 = vmatprep.subr.bf16.mxu0 0
      %1632 = vmatpush2.bf16.msra.mxu0 0
      %1633 = vmatprep.subr.bf16.mxu0 0
      %1634 = vmatpush2.bf16.msra.mxu0 0
      %1635 = vmatprep.subr.bf16.mxu0 0
      %1636 = vmatpush2.bf16.msra.mxu0 0
      %1637 = vmatprep.mubr.bf16.mxu0 0
      %1638 = vmatmul.mubr.bf16.gmra.mxu0 %v1600
      %v1639 = vpop.f32.mrf.mxu0
      %v1640 = vadd.f32 0.0, %v1639
      %v1641 = vpop.f32.mrf.mxu0
      %v1642 = vpop.f32.mrf.mxu0
      %v1643 = vadd.f32 0.0, %v1642
      %v1644 = vpop.f32.mrf.mxu0
      %1645 = vdwg.mxu0
      %v1646 = vadd.f32 %v1467, %v1640
      %v1647 = vadd.f32 %v1468, %v1643
      %1648 = vrot.lane.b32.xlu0 %v570, 104
      %v1649 = vpop.permute.xlu0 %1648
      %1650 = vrot.lane.b32.xlu0 %v570, 72
      %v1651 = vpop.permute.xlu0 %1650
      %v1653 = vsel %vm574, %v1649, 0
      %v1656 = vsel %vm574, %v1651, 0
      %1658 = vmatprep.subr.bf16.mxu0 0
      %1659 = vmatpush1.bf16.xpose.msra.mxu0 0
      %1660 = vmatprep.subr.bf16.mxu0 0
      %1661 = vmatpush1.bf16.xpose.msra.mxu0 0
      %1662 = vmatprep.subr.bf16.mxu0 0
      %1663 = vmatpush1.bf16.xpose.msra.mxu0 0
      %1664 = vmatprep.subr.bf16.mxu0 0
      %1665 = vmatpush1.bf16.xpose.msra.mxu0 0
      %1666 = vmatprep.subr.bf16.mxu0 0
      %1667 = vmatpush1.bf16.xpose.msra.mxu0 0
      %1668 = vmatprep.subr.bf16.mxu0 0
      %1669 = vmatpush1.bf16.xpose.msra.mxu0 0
      %1670 = vmatprep.subr.bf16.mxu0 0
      %1671 = vmatpush1.bf16.xpose.msra.mxu0 0
      %1672 = vmatprep.subr.bf16.mxu0 0
      %1673 = vmatpush1.bf16.xpose.msra.mxu0 %v1656
      %1674 = vmatprep.subr.bf16.mxu0 0
      %1675 = vmatpush2.bf16.xpose.msra.mxu0 0
      %1676 = vmatprep.subr.bf16.mxu0 0
      %1677 = vmatpush2.bf16.xpose.msra.mxu0 0
      %1678 = vmatprep.subr.bf16.mxu0 0
      %1679 = vmatpush2.bf16.xpose.msra.mxu0 0
      %1680 = vmatprep.subr.bf16.mxu0 0
      %1681 = vmatpush2.bf16.xpose.msra.mxu0 0
      %1682 = vmatprep.subr.bf16.mxu0 0
      %1683 = vmatpush2.bf16.xpose.msra.mxu0 0
      %1684 = vmatprep.subr.bf16.mxu0 0
      %1685 = vmatpush2.bf16.xpose.msra.mxu0 0
      %1686 = vmatprep.subr.bf16.mxu0 0
      %1687 = vmatpush2.bf16.xpose.msra.mxu0 0
      %1688 = vmatprep.subr.bf16.mxu0 0
      %1689 = vmatpush2.bf16.xpose.msra.mxu0 0
      %1690 = vmatprep.mubr.bf16.mxu0 0
      %1691 = vmatmul.mubr.bf16.gmra.mxu0 %v1653
      %v1692 = vpop.f32.mrf.mxu0
      %v1693 = vadd.f32 0.0, %v1692
      %v1694 = vpop.f32.mrf.mxu0
      %v1695 = vpop.f32.mrf.mxu0
      %v1696 = vadd.f32 0.0, %v1695
      %v1697 = vpop.f32.mrf.mxu0
      %1698 = vdwg.mxu0
      %v1699 = vmul.f32 %v1693, 0.5
      %v1700 = vmul.f32 %v1696, 0.5
      %v1701 = vadd.f32 %v1699, %v491
      %v1702 = vadd.f32 %v1700, %v492
      %v1703 = vsel %vm626, %v1701, -inf
      %1704 = vmax.xlane.f32.xlu0 %v1703
      %v1705 = vpop.xlane.xlu0 %1704
      %v1706 = vsel %vm630, %v1702, -inf
      %1707 = vmax.xlane.f32.xlu0 %v1706
      %v1708 = vpop.xlane.xlu0 %1707
      %v1709 = vsub.f32 %v1701, %v1705
      %v1710 = vsub.f32 %v1702, %v1708
      %v1711 = vmul.f32 %v1709, 1.442695
      %v1712 = vpow.pop %v1711
      %v1713 = vmul.f32 %v1710, 1.442695
      %v1714 = vpow.pop %v1713
      %v1715 = vsel %vm626, %v1712, 0.0
      %1716 = vadd.xlane.f32.xlu0 %v1715
      %v1717 = vpop.xlane.xlu0 %1716
      %v1718 = vsel %vm630, %v1714, 0.0
      %1719 = vadd.xlane.f32.xlu0 %v1718
      %v1720 = vpop.xlane.xlu0 %1719
      %v1721 = vrcp.pop %v1717
      %v1722 = vrcp.pop %v1720
      %v1723 = vmul.f32 %v1712, %v1721
      %v1724 = vmul.f32 %v1714, %v1722
      %v1725 = vpack.c.bf16 %v1724, %v1723
      %1726 = vrot.lane.b32.xlu0 %v570, 40
      %v1727 = vpop.permute.xlu0 %1726
      %v1729 = vsel %vm626, %v1725, 0
      %v1732 = vsel %vm656, %v1727, 0
      %1734 = vmatprep.subr.bf16.mxu0 0
      %1735 = vmatpush1.bf16.msra.mxu0 0
      %1736 = vmatprep.subr.bf16.mxu0 0
      %1737 = vmatpush1.bf16.msra.mxu0 0
      %1738 = vmatprep.subr.bf16.mxu0 0
      %1739 = vmatpush1.bf16.msra.mxu0 0
      %1740 = vmatprep.subr.bf16.mxu0 0
      %1741 = vmatpush1.bf16.msra.mxu0 0
      %1742 = vmatprep.subr.bf16.mxu0 0
      %1743 = vmatpush1.bf16.msra.mxu0 0
      %1744 = vmatprep.subr.bf16.mxu0 0
      %1745 = vmatpush1.bf16.msra.mxu0 0
      %1746 = vmatprep.subr.bf16.mxu0 0
      %1747 = vmatpush1.bf16.msra.mxu0 0
      %1748 = vmatprep.subr.bf16.mxu0 0
      %1749 = vmatpush1.bf16.msra.mxu0 %v1732
      %1750 = vmatprep.subr.bf16.mxu0 0
      %1751 = vmatpush2.bf16.msra.mxu0 0
      %1752 = vmatprep.subr.bf16.mxu0 0
      %1753 = vmatpush2.bf16.msra.mxu0 0
      %1754 = vmatprep.subr.bf16.mxu0 0
      %1755 = vmatpush2.bf16.msra.mxu0 0
      %1756 = vmatprep.subr.bf16.mxu0 0
      %1757 = vmatpush2.bf16.msra.mxu0 0
      %1758 = vmatprep.subr.bf16.mxu0 0
      %1759 = vmatpush2.bf16.msra.mxu0 0
      %1760 = vmatprep.subr.bf16.mxu0 0
      %1761 = vmatpush2.bf16.msra.mxu0 0
      %1762 = vmatprep.subr.bf16.mxu0 0
      %1763 = vmatpush2.bf16.msra.mxu0 0
      %1764 = vmatprep.subr.bf16.mxu0 0
      %1765 = vmatpush2.bf16.msra.mxu0 0
      %1766 = vmatprep.mubr.bf16.mxu0 0
      %1767 = vmatmul.mubr.bf16.gmra.mxu0 %v1729
      %v1768 = vpop.f32.mrf.mxu0
      %v1769 = vadd.f32 0.0, %v1768
      %v1770 = vpop.f32.mrf.mxu0
      %v1771 = vpop.f32.mrf.mxu0
      %v1772 = vadd.f32 0.0, %v1771
      %v1773 = vpop.f32.mrf.mxu0
      %1774 = vdwg.mxu0
      %v1775 = vpack.c.bf16 %v1772, %v1769
      %s1776 = scalar_lea.vmem %s4, 12
      %v1777 = vld [vmem:[%s1776] sm:$0x3]
      %v1779 = vsel %vm574, %v1775, 0
      %v1782 = vsel %vm706, %v1777, 0
      %1784 = vmatprep.subr.bf16.mxu0 0
      %1785 = vmatpush1.bf16.msra.mxu0 0
      %1786 = vmatprep.subr.bf16.mxu0 0
      %1787 = vmatpush1.bf16.msra.mxu0 0
      %1788 = vmatprep.subr.bf16.mxu0 0
      %1789 = vmatpush1.bf16.msra.mxu0 0
      %1790 = vmatprep.subr.bf16.mxu0 0
      %1791 = vmatpush1.bf16.msra.mxu0 0
      %1792 = vmatprep.subr.bf16.mxu0 0
      %1793 = vmatpush1.bf16.msra.mxu0 0
      %1794 = vmatprep.subr.bf16.mxu0 0
      %1795 = vmatpush1.bf16.msra.mxu0 0
      %1796 = vmatprep.subr.bf16.mxu0 0
      %1797 = vmatpush1.bf16.msra.mxu0 0
      %1798 = vmatprep.subr.bf16.mxu0 0
      %1799 = vmatpush1.bf16.msra.mxu0 %v1782
      %1800 = vmatprep.subr.bf16.mxu0 0
      %1801 = vmatpush2.bf16.msra.mxu0 0
      %1802 = vmatprep.subr.bf16.mxu0 0
      %1803 = vmatpush2.bf16.msra.mxu0 0
      %1804 = vmatprep.subr.bf16.mxu0 0
      %1805 = vmatpush2.bf16.msra.mxu0 0
      %1806 = vmatprep.subr.bf16.mxu0 0
      %1807 = vmatpush2.bf16.msra.mxu0 0
      %1808 = vmatprep.subr.bf16.mxu0 0
      %1809 = vmatpush2.bf16.msra.mxu0 0
      %1810 = vmatprep.subr.bf16.mxu0 0
      %1811 = vmatpush2.bf16.msra.mxu0 0
      %1812 = vmatprep.subr.bf16.mxu0 0
      %1813 = vmatpush2.bf16.msra.mxu0 0
      %1814 = vmatprep.subr.bf16.mxu0 0
      %1815 = vmatpush2.bf16.msra.mxu0 0
      %1816 = vmatprep.mubr.bf16.mxu0 0
      %1817 = vmatmul.mubr.bf16.gmra.mxu0 %v1779
      %v1818 = vpop.f32.mrf.mxu0
      %v1819 = vadd.f32 0.0, %v1818
      %v1820 = vpop.f32.mrf.mxu0
      %v1821 = vpop.f32.mrf.mxu0
      %v1822 = vadd.f32 0.0, %v1821
      %v1823 = vpop.f32.mrf.mxu0
      %1824 = vdwg.mxu0
      %v1825 = vadd.f32 %v1646, %v1819
      %v1826 = vadd.f32 %v1647, %v1822
      %1827 = vrot.lane.b32.xlu0 %v570, 100
      %v1828 = vpop.permute.xlu0 %1827
      %1829 = vrot.lane.b32.xlu0 %v570, 68
      %v1830 = vpop.permute.xlu0 %1829
      %v1832 = vsel %vm574, %v1828, 0
      %v1835 = vsel %vm574, %v1830, 0
      %1837 = vmatprep.subr.bf16.mxu0 0
      %1838 = vmatpush1.bf16.xpose.msra.mxu0 0
      %1839 = vmatprep.subr.bf16.mxu0 0
      %1840 = vmatpush1.bf16.xpose.msra.mxu0 0
      %1841 = vmatprep.subr.bf16.mxu0 0
      %1842 = vmatpush1.bf16.xpose.msra.mxu0 0
      %1843 = vmatprep.subr.bf16.mxu0 0
      %1844 = vmatpush1.bf16.xpose.msra.mxu0 0
      %1845 = vmatprep.subr.bf16.mxu0 0
      %1846 = vmatpush1.bf16.xpose.msra.mxu0 0
      %1847 = vmatprep.subr.bf16.mxu0 0
      %1848 = vmatpush1.bf16.xpose.msra.mxu0 0
      %1849 = vmatprep.subr.bf16.mxu0 0
      %1850 = vmatpush1.bf16.xpose.msra.mxu0 0
      %1851 = vmatprep.subr.bf16.mxu0 0
      %1852 = vmatpush1.bf16.xpose.msra.mxu0 %v1835
      %1853 = vmatprep.subr.bf16.mxu0 0
      %1854 = vmatpush2.bf16.xpose.msra.mxu0 0
      %1855 = vmatprep.subr.bf16.mxu0 0
      %1856 = vmatpush2.bf16.xpose.msra.mxu0 0
      %1857 = vmatprep.subr.bf16.mxu0 0
      %1858 = vmatpush2.bf16.xpose.msra.mxu0 0
      %1859 = vmatprep.subr.bf16.mxu0 0
      %1860 = vmatpush2.bf16.xpose.msra.mxu0 0
      %1861 = vmatprep.subr.bf16.mxu0 0
      %1862 = vmatpush2.bf16.xpose.msra.mxu0 0
      %1863 = vmatprep.subr.bf16.mxu0 0
      %1864 = vmatpush2.bf16.xpose.msra.mxu0 0
      %1865 = vmatprep.subr.bf16.mxu0 0
      %1866 = vmatpush2.bf16.xpose.msra.mxu0 0
      %1867 = vmatprep.subr.bf16.mxu0 0
      %1868 = vmatpush2.bf16.xpose.msra.mxu0 0
      %1869 = vmatprep.mubr.bf16.mxu0 0
      %1870 = vmatmul.mubr.bf16.gmra.mxu0 %v1832
      %v1871 = vpop.f32.mrf.mxu0
      %v1872 = vadd.f32 0.0, %v1871
      %v1873 = vpop.f32.mrf.mxu0
      %v1874 = vpop.f32.mrf.mxu0
      %v1875 = vadd.f32 0.0, %v1874
      %v1876 = vpop.f32.mrf.mxu0
      %1877 = vdwg.mxu0
      %v1878 = vmul.f32 %v1872, 0.5
      %v1879 = vmul.f32 %v1875, 0.5
      %v1880 = vadd.f32 %v1878, %v491
      %v1881 = vadd.f32 %v1879, %v492
      %v1882 = vsel %vm626, %v1880, -inf
      %1883 = vmax.xlane.f32.xlu0 %v1882
      %v1884 = vpop.xlane.xlu0 %1883
      %v1885 = vsel %vm630, %v1881, -inf
      %1886 = vmax.xlane.f32.xlu0 %v1885
      %v1887 = vpop.xlane.xlu0 %1886
      %v1888 = vsub.f32 %v1880, %v1884
      %v1889 = vsub.f32 %v1881, %v1887
      %v1890 = vmul.f32 %v1888, 1.442695
      %v1891 = vpow.pop %v1890
      %v1892 = vmul.f32 %v1889, 1.442695
      %v1893 = vpow.pop %v1892
      %v1894 = vsel %vm626, %v1891, 0.0
      %1895 = vadd.xlane.f32.xlu0 %v1894
      %v1896 = vpop.xlane.xlu0 %1895
      %v1897 = vsel %vm630, %v1893, 0.0
      %1898 = vadd.xlane.f32.xlu0 %v1897
      %v1899 = vpop.xlane.xlu0 %1898
      %v1900 = vrcp.pop %v1896
      %v1901 = vrcp.pop %v1899
      %v1902 = vmul.f32 %v1891, %v1900
      %v1903 = vmul.f32 %v1893, %v1901
      %v1904 = vpack.c.bf16 %v1903, %v1902
      %1905 = vrot.lane.b32.xlu0 %v570, 36
      %v1906 = vpop.permute.xlu0 %1905
      %v1908 = vsel %vm626, %v1904, 0
      %v1911 = vsel %vm656, %v1906, 0
      %1913 = vmatprep.subr.bf16.mxu0 0
      %1914 = vmatpush1.bf16.msra.mxu0 0
      %1915 = vmatprep.subr.bf16.mxu0 0
      %1916 = vmatpush1.bf16.msra.mxu0 0
      %1917 = vmatprep.subr.bf16.mxu0 0
      %1918 = vmatpush1.bf16.msra.mxu0 0
      %1919 = vmatprep.subr.bf16.mxu0 0
      %1920 = vmatpush1.bf16.msra.mxu0 0
      %1921 = vmatprep.subr.bf16.mxu0 0
      %1922 = vmatpush1.bf16.msra.mxu0 0
      %1923 = vmatprep.subr.bf16.mxu0 0
      %1924 = vmatpush1.bf16.msra.mxu0 0
      %1925 = vmatprep.subr.bf16.mxu0 0
      %1926 = vmatpush1.bf16.msra.mxu0 0
      %1927 = vmatprep.subr.bf16.mxu0 0
      %1928 = vmatpush1.bf16.msra.mxu0 %v1911
      %1929 = vmatprep.subr.bf16.mxu0 0
      %1930 = vmatpush2.bf16.msra.mxu0 0
      %1931 = vmatprep.subr.bf16.mxu0 0
      %1932 = vmatpush2.bf16.msra.mxu0 0
      %1933 = vmatprep.subr.bf16.mxu0 0
      %1934 = vmatpush2.bf16.msra.mxu0 0
      %1935 = vmatprep.subr.bf16.mxu0 0
      %1936 = vmatpush2.bf16.msra.mxu0 0
      %1937 = vmatprep.subr.bf16.mxu0 0
      %1938 = vmatpush2.bf16.msra.mxu0 0
      %1939 = vmatprep.subr.bf16.mxu0 0
      %1940 = vmatpush2.bf16.msra.mxu0 0
      %1941 = vmatprep.subr.bf16.mxu0 0
      %1942 = vmatpush2.bf16.msra.mxu0 0
      %1943 = vmatprep.subr.bf16.mxu0 0
      %1944 = vmatpush2.bf16.msra.mxu0 0
      %1945 = vmatprep.mubr.bf16.mxu0 0
      %1946 = vmatmul.mubr.bf16.gmra.mxu0 %v1908
      %v1947 = vpop.f32.mrf.mxu0
      %v1948 = vadd.f32 0.0, %v1947
      %v1949 = vpop.f32.mrf.mxu0
      %v1950 = vpop.f32.mrf.mxu0
      %v1951 = vadd.f32 0.0, %v1950
      %v1952 = vpop.f32.mrf.mxu0
      %1953 = vdwg.mxu0
      %v1954 = vpack.c.bf16 %v1951, %v1948
      %s1955 = scalar_lea.vmem %s4, 14
      %v1956 = vld [vmem:[%s1955] sm:$0x3]
      %v1958 = vsel %vm574, %v1954, 0
      %v1961 = vsel %vm706, %v1956, 0
      %1963 = vmatprep.subr.bf16.mxu0 0
      %1964 = vmatpush1.bf16.msra.mxu0 0
      %1965 = vmatprep.subr.bf16.mxu0 0
      %1966 = vmatpush1.bf16.msra.mxu0 0
      %1967 = vmatprep.subr.bf16.mxu0 0
      %1968 = vmatpush1.bf16.msra.mxu0 0
      %1969 = vmatprep.subr.bf16.mxu0 0
      %1970 = vmatpush1.bf16.msra.mxu0 0
      %1971 = vmatprep.subr.bf16.mxu0 0
      %1972 = vmatpush1.bf16.msra.mxu0 0
      %1973 = vmatprep.subr.bf16.mxu0 0
      %1974 = vmatpush1.bf16.msra.mxu0 0
      %1975 = vmatprep.subr.bf16.mxu0 0
      %1976 = vmatpush1.bf16.msra.mxu0 0
      %1977 = vmatprep.subr.bf16.mxu0 0
      %1978 = vmatpush1.bf16.msra.mxu0 %v1961
      %1979 = vmatprep.subr.bf16.mxu0 0
      %1980 = vmatpush2.bf16.msra.mxu0 0
      %1981 = vmatprep.subr.bf16.mxu0 0
      %1982 = vmatpush2.bf16.msra.mxu0 0
      %1983 = vmatprep.subr.bf16.mxu0 0
      %1984 = vmatpush2.bf16.msra.mxu0 0
      %1985 = vmatprep.subr.bf16.mxu0 0
      %1986 = vmatpush2.bf16.msra.mxu0 0
      %1987 = vmatprep.subr.bf16.mxu0 0
      %1988 = vmatpush2.bf16.msra.mxu0 0
      %1989 = vmatprep.subr.bf16.mxu0 0
      %1990 = vmatpush2.bf16.msra.mxu0 0
      %1991 = vmatprep.subr.bf16.mxu0 0
      %1992 = vmatpush2.bf16.msra.mxu0 0
      %1993 = vmatprep.subr.bf16.mxu0 0
      %1994 = vmatpush2.bf16.msra.mxu0 0
      %1995 = vmatprep.mubr.bf16.mxu0 0
      %1996 = vmatmul.mubr.bf16.gmra.mxu0 %v1958
      %v1997 = vpop.f32.mrf.mxu0
      %v1998 = vadd.f32 0.0, %v1997
      %v1999 = vpop.f32.mrf.mxu0
      %v2000 = vpop.f32.mrf.mxu0
      %v2001 = vadd.f32 0.0, %v2000
      %v2002 = vpop.f32.mrf.mxu0
      %2003 = vdwg.mxu0
      %v2004 = vadd.f32 %v1825, %v1998
      %v2005 = vadd.f32 %v1826, %v2001
      %v2006 = vadd.f32 %v2004, %v489
      %v2007 = vadd.f32 %v2005, %v490
      %v2008 = vld [vmem:[%s6] sm:$0x1]
      %v2009 = vld [vmem:[%s7] sm:$0x1]
      %v2010 = vsel %vm517, %v2006, 0.0
      %2011 = vadd.xlane.f32.xlu0 %v2010
      %v2012 = vpop.xlane.xlu0 %2011
      %vm2013 = vcmask 259072
      %v2014 = vsel %vm2013, %v2007, 0.0
      %2015 = vadd.xlane.f32.xlu0 %v2014
      %v2016 = vpop.xlane.xlu0 %2015
      %v2017 = vrcp.pop 32.0
      %v2018 = vmul.f32 %v2012, %v2017
      %v2019 = vmul.f32 %v2016, %v2017
      %v2020 = vsub.f32 %v2006, %v2018
      %v2021 = vsub.f32 %v2007, %v2019
      %v2022 = vmul.f32 %v2020, %v2020
      %v2023 = vmul.f32 %v2021, %v2021
      %v2024 = vsel %vm517, %v2022, 0.0
      %2025 = vadd.xlane.f32.xlu0 %v2024
      %v2026 = vpop.xlane.xlu0 %2025
      %v2027 = vsel %vm2013, %v2023, 0.0
      %2028 = vadd.xlane.f32.xlu0 %v2027
      %v2029 = vpop.xlane.xlu0 %2028
      %v2030 = vmul.f32 %v2026, %v2017
      %v2031 = vmul.f32 %v2029, %v2017
      %v2032 = vadd.f32 %v2030, 1e-12
      %v2033 = vadd.f32 %v2031, 1e-12
      %v2034 = vrsqrt.pop %v2032
      %v2035 = vrsqrt.pop %v2033
      %v2036 = vmul.f32 %v2020, %v2034
      %v2037 = vmul.f32 %v2021, %v2035
      %v2039 = vlaneseq
      %v2040 = vshrl.u32 %v2039, 7
      %v2041 = vsub.s32 0, %v2040
      %v2042 = vrot.slane %v2008, %v2041
      %v2044 = vmul.f32 %v2036, %v2042
      %v2045 = vmul.f32 %v2037, %v2042
      %v2047 = vlaneseq
      %v2048 = vshrl.u32 %v2047, 7
      %v2049 = vsub.s32 0, %v2048
      %v2050 = vrot.slane %v2009, %v2049
      %v2052 = vadd.f32 %v2044, %v2050
      %v2053 = vadd.f32 %v2045, %v2050
      %v2054 = vpack.c.bf16 %v2053, %v2052
      %v2055 = vld [vmem:[%s8] sm:$0xf]
      %v2056 = vld [vmem:[%s8 + $0x4] sm:$0xf]
      %v2057 = vld [vmem:[%s8 + $0x8] sm:$0xf]
      %v2058 = vld [vmem:[%s8 + $0xc] sm:$0xf]
      %v2059 = vld [vmem:[%s9] sm:$0x1]
      %v2061 = vlaneseq
      %v2062 = vshrl.u32 %v2061, 7
      %v2063 = vsub.s32 0, %v2062
      %v2064 = vrot.slane %v2059, %v2063
      %v2070 = vunpack.c.l.b16 %v2055
      %v2071 = vunpack.c.l.b16 %v2056
      %v2072 = vunpack.c.l.b16 %v2057
      %v2073 = vunpack.c.l.b16 %v2058
      %v2074 = vpack.c.b16 %v2071, %v2070
      %v2075 = vpack.c.b16 %v2073, %v2072
      %v2079 = vsel %vm517, %v2054, 0
      %2081 = vmatprep.subr.bf16.mxu0 0
      %2082 = vmatpush1.bf16.msra.mxu0 0
      %2083 = vmatprep.subr.bf16.mxu0 0
      %2084 = vmatpush1.bf16.msra.mxu0 0
      %2085 = vmatprep.subr.bf16.mxu0 0
      %2086 = vmatpush1.bf16.msra.mxu0 0
      %2087 = vmatprep.subr.bf16.mxu0 0
      %2088 = vmatpush1.bf16.msra.mxu0 0
      %2089 = vmatprep.subr.bf16.mxu0 0
      %2090 = vmatpush1.bf16.msra.mxu0 0
      %2091 = vmatprep.subr.bf16.mxu0 0
      %2092 = vmatpush1.bf16.msra.mxu0 0
      %2093 = vmatprep.subr.bf16.mxu0 0
      %2094 = vmatpush1.bf16.msra.mxu0 %v2075
      %2095 = vmatprep.subr.bf16.mxu0 0
      %2096 = vmatpush1.bf16.msra.mxu0 %v2074
      %2097 = vmatprep.subr.bf16.mxu0 0
      %2098 = vmatpush2.bf16.msra.mxu0 0
      %2099 = vmatprep.subr.bf16.mxu0 0
      %2100 = vmatpush2.bf16.msra.mxu0 0
      %2101 = vmatprep.subr.bf16.mxu0 0
      %2102 = vmatpush2.bf16.msra.mxu0 0
      %2103 = vmatprep.subr.bf16.mxu0 0
      %2104 = vmatpush2.bf16.msra.mxu0 0
      %2105 = vmatprep.subr.bf16.mxu0 0
      %2106 = vmatpush2.bf16.msra.mxu0 0
      %2107 = vmatprep.subr.bf16.mxu0 0
      %2108 = vmatpush2.bf16.msra.mxu0 0
      %2109 = vmatprep.subr.bf16.mxu0 0
      %2110 = vmatpush2.bf16.msra.mxu0 0
      %2111 = vmatprep.subr.bf16.mxu0 0
      %2112 = vmatpush2.bf16.msra.mxu0 0
      %2113 = vmatprep.mubr.bf16.mxu0 0
      %2114 = vmatmul.mubr.bf16.gmra.mxu0 %v2079
      %v2115 = vpop.f32.mrf.mxu0
      %v2116 = vadd.f32 %v2064, %v2115
      %v2117 = vpop.f32.mrf.mxu0
      %v2118 = vpop.f32.mrf.mxu0
      %v2119 = vadd.f32 %v2064, %v2118
      %v2120 = vpop.f32.mrf.mxu0
      %2121 = vdwg.mxu0
      %v2122 = vmul.f32 %v2116, 0.5
      %v2123 = vmul.f32 %v2119, 0.5
      %v2124 = vmul.f32 %v2116, 0.044715
      %v2125 = vmul.f32 %v2119, 0.044715
      %v2126 = vmul.f32 %v2124, %v2116
      %v2127 = vmul.f32 %v2125, %v2119
      %v2128 = vmul.f32 %v2126, %v2116
      %v2129 = vmul.f32 %v2127, %v2119
      %v2130 = vadd.f32 %v2116, %v2128
      %v2131 = vadd.f32 %v2119, %v2129
      %v2132 = vmul.f32 %v2130, 0.7978846
      %v2133 = vmul.f32 %v2131, 0.7978846
      %v2134 = vtanh.pop %v2132
      %v2135 = vtanh.pop %v2133
      %v2136 = vadd.f32 %v2134, 1.0
      %v2137 = vadd.f32 %v2135, 1.0
      %v2138 = vmul.f32 %v2122, %v2136
      %v2139 = vmul.f32 %v2123, %v2137
      %v2140 = vpack.c.bf16 %v2139, %v2138
      %v2141 = vld [vmem:[%s10] sm:$0xf]
      %v2142 = vld [vmem:[%s10 + $0x4] sm:$0xf]
      %v2143 = vld [vmem:[%s10 + $0x8] sm:$0xf]
      %v2144 = vld [vmem:[%s10 + $0xc] sm:$0xf]
      %v2145 = vld [vmem:[%s11] sm:$0x1]
      %v2147 = vlaneseq
      %v2148 = vshrl.u32 %v2147, 7
      %v2149 = vsub.s32 0, %v2148
      %v2150 = vrot.slane %v2145, %v2149
      %v2156 = vunpack.c.l.b16 %v2141
      %v2157 = vunpack.c.l.b16 %v2142
      %v2158 = vunpack.c.l.b16 %v2143
      %v2159 = vunpack.c.l.b16 %v2144
      %v2160 = vpack.c.b16 %v2157, %v2156
      %v2161 = vpack.c.b16 %v2159, %v2158
      %v2165 = vsel %vm517, %v2140, 0
      %2167 = vmatprep.subr.bf16.mxu0 0
      %2168 = vmatpush1.bf16.msra.mxu0 0
      %2169 = vmatprep.subr.bf16.mxu0 0
      %2170 = vmatpush1.bf16.msra.mxu0 0
      %2171 = vmatprep.subr.bf16.mxu0 0
      %2172 = vmatpush1.bf16.msra.mxu0 0
      %2173 = vmatprep.subr.bf16.mxu0 0
      %2174 = vmatpush1.bf16.msra.mxu0 0
      %2175 = vmatprep.subr.bf16.mxu0 0
      %2176 = vmatpush1.bf16.msra.mxu0 0
      %2177 = vmatprep.subr.bf16.mxu0 0
      %2178 = vmatpush1.bf16.msra.mxu0 0
      %2179 = vmatprep.subr.bf16.mxu0 0
      %2180 = vmatpush1.bf16.msra.mxu0 %v2161
      %2181 = vmatprep.subr.bf16.mxu0 0
      %2182 = vmatpush1.bf16.msra.mxu0 %v2160
      %2183 = vmatprep.subr.bf16.mxu0 0
      %2184 = vmatpush2.bf16.msra.mxu0 0
      %2185 = vmatprep.subr.bf16.mxu0 0
      %2186 = vmatpush2.bf16.msra.mxu0 0
      %2187 = vmatprep.subr.bf16.mxu0 0
      %2188 = vmatpush2.bf16.msra.mxu0 0
      %2189 = vmatprep.subr.bf16.mxu0 0
      %2190 = vmatpush2.bf16.msra.mxu0 0
      %2191 = vmatprep.subr.bf16.mxu0 0
      %2192 = vmatpush2.bf16.msra.mxu0 0
      %2193 = vmatprep.subr.bf16.mxu0 0
      %2194 = vmatpush2.bf16.msra.mxu0 0
      %2195 = vmatprep.subr.bf16.mxu0 0
      %2196 = vmatpush2.bf16.msra.mxu0 0
      %2197 = vmatprep.subr.bf16.mxu0 0
      %2198 = vmatpush2.bf16.msra.mxu0 0
      %2199 = vmatprep.mubr.bf16.mxu0 0
      %2200 = vmatmul.mubr.bf16.gmra.mxu0 %v2165
      %v2201 = vpop.f32.mrf.mxu0
      %v2202 = vadd.f32 %v2150, %v2201
      %v2203 = vpop.f32.mrf.mxu0
      %v2204 = vpop.f32.mrf.mxu0
      %v2205 = vadd.f32 %v2150, %v2204
      %v2206 = vpop.f32.mrf.mxu0
      %2207 = vdwg.mxu0
      %v2208 = vadd.f32 %v2202, %v2052
      %v2209 = vadd.f32 %v2205, %v2053
      %v2210 = vld [vmem:[%s12] sm:$0x1]
      %v2211 = vld [vmem:[%s13] sm:$0x1]
      %v2212 = vsel %vm517, %v2208, 0.0
      %2213 = vadd.xlane.f32.xlu0 %v2212
      %v2214 = vpop.xlane.xlu0 %2213
      %v2215 = vsel %vm2013, %v2209, 0.0
      %2216 = vadd.xlane.f32.xlu0 %v2215
      %v2217 = vpop.xlane.xlu0 %2216
      %v2218 = vmul.f32 %v2214, %v2017
      %v2219 = vmul.f32 %v2217, %v2017
      %v2220 = vsub.f32 %v2208, %v2218
      %v2221 = vsub.f32 %v2209, %v2219
      %v2222 = vmul.f32 %v2220, %v2220
      %v2223 = vmul.f32 %v2221, %v2221
      %v2224 = vsel %vm517, %v2222, 0.0
      %2225 = vadd.xlane.f32.xlu0 %v2224
      %v2226 = vpop.xlane.xlu0 %2225
      %v2227 = vsel %vm2013, %v2223, 0.0
      %2228 = vadd.xlane.f32.xlu0 %v2227
      %v2229 = vpop.xlane.xlu0 %2228
      %v2230 = vmul.f32 %v2226, %v2017
      %v2231 = vmul.f32 %v2229, %v2017
      %v2232 = vadd.f32 %v2230, 1e-12
      %v2233 = vadd.f32 %v2231, 1e-12
      %v2234 = vrsqrt.pop %v2232
      %v2235 = vrsqrt.pop %v2233
      %v2236 = vmul.f32 %v2220, %v2234
      %v2237 = vmul.f32 %v2221, %v2235
      %v2239 = vlaneseq
      %v2240 = vshrl.u32 %v2239, 7
      %v2241 = vsub.s32 0, %v2240
      %v2242 = vrot.slane %v2210, %v2241
      %v2244 = vmul.f32 %v2236, %v2242
      %v2245 = vmul.f32 %v2237, %v2242
      %v2247 = vlaneseq
      %v2248 = vshrl.u32 %v2247, 7
      %v2249 = vsub.s32 0, %v2248
      %v2250 = vrot.slane %v2211, %v2249
      %v2252 = vadd.f32 %v2244, %v2250
      %v2253 = vadd.f32 %v2245, %v2250
      %2254 = vst.msk [vmem:[%s487] sm:$0xff] %vm517, %v2252
      %2255 = vst.msk [vmem:[%s487 + $0x8] sm:$0x3f] %vm2013, %v2253
      %p2256 = scmp.lt.s32.totalorder %s25, 1
      %s2257 = scalar_select %p2256, %s25, 1
      %s2258 = smul.addr %s2257, 2
      %s2259 = smul.addr %s2258, 8
      %s2260 = scalar_lea.vmem %s14, %s2259
      // Predicated region
      $region77: #{_lambda_.5} parent=75 // pred_check
        %p2261 = pneg %p347
      $region78: #{_lambda_.5} parent=75 // pred_check_branch
        %2263 = sbr.rel (%p2261) target = $region80
      $region79: #{_lambda_.5} parent=75 // pred_region
        _
      $region80: #{_lambda_.5} parent=75 // pred_fallthru
        _
    $region76: #{_lambda_.5} parent=5 // pred_fallthru
      _
    %p2264 = scmp.le.s32.totalorder 2, %s20
    // Predicated region
    $region81: #{_lambda_.5} parent=5 // pred_check
      %p2265 = pneg %p2264
    $region82: #{_lambda_.5} parent=5 // pred_check_branch
      %2267 = sbr.rel (%p2265) target = $region84
    $region83: #{_lambda_.5} parent=5 // pred_region
      %s2268 = ssub.s32 %s20, 2
      // Predicated region
      $region85: #{_lambda_.5} parent=83 // pred_check
        %p2269 = pneg %p353
      $region86: #{_lambda_.5} parent=83 // pred_check_branch
        %2271 = sbr.rel (%p2269) target = $region88
      $region87: #{_lambda_.5} parent=83 // pred_region
        %p2272 = scmp.lt.s32.totalorder %s26, 1
        %s2273 = scalar_select %p2272, %s26, 1
        %s2274 = smul.addr %s2273, 2
        %s2275 = smul.addr %s2274, 8
        %s2276 = scalar_lea.vmem %s14, %s2275
      $region88: #{_lambda_.5} parent=83 // pred_fallthru
        _
    $region84: #{_lambda_.5} parent=5 // pred_fallthru
      _
  $region6: #{_lambda_.5} parent=0 // loop_footer
    %s24 = sadd.s32 1, %s20
  $region7: #{_lambda_.5} parent=0 // loop_footer_branch
    %19 = sbr.rel target = $region3
  $region8: #{_lambda_.5} parent=0 // loop_exit
    _

</llo_original>
